<compile_context>
chip_gen: v7x
topology: tpu7x:2x2x1
jax: 0.10.0
libtpu: 0.0.40
codegen_flags: <defaults>
</compile_context>

<pallas_src>
import math

import jax
import jax.numpy as jnp
from jax import lax
from jax.experimental import pallas as pl
from jax.experimental.pallas import tpu as pltpu

# --------------------------- synthetic small config -------------------------
B, S = 2, 8                       # batch, sequence length
H, NH, FF, LAYERS = 32, 2, 64, 2  # bert hidden, heads, intermediate, layers
DH = H // NH
VOCAB, MAX_POS, TYPES = 50, 16, 2
NUM_LABELS = 8                    # num_labels
FC_HIDDEN = 64                    # fc_hidden_size constructor arg (default 1024, shrunk)
INV_SQRT2 = 0.7071067811865476
BF16 = jnp.bfloat16

# packed per-layer vector rows
(R_QKV_B, R_AO_B, R_LN1_G, R_LN1_B, R_I_B, R_O_B, R_LN2_G, R_LN2_B) = range(8)
VEC_W = max(3 * H, FF)
OUT_W = 128                       # lane-dense packed head-output slab width

# ------------------------------- in-kernel math ------------------------------

def _layernorm(x, g, b, eps=1e-12):
    mu = jnp.mean(x, axis=-1, keepdims=True)
    var = jnp.mean((x - mu) ** 2, axis=-1, keepdims=True)
    return (x - mu) * lax.rsqrt(var + eps) * g + b


def _gelu(x):                       # exact (erf) GELU, as in BERT
    return 0.5 * x * (1.0 + lax.erf(x * INV_SQRT2))


def _leaky(x, slope):
    return jnp.where(x >= 0, x, slope * x)


def _mm(a, b):
    return jnp.dot(a, b, preferred_element_type=jnp.float32)

# --------------------------- fused BERT encoder kernel -----------------------
# grid = (n_models, n_layers); activation lives in the output block (resident
# across the layer axis).  Layer 0 also applies the embedding LayerNorm.

def _encoder_kernel(x_ref, mask_ref, embln_ref,
                    qkvw_ref, aow_ref, iw_ref, ow_ref, vec_ref,
                    hid_ref, ctx_ref):
    l = pl.program_id(1)

    @pl.when(l == 0)
    def _():                                    # embeddings -> LayerNorm
        g = embln_ref[0, 0:1, :]
        b = embln_ref[0, 1:2, :]
        hid_ref[0] = _layernorm(x_ref[0], g, b)

    x = hid_ref[0]                              # (B*S, H) f32, resident in VMEM

    vec = vec_ref[0, 0]                         # (8, VEC_W) packed per-layer vectors
    qkv_b = vec[R_QKV_B:R_QKV_B + 1, :3 * H]
    ao_b = vec[R_AO_B:R_AO_B + 1, :H]
    ln1_g = vec[R_LN1_G:R_LN1_G + 1, :H]
    ln1_b = vec[R_LN1_B:R_LN1_B + 1, :H]
    i_b = vec[R_I_B:R_I_B + 1, :FF]
    o_b = vec[R_O_B:R_O_B + 1, :H]
    ln2_g = vec[R_LN2_G:R_LN2_G + 1, :H]
    ln2_b = vec[R_LN2_B:R_LN2_B + 1, :H]

    # fused QKV projection (bf16 MXU inputs, f32 accumulation)
    xb = x.astype(BF16)
    qkv = (_mm(xb, qkvw_ref[0, 0]) + qkv_b).reshape(B, S, 3 * H)   # (B, S, 3H) f32
    mask = mask_ref[...]                                           # (B, S, S) additive

    scale = 1.0 / math.sqrt(DH)
    for h in range(NH):                          # small static unroll over heads
        qh = qkv[:, :, h * DH:(h + 1) * DH]
        kh = qkv[:, :, H + h * DH:H + (h + 1) * DH]
        vh = qkv[:, :, 2 * H + h * DH:2 * H + (h + 1) * DH]
        s = jnp.einsum('bqd,bkd->bqk', qh.astype(BF16), kh.astype(BF16),
                       preferred_element_type=jnp.float32) * scale
        s = s + mask
        s = s - jnp.max(s, axis=-1, keepdims=True)
        p = jnp.exp(s)
        p = p * pl.reciprocal(jnp.sum(p, axis=-1, keepdims=True), approx=True)
        ctx = jnp.einsum('bqk,bkd->bqd', p.astype(BF16), vh.astype(BF16),
                         preferred_element_type=jnp.float32)       # (B, S, DH)
        ctx_ref[:, :, h * DH:(h + 1) * DH] = ctx

    # single output projection over all heads (K = H instead of NH shallow K = DH)
    attn = _mm(ctx_ref[...].reshape(B * S, H).astype(BF16), aow_ref[0, 0]) + ao_b

    x = _layernorm(x + attn, ln1_g, ln1_b)
    inter = _gelu(_mm(x.astype(BF16), iw_ref[0, 0]) + i_b)
    ffn = _mm(inter.astype(BF16), ow_ref[0, 0]) + o_b
    x = _layernorm(x + ffn, ln2_g, ln2_b)
    hid_ref[0] = x


def bert_encoder(bp, x_in, mask):
    n_models, bs, hdim = x_in.shape
    n_layers = bp["qkv_w"].shape[1]

    def mspec(a):                       # per-model, layer-invariant
        nd = a.ndim
        return pl.BlockSpec((1,) + a.shape[1:], lambda m, l: (m,) + (0,) * (nd - 1))

    def lspec(a):                       # per-model, per-layer
        nd = a.ndim
        return pl.BlockSpec((1, 1) + a.shape[2:], lambda m, l: (m, l) + (0,) * (nd - 2))

    in_specs = [mspec(x_in),
                pl.BlockSpec(mask.shape, lambda m, l: (0, 0, 0)),
                mspec(bp["emb_ln"]),
                lspec(bp["qkv_w"]), lspec(bp["ao_w"]),
                lspec(bp["i_w"]), lspec(bp["o_w"]),
                lspec(bp["vecs"])]

    return pl.pallas_call(
        _encoder_kernel,
        out_shape=jax.ShapeDtypeStruct((n_models, bs, hdim), jnp.float32),
        grid=(n_models, n_layers),
        in_specs=in_specs,
        out_specs=pl.BlockSpec((1, bs, hdim), lambda m, l: (m, 0, 0)),
        scratch_shapes=[pltpu.VMEM((B, S, H), jnp.float32)],   # per-head ctx columns
        compiler_params=pltpu.CompilerParams(
            dimension_semantics=("parallel", "arbitrary"),
            vmem_limit_bytes=48 * 1024 * 1024),
    )(x_in, mask,
      bp["emb_ln"],
      bp["qkv_w"], bp["ao_w"], bp["i_w"], bp["o_w"],
      bp["vecs"])

# ------------------------------- fused head kernel ---------------------------
# Poolers (tanh), fc, round, real_label, discriminator (sigmoid) and corrector
# (eval-BN folded, LeakyReLU(True) == slope 1.0 == identity) in one call.
# Concatenated inputs are replaced by split weight matrices; all four results
# are packed into one lane-dense (batch, 128) output slab.

def _head_kernel(*refs):
    (sv0_ref, cls0_ref, sv1_ref, cls1_ref, lab_ref,
     p0w_ref, p0b_ref, p1w_ref, p1b_ref,
     fcws_ref, fcwp_ref, fcb_ref,
     cew_ref, ceb_ref, news_ref, newp_ref, neb_ref,
     d1wc_ref, d1wn_ref, d1b_ref, d2w_ref, d2b_ref, d3w_ref, d3b_ref,
     ce1w_ref, ce1b_ref,
     c1wc_ref, c1ws_ref, c1wp_ref, c1b_ref,
     c2w_ref, c2b_ref, c3w_ref, c3b_ref,
     out_ref) = refs

    sen0 = sv0_ref[...]
    sen1 = sv1_ref[...]
    pooled0 = jnp.tanh(_mm(cls0_ref[...], p0w_ref[...]) + p0b_ref[...])
    pooled1 = jnp.tanh(_mm(cls1_ref[...], p1w_ref[...]) + p1b_ref[...])

    # self.fc (multi_fc=False) on [sen_vec | pooled]; dropout is identity in eval.
    logits = _mm(sen0, fcws_ref[...]) + _mm(pooled0, fcwp_ref[...]) + fcb_ref[...]
    code = jnp.round(logits)                      # torch.round (half-to-even)

    eq = jnp.where(code == lab_ref[...], 1.0, 0.0)
    real = jnp.min(eq, axis=-1, keepdims=True)    # .all(dim=-1, keepdim=True)

    # discriminator: Linear(500,256)-LReLU(0.2)-Linear(256,128)-LReLU(0.2)-Linear(128,1)-Sigmoid
    ce = _mm(code, cew_ref[...]) + ceb_ref[...]
    ne = _mm(sen0, news_ref[...]) + _mm(pooled0, newp_ref[...]) + neb_ref[...]
    d = _leaky(_mm(ce, d1wc_ref[...]) + _mm(ne, d1wn_ref[...]) + d1b_ref[...], 0.2)
    d = _leaky(_mm(d, d2w_ref[...]) + d2b_ref[...], 0.2)
    d = _mm(d, d3w_ref[...]) + d3b_ref[...]
    disc = pl.reciprocal(1.0 + jnp.exp(-d), approx=True)          # sigmoid via EUP

    # corrector (Batch_Net_CLS): eval-BatchNorm folded into c1/c2 weights;
    # nn.LeakyReLU(True) -> negative_slope=1.0 -> identity (bug kept from original).
    ce1 = _mm(code, ce1w_ref[...]) + ce1b_ref[...]
    c = (_mm(ce1, c1wc_ref[...]) + _mm(sen1, c1ws_ref[...])
         + _mm(pooled1, c1wp_ref[...]) + c1b_ref[...])
    c = _mm(c, c2w_ref[...]) + c2b_ref[...]
    c = _mm(c, c3w_ref[...]) + c3b_ref[...]
    corr = jnp.round(c)

    # lane-dense packed output slab: [code | corr | disc | real | zero pad]
    out_ref[...] = jnp.zeros_like(out_ref)
    out_ref[:, 0:NUM_LABELS] = code
    out_ref[:, NUM_LABELS:2 * NUM_LABELS] = corr
    out_ref[:, 2 * NUM_LABELS:2 * NUM_LABELS + 1] = disc
    out_ref[:, 2 * NUM_LABELS + 1:2 * NUM_LABELS + 2] = real


def head_forward(hp, pooler_w, pooler_b, sen0, cls0, sen1, cls1, new_labels):
    batch = sen0.shape[0]
    nl = new_labels.shape[1]

    args = [sen0, cls0, sen1, cls1, new_labels,
            pooler_w[0], pooler_b[0], pooler_w[1], pooler_b[1],
            hp["fc_w_s"], hp["fc_w_p"], hp["fc_b"],
            hp["ce_w"], hp["ce_b"], hp["ne_w_s"], hp["ne_w_p"], hp["ne_b"],
            hp["d1_w_c"], hp["d1_w_n"], hp["d1_b"],
            hp["d2_w"], hp["d2_b"], hp["d3_w"], hp["d3_b"],
            hp["ce1_w"], hp["ce1_b"],
            hp["c1_w_c"], hp["c1_w_s"], hp["c1_w_p"], hp["c1_b"],
            hp["c2_w"], hp["c2_b"], hp["c3_w"], hp["c3_b"]]

    def full_spec(a):
        nd = a.ndim
        return pl.BlockSpec(a.shape, lambda *_: (0,) * nd)

    slab = pl.pallas_call(
        _head_kernel,
        out_shape=jax.ShapeDtypeStruct((batch, OUT_W), jnp.float32),
        grid=(1,),
        in_specs=[full_spec(a) for a in args],
        out_specs=pl.BlockSpec((batch, OUT_W), lambda *_: (0, 0)),
    )(*args)

    code_pred = slab[:, :nl]
    corr_pred = slab[:, nl:2 * nl]
    disc_pred = slab[:, 2 * nl:2 * nl + 1]
    real_label = slab[:, 2 * nl + 1:2 * nl + 2]
    return code_pred, disc_pred, real_label, corr_pred

# --------------------------- MwpBertModel_CLS forward ------------------------
# Eval branch of forward(); nn.Dropout layers are identity in eval mode.

def mwp_forward(params, input_ids, attention_mask, token_type_ids, labels):
    batch, seq = input_ids.shape
    bp = params["berts"]          # bert / bert1 params stacked on a leading axis of 2
    hp = params["head"]

    # Embedding gathers (plain JAX), stacked over the two models.
    emb = (bp["word_emb"][:, input_ids]
           + bp["pos_emb"][:, None, :seq, :]
           + bp["type_emb"][:, token_type_ids])                 # (2, B, S, H)
    x_in = emb.reshape(2, batch * seq, H)

    # Per-batch additive key-padding mask (B, Sq, Sk): padded keys -> -10000;
    # exp underflows those terms to exactly 0, matching the BERT extended mask.
    key_mask = jnp.where(attention_mask > 0, 0.0, -10000.0).astype(jnp.float32)  # (B, S)
    mask = jnp.broadcast_to(key_mask[:, None, :], (batch, seq, seq))

    hidden = bert_encoder(bp, x_in, mask).reshape(2, batch, seq, H)

    cls = hidden[:, :, 0, :]                                    # (2, B, H) CLS rows
    tok = hidden[:, :, 1:-1, :]                                 # token_embeddings[:, 1:-1, :]
    idx = labels[:, 0]
    sen = tok[:, jnp.arange(batch), idx, :]                     # (2, B, H) "num" vectors

    new_labels = labels[:, 1:].astype(jnp.float32)

    code_pred, disc_pred, real_label, corr_pred = head_forward(
        hp, bp["pooler_w"], bp["pooler_b"], sen[0], cls[0], sen[1], cls[1], new_labels)

    # TODO(synk): training branch (dropout RNG, MSE/BCE losses, loss_g/loss_d) not implemented.
    return code_pred, None, disc_pred, real_label, corr_pred

# ------------------------------ parameter init -------------------------------

def _init_bert(key):
    keys = iter(jax.random.split(key, 64))

    def nrm(shape, s=0.02):
        return jax.random.normal(next(keys), shape, jnp.float32) * s

    p = dict(
        word_emb=nrm((VOCAB, H)),
        pos_emb=nrm((MAX_POS, H)),
        type_emb=nrm((TYPES, H)),
        # rows: [gamma, beta] of the embedding LayerNorm
        emb_ln=jnp.stack([jnp.ones((H,), jnp.float32), jnp.zeros((H,), jnp.float32)]),
        pooler_w=nrm((H, H)),
        pooler_b=jnp.zeros((1, H), jnp.float32),
    )
    # Per-layer big weights stacked on a leading LAYERS axis, stored bf16 for the
    # MXU; Q/K/V fused to (H, 3H).
    p["qkv_w"] = jnp.stack([jnp.concatenate([nrm((H, H)) for _ in range(3)], axis=1)
                            for _ in range(LAYERS)]).astype(BF16)
    p["ao_w"] = jnp.stack([nrm((H, H)) for _ in range(LAYERS)]).astype(BF16)
    p["i_w"] = jnp.stack([nrm((H, FF)) for _ in range(LAYERS)]).astype(BF16)
    p["o_w"] = jnp.stack([nrm((FF, H)) for _ in range(LAYERS)]).astype(BF16)

    # Packed per-layer small vectors (one DMA stream instead of ~10):
    # rows [qkv_b, ao_b, ln1_g, ln1_b, i_b, o_b, ln2_g, ln2_b], zero-padded to VEC_W.
    vecs = jnp.zeros((LAYERS, 8, VEC_W), jnp.float32)
    vecs = vecs.at[:, R_LN1_G, :H].set(1.0)
    vecs = vecs.at[:, R_LN2_G, :H].set(1.0)
    p["vecs"] = vecs
    return p


def _init_head(key):
    ks = iter(jax.random.split(key, 40))

    def nrm(shape, s=0.05):
        return jax.random.normal(next(ks), shape, jnp.float32) * s

    def bn(n):  # eval-mode BatchNorm1d folded to per-feature (scale, shift)
        gamma = 1.0 + 0.1 * jax.random.normal(next(ks), (1, n), jnp.float32)
        beta = 0.1 * jax.random.normal(next(ks), (1, n), jnp.float32)
        r_mean = 0.1 * jax.random.normal(next(ks), (1, n), jnp.float32)
        r_var = jnp.abs(jax.random.normal(next(ks), (1, n), jnp.float32)) + 0.5
        scale = gamma / jnp.sqrt(r_var + 1e-5)
        shift = beta - r_mean * scale
        return scale, shift

    p = {}
    fc_w = nrm((2 * H, NUM_LABELS))
    p["fc_w_s"], p["fc_w_p"] = fc_w[:H], fc_w[H:]
    p["fc_b"] = jnp.zeros((1, NUM_LABELS), jnp.float32)

    p["ce_w"] = nrm((NUM_LABELS, 100)); p["ce_b"] = jnp.zeros((1, 100), jnp.float32)
    ne_w = nrm((2 * H, 400))
    p["ne_w_s"], p["ne_w_p"] = ne_w[:H], ne_w[H:]
    p["ne_b"] = jnp.zeros((1, 400), jnp.float32)

    d1_w = nrm((100 + 400, 256))
    p["d1_w_c"], p["d1_w_n"] = d1_w[:100], d1_w[100:]
    p["d1_b"] = jnp.zeros((1, 256), jnp.float32)
    p["d2_w"] = nrm((256, 128)); p["d2_b"] = jnp.zeros((1, 128), jnp.float32)
    p["d3_w"] = nrm((128, 1)); p["d3_b"] = jnp.zeros((1, 1), jnp.float32)

    # code_emb1 is referenced but never constructed in the original __init__ (bug);
    # its output width must be 128 to match corrector in_dim = 128 + 2*hidden.
    p["ce1_w"] = nrm((NUM_LABELS, 128)); p["ce1_b"] = jnp.zeros((1, 128), jnp.float32)

    cin = 128 + 2 * H  # original hardcodes 128 + 768*2 (bert-base); scaled to our H
    c1_w = nrm((cin, FC_HIDDEN)); c1_b = jnp.zeros((1, FC_HIDDEN), jnp.float32)
    s1, t1 = bn(FC_HIDDEN)
    c1_w = c1_w * s1                       # fold eval-BN scale into weight columns
    c1_b = c1_b * s1 + t1                  # fold eval-BN shift into bias
    p["c1_w_c"], p["c1_w_s"], p["c1_w_p"] = c1_w[:128], c1_w[128:128 + H], c1_w[128 + H:]
    p["c1_b"] = c1_b

    c2_w = nrm((FC_HIDDEN, FC_HIDDEN // 2)); c2_b = jnp.zeros((1, FC_HIDDEN // 2), jnp.float32)
    s2, t2 = bn(FC_HIDDEN // 2)
    p["c2_w"] = c2_w * s2
    p["c2_b"] = c2_b * s2 + t2

    p["c3_w"] = nrm((FC_HIDDEN // 2, NUM_LABELS))
    p["c3_b"] = jnp.zeros((1, NUM_LABELS), jnp.float32)
    return p

# ----------------------------------- main ------------------------------------

if __name__ == "__main__":
    key = jax.random.PRNGKey(0)
    k_bert, k_bert1, k_head, k_ids, k_lab, k_code = jax.random.split(key, 6)

    bert0 = _init_bert(k_bert)
    bert1 = _init_bert(k_bert1)
    berts = jax.tree_util.tree_map(lambda a, b: jnp.stack([a, b]), bert0, bert1)
    params = dict(berts=berts, head=_init_head(k_head))

    input_ids = jax.random.randint(k_ids, (B, S), 0, VOCAB, dtype=jnp.int32)
    attention_mask = jnp.ones((B, S), jnp.int32).at[1, S - 2:].set(0)
    token_type_ids = jnp.zeros((B, S), jnp.int32)
    # labels[:, 0] = position of the "num" token inside token_embeddings[:, 1:-1, :]
    # labels[:, 1:] = binary code of length NUM_LABELS
    num_pos = jax.random.randint(k_lab, (B, 1), 0, S - 2, dtype=jnp.int32)
    codes = jax.random.randint(k_code, (B, NUM_LABELS), 0, 2, dtype=jnp.int32)
    labels = jnp.concatenate([num_pos, codes], axis=1)

    fwd = jax.jit(mwp_forward)
    out = fwd(params, input_ids, attention_mask, token_type_ids, labels)
    jax.block_until_ready([o for o in out if o is not None])

    code_pred, _none, disc_pred, real_label, corr_pred = out
    assert code_pred.shape == (B, NUM_LABELS)
    assert disc_pred.shape == (B, 1)
    assert real_label.shape == (B, 1)
    assert corr_pred.shape == (B, NUM_LABELS)
    assert jnp.all(jnp.isfinite(code_pred)) and jnp.all(jnp.isfinite(corr_pred))
    assert jnp.all((disc_pred >= 0.0) & (disc_pred <= 1.0))
    print("KERNEL_OK")
</pallas_src>

<mosaic_0001>
module attributes {stable_mosaic.version = 11 : i64} {
  func.func @_encoder_kernel(%arg0: i32, %arg1: i32, %arg2: memref<1x16x32xf32, #tpu.memory_space<vmem>>, %arg3: memref<2x8x8xf32, #tpu.memory_space<vmem>>, %arg4: memref<1x2x32xf32, #tpu.memory_space<vmem>>, %arg5: memref<1x1x32x96xbf16, #tpu.memory_space<vmem>>, %arg6: memref<1x1x32x32xbf16, #tpu.memory_space<vmem>>, %arg7: memref<1x1x32x64xbf16, #tpu.memory_space<vmem>>, %arg8: memref<1x1x64x32xbf16, #tpu.memory_space<vmem>>, %arg9: memref<1x1x8x96xf32, #tpu.memory_space<vmem>>, %arg10: memref<1x16x32xf32, #tpu.memory_space<vmem>>, %arg11: memref<2x8x32xf32, #tpu.memory_space<vmem>>) attributes {dimension_semantics = [#tpu.dimension_semantics<parallel>, #tpu.dimension_semantics<arbitrary>], iteration_bounds = array<i64: 2, 2>, scalar_prefetch = 0 : i64, scratch_operands = 1 : i64, tpu.core_type = #tpu.core_type<tc>, window_params = [{transform_indices = @transform_0, window_bounds = array<i64: 1, 16, 32>}, {pipeline_mode = #tpu.pipeline_mode<synchronous>, transform_indices = @transform_1, window_bounds = array<i64: 2, 8, 8>}, {transform_indices = @transform_2, window_bounds = array<i64: 1, 2, 32>}, {transform_indices = @transform_3, window_bounds = array<i64: 1, 1, 32, 96>}, {transform_indices = @transform_4, window_bounds = array<i64: 1, 1, 32, 32>}, {transform_indices = @transform_5, window_bounds = array<i64: 1, 1, 32, 64>}, {transform_indices = @transform_6, window_bounds = array<i64: 1, 1, 64, 32>}, {transform_indices = @transform_7, window_bounds = array<i64: 1, 1, 8, 96>}, {transform_indices = @transform_8, window_bounds = array<i64: 1, 16, 32>}]} {
    %c0_i32 = arith.constant 0 : i32
    %0 = arith.cmpi eq, %arg1, %c0_i32 : i32
    %1 = arith.extui %0 : i1 to i32
    %c0_i32_0 = arith.constant 0 : i32
    %2 = arith.cmpi ne, %1, %c0_i32_0 : i32
    scf.if %2 {
      %c0_63 = arith.constant 0 : index
      %c0_64 = arith.constant 0 : index
      %c0_65 = arith.constant 0 : index
      %146 = vector.load %arg4[%c0_63, %c0_64, %c0_65] : memref<1x2x32xf32, #tpu.memory_space<vmem>>, vector<1x1x32xf32>
      %147 = vector.shape_cast %146 : vector<1x1x32xf32> to vector<1x32xf32>
      %c0_66 = arith.constant 0 : index
      %c1 = arith.constant 1 : index
      %c0_67 = arith.constant 0 : index
      %148 = vector.load %arg4[%c0_66, %c1, %c0_67] : memref<1x2x32xf32, #tpu.memory_space<vmem>>, vector<1x1x32xf32>
      %149 = vector.shape_cast %148 : vector<1x1x32xf32> to vector<1x32xf32>
      %c0_68 = arith.constant 0 : index
      %c0_69 = arith.constant 0 : index
      %c0_70 = arith.constant 0 : index
      %150 = vector.load %arg2[%c0_68, %c0_69, %c0_70] : memref<1x16x32xf32, #tpu.memory_space<vmem>>, vector<1x16x32xf32>
      %151 = vector.shape_cast %150 : vector<1x16x32xf32> to vector<16x32xf32>
      %cst_71 = arith.constant dense<0.000000e+00> : vector<16xf32>
      %152 = vector.multi_reduction <add>, %151, %cst_71 [1] : vector<16x32xf32> to vector<16xf32>
      %153 = vector.shape_cast %152 : vector<16xf32> to vector<16x1xf32>
      %cst_72 = arith.constant 3.200000e+01 : f32
      %154 = vector.broadcast %cst_72 : f32 to vector<16x1xf32>
      %155 = arith.divf %153, %154 : vector<16x1xf32>
      %156 = vector.broadcast %155 : vector<16x1xf32> to vector<16x32xf32>
      %157 = arith.subf %151, %156 : vector<16x32xf32>
      %158 = arith.mulf %157, %157 : vector<16x32xf32>
      %cst_73 = arith.constant dense<0.000000e+00> : vector<16xf32>
      %159 = vector.multi_reduction <add>, %158, %cst_73 [1] : vector<16x32xf32> to vector<16xf32>
      %160 = vector.shape_cast %159 : vector<16xf32> to vector<16x1xf32>
      %cst_74 = arith.constant 3.200000e+01 : f32
      %161 = vector.broadcast %cst_74 : f32 to vector<16x1xf32>
      %162 = arith.divf %160, %161 : vector<16x1xf32>
      %163 = vector.broadcast %155 : vector<16x1xf32> to vector<16x32xf32>
      %164 = arith.subf %151, %163 : vector<16x32xf32>
      %cst_75 = arith.constant 9.99999996E-13 : f32
      %165 = vector.broadcast %cst_75 : f32 to vector<16x1xf32>
      %166 = arith.addf %162, %165 : vector<16x1xf32>
      %167 = math.rsqrt %166 : vector<16x1xf32>
      %168 = vector.broadcast %167 : vector<16x1xf32> to vector<16x32xf32>
      %169 = arith.mulf %164, %168 : vector<16x32xf32>
      %170 = vector.broadcast %147 : vector<1x32xf32> to vector<16x32xf32>
      %171 = arith.mulf %169, %170 : vector<16x32xf32>
      %172 = vector.broadcast %149 : vector<1x32xf32> to vector<16x32xf32>
      %173 = arith.addf %171, %172 : vector<16x32xf32>
      %c0_76 = arith.constant 0 : index
      %c0_77 = arith.constant 0 : index
      %c0_78 = arith.constant 0 : index
      %174 = vector.load %arg10[%c0_76, %c0_77, %c0_78] : memref<1x16x32xf32, #tpu.memory_space<vmem>>, vector<1x16x32xf32>
      %175 = vector.shape_cast %174 : vector<1x16x32xf32> to vector<16x32xf32>
      %176 = vector.shape_cast %173 : vector<16x32xf32> to vector<1x16x32xf32>
      tpu.vector_store %arg10[%c0_76, %c0_77, %c0_78], %176 {strides = array<i32>} : memref<1x16x32xf32, #tpu.memory_space<vmem>>, vector<1x16x32xf32>,
    } else {
    }
    %c0 = arith.constant 0 : index
    %c0_1 = arith.constant 0 : index
    %c0_2 = arith.constant 0 : index
    %3 = vector.load %arg10[%c0, %c0_1, %c0_2] : memref<1x16x32xf32, #tpu.memory_space<vmem>>, vector<1x16x32xf32>
    %4 = vector.shape_cast %3 : vector<1x16x32xf32> to vector<16x32xf32>
    %c0_3 = arith.constant 0 : index
    %c0_4 = arith.constant 0 : index
    %c0_5 = arith.constant 0 : index
    %c0_6 = arith.constant 0 : index
    %5 = vector.load %arg9[%c0_3, %c0_4, %c0_5, %c0_6] : memref<1x1x8x96xf32, #tpu.memory_space<vmem>>, vector<1x1x8x96xf32>
    %6 = vector.shape_cast %5 : vector<1x1x8x96xf32> to vector<8x96xf32>
    %7 = vector.extract_strided_slice %6 {offsets = [0, 0], sizes = [1, 96], strides = [1, 1]} : vector<8x96xf32> to vector<1x96xf32>
    %8 = vector.extract_strided_slice %6 {offsets = [1, 0], sizes = [1, 32], strides = [1, 1]} : vector<8x96xf32> to vector<1x32xf32>
    %9 = vector.extract_strided_slice %6 {offsets = [2, 0], sizes = [1, 32], strides = [1, 1]} : vector<8x96xf32> to vector<1x32xf32>
    %10 = vector.extract_strided_slice %6 {offsets = [3, 0], sizes = [1, 32], strides = [1, 1]} : vector<8x96xf32> to vector<1x32xf32>
    %11 = vector.extract_strided_slice %6 {offsets = [4, 0], sizes = [1, 64], strides = [1, 1]} : vector<8x96xf32> to vector<1x64xf32>
    %12 = vector.extract_strided_slice %6 {offsets = [5, 0], sizes = [1, 32], strides = [1, 1]} : vector<8x96xf32> to vector<1x32xf32>
    %13 = vector.extract_strided_slice %6 {offsets = [6, 0], sizes = [1, 32], strides = [1, 1]} : vector<8x96xf32> to vector<1x32xf32>
    %14 = vector.extract_strided_slice %6 {offsets = [7, 0], sizes = [1, 32], strides = [1, 1]} : vector<8x96xf32> to vector<1x32xf32>
    %15 = arith.truncf %4 : vector<16x32xf32> to vector<16x32xbf16>
    %c0_7 = arith.constant 0 : index
    %c0_8 = arith.constant 0 : index
    %c0_9 = arith.constant 0 : index
    %c0_10 = arith.constant 0 : index
    %16 = vector.load %arg5[%c0_7, %c0_8, %c0_9, %c0_10] : memref<1x1x32x96xbf16, #tpu.memory_space<vmem>>, vector<1x1x32x96xbf16>
    %17 = vector.shape_cast %16 : vector<1x1x32x96xbf16> to vector<32x96xbf16>
    %cst = arith.constant dense<0.000000e+00> : vector<16x96xf32>
    %18 = tpu.matmul %15, %17, %cst {dimension_numbers = #tpu.dot_dimension_numbers<[1], [0], [0], [1], [0, 0, 1, 1], [], []>} : vector<16x32xbf16>, vector<32x96xbf16>, vector<16x96xf32> -> vector<16x96xf32>
    %19 = vector.broadcast %7 : vector<1x96xf32> to vector<16x96xf32>
    %20 = arith.addf %18, %19 : vector<16x96xf32>
    %21 = vector.shape_cast %20 : vector<16x96xf32> to vector<2x8x96xf32>
    %c0_11 = arith.constant 0 : index
    %c0_12 = arith.constant 0 : index
    %c0_13 = arith.constant 0 : index
    %22 = vector.load %arg3[%c0_11, %c0_12, %c0_13] : memref<2x8x8xf32, #tpu.memory_space<vmem>>, vector<2x8x8xf32>
    %23 = vector.extract_strided_slice %21 {offsets = [0, 0, 0], sizes = [2, 8, 16], strides = [1, 1, 1]} : vector<2x8x96xf32> to vector<2x8x16xf32>
    %24 = vector.extract_strided_slice %21 {offsets = [0, 0, 32], sizes = [2, 8, 16], strides = [1, 1, 1]} : vector<2x8x96xf32> to vector<2x8x16xf32>
    %25 = vector.extract_strided_slice %21 {offsets = [0, 0, 64], sizes = [2, 8, 16], strides = [1, 1, 1]} : vector<2x8x96xf32> to vector<2x8x16xf32>
    %26 = arith.truncf %23 : vector<2x8x16xf32> to vector<2x8x16xbf16>
    %27 = arith.truncf %24 : vector<2x8x16xf32> to vector<2x8x16xbf16>
    "tpu.trace_start"() <{level = 10 : i32, message = "bqd,bkd->bqk"}> : () -> ()
    %cst_14 = arith.constant dense<0.000000e+00> : vector<2x8x8xf32>
    %28 = tpu.matmul %26, %27, %cst_14 {dimension_numbers = #tpu.dot_dimension_numbers<[2], [2], [1], [1], [0, 0, 0, 1, 1, 1], [0], [0]>} : vector<2x8x16xbf16>, vector<2x8x16xbf16>, vector<2x8x8xf32> -> vector<2x8x8xf32>
    "tpu.trace_stop"() : () -> ()
    %cst_15 = arith.constant 2.500000e-01 : f32
    %29 = vector.broadcast %cst_15 : f32 to vector<2x8x8xf32>
    %30 = arith.mulf %28, %29 : vector<2x8x8xf32>
    %31 = arith.addf %30, %22 : vector<2x8x8xf32>
    %cst_16 = arith.constant dense<0xFF800000> : vector<2x8xf32>
    %32 = vector.multi_reduction <maximumf>, %31, %cst_16 [2] : vector<2x8x8xf32> to vector<2x8xf32>
    %33 = vector.shape_cast %32 : vector<2x8xf32> to vector<2x8x1xf32>
    %34 = vector.broadcast %33 : vector<2x8x1xf32> to vector<2x8x8xf32>
    %35 = arith.subf %31, %34 : vector<2x8x8xf32>
    %36 = math.exp %35 : vector<2x8x8xf32>
    %cst_17 = arith.constant dense<0.000000e+00> : vector<2x8xf32>
    %37 = vector.multi_reduction <add>, %36, %cst_17 [2] : vector<2x8x8xf32> to vector<2x8xf32>
    %38 = vector.shape_cast %37 : vector<2x8xf32> to vector<2x8x1xf32>
    %39 = tpu.reciprocal %38 {approx = true} : vector<2x8x1xf32> -> vector<2x8x1xf32>
    %40 = vector.broadcast %39 : vector<2x8x1xf32> to vector<2x8x8xf32>
    %41 = arith.mulf %36, %40 : vector<2x8x8xf32>
    %42 = arith.truncf %41 : vector<2x8x8xf32> to vector<2x8x8xbf16>
    %43 = arith.truncf %25 : vector<2x8x16xf32> to vector<2x8x16xbf16>
    "tpu.trace_start"() <{level = 10 : i32, message = "bqk,bkd->bqd"}> : () -> ()
    %cst_18 = arith.constant dense<0.000000e+00> : vector<2x8x16xf32>
    %44 = tpu.matmul %42, %43, %cst_18 {dimension_numbers = #tpu.dot_dimension_numbers<[2], [1], [1], [2], [0, 0, 0, 1, 1, 2], [0], [0]>} : vector<2x8x8xbf16>, vector<2x8x16xbf16>, vector<2x8x16xf32> -> vector<2x8x16xf32>
    "tpu.trace_stop"() : () -> ()
    %c0_19 = arith.constant 0 : index
    %c0_20 = arith.constant 0 : index
    %c0_21 = arith.constant 0 : index
    %45 = vector.load %arg11[%c0_19, %c0_20, %c0_21] : memref<2x8x32xf32, #tpu.memory_space<vmem>>, vector<2x8x16xf32>
    tpu.vector_store %arg11[%c0_19, %c0_20, %c0_21], %44 {strides = array<i32>} : memref<2x8x32xf32, #tpu.memory_space<vmem>>, vector<2x8x16xf32>,
    %46 = vector.extract_strided_slice %21 {offsets = [0, 0, 16], sizes = [2, 8, 16], strides = [1, 1, 1]} : vector<2x8x96xf32> to vector<2x8x16xf32>
    %47 = vector.extract_strided_slice %21 {offsets = [0, 0, 48], sizes = [2, 8, 16], strides = [1, 1, 1]} : vector<2x8x96xf32> to vector<2x8x16xf32>
    %48 = vector.extract_strided_slice %21 {offsets = [0, 0, 80], sizes = [2, 8, 16], strides = [1, 1, 1]} : vector<2x8x96xf32> to vector<2x8x16xf32>
    %49 = arith.truncf %46 : vector<2x8x16xf32> to vector<2x8x16xbf16>
    %50 = arith.truncf %47 : vector<2x8x16xf32> to vector<2x8x16xbf16>
    "tpu.trace_start"() <{level = 10 : i32, message = "bqd,bkd->bqk"}> : () -> ()
    %cst_22 = arith.constant dense<0.000000e+00> : vector<2x8x8xf32>
    %51 = tpu.matmul %49, %50, %cst_22 {dimension_numbers = #tpu.dot_dimension_numbers<[2], [2], [1], [1], [0, 0, 0, 1, 1, 1], [0], [0]>} : vector<2x8x16xbf16>, vector<2x8x16xbf16>, vector<2x8x8xf32> -> vector<2x8x8xf32>
    "tpu.trace_stop"() : () -> ()
    %cst_23 = arith.constant 2.500000e-01 : f32
    %52 = vector.broadcast %cst_23 : f32 to vector<2x8x8xf32>
    %53 = arith.mulf %51, %52 : vector<2x8x8xf32>
    %54 = arith.addf %53, %22 : vector<2x8x8xf32>
    %cst_24 = arith.constant dense<0xFF800000> : vector<2x8xf32>
    %55 = vector.multi_reduction <maximumf>, %54, %cst_24 [2] : vector<2x8x8xf32> to vector<2x8xf32>
    %56 = vector.shape_cast %55 : vector<2x8xf32> to vector<2x8x1xf32>
    %57 = vector.broadcast %56 : vector<2x8x1xf32> to vector<2x8x8xf32>
    %58 = arith.subf %54, %57 : vector<2x8x8xf32>
    %59 = math.exp %58 : vector<2x8x8xf32>
    %cst_25 = arith.constant dense<0.000000e+00> : vector<2x8xf32>
    %60 = vector.multi_reduction <add>, %59, %cst_25 [2] : vector<2x8x8xf32> to vector<2x8xf32>
    %61 = vector.shape_cast %60 : vector<2x8xf32> to vector<2x8x1xf32>
    %62 = tpu.reciprocal %61 {approx = true} : vector<2x8x1xf32> -> vector<2x8x1xf32>
    %63 = vector.broadcast %62 : vector<2x8x1xf32> to vector<2x8x8xf32>
    %64 = arith.mulf %59, %63 : vector<2x8x8xf32>
    %65 = arith.truncf %64 : vector<2x8x8xf32> to vector<2x8x8xbf16>
    %66 = arith.truncf %48 : vector<2x8x16xf32> to vector<2x8x16xbf16>
    "tpu.trace_start"() <{level = 10 : i32, message = "bqk,bkd->bqd"}> : () -> ()
    %cst_26 = arith.constant dense<0.000000e+00> : vector<2x8x16xf32>
    %67 = tpu.matmul %65, %66, %cst_26 {dimension_numbers = #tpu.dot_dimension_numbers<[2], [1], [1], [2], [0, 0, 0, 1, 1, 2], [0], [0]>} : vector<2x8x8xbf16>, vector<2x8x16xbf16>, vector<2x8x16xf32> -> vector<2x8x16xf32>
    "tpu.trace_stop"() : () -> ()
    %c0_27 = arith.constant 0 : index
    %c0_28 = arith.constant 0 : index
    %c16 = arith.constant 16 : index
    %68 = vector.load %arg11[%c0_27, %c0_28, %c16] : memref<2x8x32xf32, #tpu.memory_space<vmem>>, vector<2x8x16xf32>
    tpu.vector_store %arg11[%c0_27, %c0_28, %c16], %67 {strides = array<i32>} : memref<2x8x32xf32, #tpu.memory_space<vmem>>, vector<2x8x16xf32>,
    %c0_29 = arith.constant 0 : index
    %c0_30 = arith.constant 0 : index
    %c0_31 = arith.constant 0 : index
    %69 = vector.load %arg11[%c0_29, %c0_30, %c0_31] : memref<2x8x32xf32, #tpu.memory_space<vmem>>, vector<2x8x32xf32>
    %70 = vector.shape_cast %69 : vector<2x8x32xf32> to vector<16x32xf32>
    %71 = arith.truncf %70 : vector<16x32xf32> to vector<16x32xbf16>
    %c0_32 = arith.constant 0 : index
    %c0_33 = arith.constant 0 : index
    %c0_34 = arith.constant 0 : index
    %c0_35 = arith.constant 0 : index
    %72 = vector.load %arg6[%c0_32, %c0_33, %c0_34, %c0_35] : memref<1x1x32x32xbf16, #tpu.memory_space<vmem>>, vector<1x1x32x32xbf16>
    %73 = vector.shape_cast %72 : vector<1x1x32x32xbf16> to vector<32x32xbf16>
    %cst_36 = arith.constant dense<0.000000e+00> : vector<16x32xf32>
    %74 = tpu.matmul %71, %73, %cst_36 {dimension_numbers = #tpu.dot_dimension_numbers<[1], [0], [0], [1], [0, 0, 1, 1], [], []>} : vector<16x32xbf16>, vector<32x32xbf16>, vector<16x32xf32> -> vector<16x32xf32>
    %75 = vector.broadcast %8 : vector<1x32xf32> to vector<16x32xf32>
    %76 = arith.addf %74, %75 : vector<16x32xf32>
    %77 = arith.addf %4, %76 : vector<16x32xf32>
    %cst_37 = arith.constant dense<0.000000e+00> : vector<16xf32>
    %78 = vector.multi_reduction <add>, %77, %cst_37 [1] : vector<16x32xf32> to vector<16xf32>
    %79 = vector.shape_cast %78 : vector<16xf32> to vector<16x1xf32>
    %cst_38 = arith.constant 3.200000e+01 : f32
    %80 = vector.broadcast %cst_38 : f32 to vector<16x1xf32>
    %81 = arith.divf %79, %80 : vector<16x1xf32>
    %82 = vector.broadcast %81 : vector<16x1xf32> to vector<16x32xf32>
    %83 = arith.subf %77, %82 : vector<16x32xf32>
    %84 = arith.mulf %83, %83 : vector<16x32xf32>
    %cst_39 = arith.constant dense<0.000000e+00> : vector<16xf32>
    %85 = vector.multi_reduction <add>, %84, %cst_39 [1] : vector<16x32xf32> to vector<16xf32>
    %86 = vector.shape_cast %85 : vector<16xf32> to vector<16x1xf32>
    %cst_40 = arith.constant 3.200000e+01 : f32
    %87 = vector.broadcast %cst_40 : f32 to vector<16x1xf32>
    %88 = arith.divf %86, %87 : vector<16x1xf32>
    %89 = vector.broadcast %81 : vector<16x1xf32> to vector<16x32xf32>
    %90 = arith.subf %77, %89 : vector<16x32xf32>
    %cst_41 = arith.constant 9.99999996E-13 : f32
    %91 = vector.broadcast %cst_41 : f32 to vector<16x1xf32>
    %92 = arith.addf %88, %91 : vector<16x1xf32>
    %93 = math.rsqrt %92 : vector<16x1xf32>
    %94 = vector.broadcast %93 : vector<16x1xf32> to vector<16x32xf32>
    %95 = arith.mulf %90, %94 : vector<16x32xf32>
    %96 = vector.broadcast %9 : vector<1x32xf32> to vector<16x32xf32>
    %97 = arith.mulf %95, %96 : vector<16x32xf32>
    %98 = vector.broadcast %10 : vector<1x32xf32> to vector<16x32xf32>
    %99 = arith.addf %97, %98 : vector<16x32xf32>
    %100 = arith.truncf %99 : vector<16x32xf32> to vector<16x32xbf16>
    %c0_42 = arith.constant 0 : index
    %c0_43 = arith.constant 0 : index
    %c0_44 = arith.constant 0 : index
    %c0_45 = arith.constant 0 : index
    %101 = vector.load %arg7[%c0_42, %c0_43, %c0_44, %c0_45] : memref<1x1x32x64xbf16, #tpu.memory_space<vmem>>, vector<1x1x32x64xbf16>
    %102 = vector.shape_cast %101 : vector<1x1x32x64xbf16> to vector<32x64xbf16>
    %cst_46 = arith.constant dense<0.000000e+00> : vector<16x64xf32>
    %103 = tpu.matmul %100, %102, %cst_46 {dimension_numbers = #tpu.dot_dimension_numbers<[1], [0], [0], [1], [0, 0, 1, 1], [], []>} : vector<16x32xbf16>, vector<32x64xbf16>, vector<16x64xf32> -> vector<16x64xf32>
    %104 = vector.broadcast %11 : vector<1x64xf32> to vector<16x64xf32>
    %105 = arith.addf %103, %104 : vector<16x64xf32>
    %cst_47 = arith.constant 5.000000e-01 : f32
    %106 = vector.broadcast %cst_47 : f32 to vector<16x64xf32>
    %107 = arith.mulf %106, %105 : vector<16x64xf32>
    %cst_48 = arith.constant 0.707106769 : f32
    %108 = vector.broadcast %cst_48 : f32 to vector<16x64xf32>
    %109 = arith.mulf %105, %108 : vector<16x64xf32>
    %110 = math.erf %109 : vector<16x64xf32>
    %cst_49 = arith.constant 1.000000e+00 : f32
    %111 = vector.broadcast %cst_49 : f32 to vector<16x64xf32>
    %112 = arith.addf %111, %110 : vector<16x64xf32>
    %113 = arith.mulf %107, %112 : vector<16x64xf32>
    %114 = arith.truncf %113 : vector<16x64xf32> to vector<16x64xbf16>
    %c0_50 = arith.constant 0 : index
    %c0_51 = arith.constant 0 : index
    %c0_52 = arith.constant 0 : index
    %c0_53 = arith.constant 0 : index
    %115 = vector.load %arg8[%c0_50, %c0_51, %c0_52, %c0_53] : memref<1x1x64x32xbf16, #tpu.memory_space<vmem>>, vector<1x1x64x32xbf16>
    %116 = vector.shape_cast %115 : vector<1x1x64x32xbf16> to vector<64x32xbf16>
    %cst_54 = arith.constant dense<0.000000e+00> : vector<16x32xf32>
    %117 = tpu.matmul %114, %116, %cst_54 {dimension_numbers = #tpu.dot_dimension_numbers<[1], [0], [0], [1], [0, 0, 1, 1], [], []>} : vector<16x64xbf16>, vector<64x32xbf16>, vector<16x32xf32> -> vector<16x32xf32>
    %118 = vector.broadcast %12 : vector<1x32xf32> to vector<16x32xf32>
    %119 = arith.addf %117, %118 : vector<16x32xf32>
    %120 = arith.addf %99, %119 : vector<16x32xf32>
    %cst_55 = arith.constant dense<0.000000e+00> : vector<16xf32>
    %121 = vector.multi_reduction <add>, %120, %cst_55 [1] : vector<16x32xf32> to vector<16xf32>
    %122 = vector.shape_cast %121 : vector<16xf32> to vector<16x1xf32>
    %cst_56 = arith.constant 3.200000e+01 : f32
    %123 = vector.broadcast %cst_56 : f32 to vector<16x1xf32>
    %124 = arith.divf %122, %123 : vector<16x1xf32>
    %125 = vector.broadcast %124 : vector<16x1xf32> to vector<16x32xf32>
    %126 = arith.subf %120, %125 : vector<16x32xf32>
    %127 = arith.mulf %126, %126 : vector<16x32xf32>
    %cst_57 = arith.constant dense<0.000000e+00> : vector<16xf32>
    %128 = vector.multi_reduction <add>, %127, %cst_57 [1] : vector<16x32xf32> to vector<16xf32>
    %129 = vector.shape_cast %128 : vector<16xf32> to vector<16x1xf32>
    %cst_58 = arith.constant 3.200000e+01 : f32
    %130 = vector.broadcast %cst_58 : f32 to vector<16x1xf32>
    %131 = arith.divf %129, %130 : vector<16x1xf32>
    %132 = vector.broadcast %124 : vector<16x1xf32> to vector<16x32xf32>
    %133 = arith.subf %120, %132 : vector<16x32xf32>
    %cst_59 = arith.constant 9.99999996E-13 : f32
    %134 = vector.broadcast %cst_59 : f32 to vector<16x1xf32>
    %135 = arith.addf %131, %134 : vector<16x1xf32>
    %136 = math.rsqrt %135 : vector<16x1xf32>
    %137 = vector.broadcast %136 : vector<16x1xf32> to vector<16x32xf32>
    %138 = arith.mulf %133, %137 : vector<16x32xf32>
    %139 = vector.broadcast %13 : vector<1x32xf32> to vector<16x32xf32>
    %140 = arith.mulf %138, %139 : vector<16x32xf32>
    %141 = vector.broadcast %14 : vector<1x32xf32> to vector<16x32xf32>
    %142 = arith.addf %140, %141 : vector<16x32xf32>
    %c0_60 = arith.constant 0 : index
    %c0_61 = arith.constant 0 : index
    %c0_62 = arith.constant 0 : index
    %143 = vector.load %arg10[%c0_60, %c0_61, %c0_62] : memref<1x16x32xf32, #tpu.memory_space<vmem>>, vector<1x16x32xf32>
    %144 = vector.shape_cast %143 : vector<1x16x32xf32> to vector<16x32xf32>
    %145 = vector.shape_cast %142 : vector<16x32xf32> to vector<1x16x32xf32>
    tpu.vector_store %arg10[%c0_60, %c0_61, %c0_62], %145 {strides = array<i32>} : memref<1x16x32xf32, #tpu.memory_space<vmem>>, vector<1x16x32xf32>,
    return
  }
  func.func @transform_0(%arg0: i32, %arg1: i32) -> (i32, i32, i32) {
    %c0_i32 = arith.constant 0 : i32
    %c0_i32_0 = arith.constant 0 : i32
    %c0_i32_1 = arith.constant 0 : i32
    return %arg0, %c0_i32, %c0_i32_0 : i32, i32, i32
  }
  func.func @transform_1(%arg0: i32, %arg1: i32) -> (i32, i32, i32) {
    %c0_i32 = arith.constant 0 : i32
    %c0_i32_0 = arith.constant 0 : i32
    %c0_i32_1 = arith.constant 0 : i32
    %c0_i32_2 = arith.constant 0 : i32
    return %c0_i32, %c0_i32_0, %c0_i32_1 : i32, i32, i32
  }
  func.func @transform_2(%arg0: i32, %arg1: i32) -> (i32, i32, i32) {
    %c0_i32 = arith.constant 0 : i32
    %c0_i32_0 = arith.constant 0 : i32
    %c0_i32_1 = arith.constant 0 : i32
    return %arg0, %c0_i32, %c0_i32_0 : i32, i32, i32
  }
  func.func @transform_3(%arg0: i32, %arg1: i32) -> (i32, i32, i32, i32) {
    %c0_i32 = arith.constant 0 : i32
    %c0_i32_0 = arith.constant 0 : i32
    %c0_i32_1 = arith.constant 0 : i32
    return %arg0, %arg1, %c0_i32, %c0_i32_0 : i32, i32, i32, i32
  }
  func.func @transform_4(%arg0: i32, %arg1: i32) -> (i32, i32, i32, i32) {
    %c0_i32 = arith.constant 0 : i32
    %c0_i32_0 = arith.constant 0 : i32
    %c0_i32_1 = arith.constant 0 : i32
    return %arg0, %arg1, %c0_i32, %c0_i32_0 : i32, i32, i32, i32
  }
  func.func @transform_5(%arg0: i32, %arg1: i32) -> (i32, i32, i32, i32) {
    %c0_i32 = arith.constant 0 : i32
    %c0_i32_0 = arith.constant 0 : i32
    %c0_i32_1 = arith.constant 0 : i32
    return %arg0, %arg1, %c0_i32, %c0_i32_0 : i32, i32, i32, i32
  }
  func.func @transform_6(%arg0: i32, %arg1: i32) -> (i32, i32, i32, i32) {
    %c0_i32 = arith.constant 0 : i32
    %c0_i32_0 = arith.constant 0 : i32
    %c0_i32_1 = arith.constant 0 : i32
    return %arg0, %arg1, %c0_i32, %c0_i32_0 : i32, i32, i32, i32
  }
  func.func @transform_7(%arg0: i32, %arg1: i32) -> (i32, i32, i32, i32) {
    %c0_i32 = arith.constant 0 : i32
    %c0_i32_0 = arith.constant 0 : i32
    %c0_i32_1 = arith.constant 0 : i32
    return %arg0, %arg1, %c0_i32, %c0_i32_0 : i32, i32, i32, i32
  }
  func.func @transform_8(%arg0: i32, %arg1: i32) -> (i32, i32, i32) {
    %c0_i32 = arith.constant 0 : i32
    %c0_i32_0 = arith.constant 0 : i32
    %c0_i32_1 = arith.constant 0 : i32
    return %arg0, %c0_i32, %c0_i32_0 : i32, i32, i32
  }
}

module attributes {stable_mosaic.version = 11 : i64} {
  func.func @_head_kernel(%arg0: i32, %arg1: memref<2x32xf32, #tpu.memory_space<vmem>>, %arg2: memref<2x32xf32, #tpu.memory_space<vmem>>, %arg3: memref<2x32xf32, #tpu.memory_space<vmem>>, %arg4: memref<2x32xf32, #tpu.memory_space<vmem>>, %arg5: memref<2x8xf32, #tpu.memory_space<vmem>>, %arg6: memref<32x32xf32, #tpu.memory_space<vmem>>, %arg7: memref<1x32xf32, #tpu.memory_space<vmem>>, %arg8: memref<32x32xf32, #tpu.memory_space<vmem>>, %arg9: memref<1x32xf32, #tpu.memory_space<vmem>>, %arg10: memref<32x8xf32, #tpu.memory_space<vmem>>, %arg11: memref<32x8xf32, #tpu.memory_space<vmem>>, %arg12: memref<1x8xf32, #tpu.memory_space<vmem>>, %arg13: memref<8x100xf32, #tpu.memory_space<vmem>>, %arg14: memref<1x100xf32, #tpu.memory_space<vmem>>, %arg15: memref<32x400xf32, #tpu.memory_space<vmem>>, %arg16: memref<32x400xf32, #tpu.memory_space<vmem>>, %arg17: memref<1x400xf32, #tpu.memory_space<vmem>>, %arg18: memref<100x256xf32, #tpu.memory_space<vmem>>, %arg19: memref<400x256xf32, #tpu.memory_space<vmem>>, %arg20: memref<1x256xf32, #tpu.memory_space<vmem>>, %arg21: memref<256x128xf32, #tpu.memory_space<vmem>>, %arg22: memref<1x128xf32, #tpu.memory_space<vmem>>, %arg23: memref<128x1xf32, #tpu.memory_space<vmem>>, %arg24: memref<1x1xf32, #tpu.memory_space<vmem>>, %arg25: memref<8x128xf32, #tpu.memory_space<vmem>>, %arg26: memref<1x128xf32, #tpu.memory_space<vmem>>, %arg27: memref<128x64xf32, #tpu.memory_space<vmem>>, %arg28: memref<32x64xf32, #tpu.memory_space<vmem>>, %arg29: memref<32x64xf32, #tpu.memory_space<vmem>>, %arg30: memref<1x64xf32, #tpu.memory_space<vmem>>, %arg31: memref<64x32xf32, #tpu.memory_space<vmem>>, %arg32: memref<1x32xf32, #tpu.memory_space<vmem>>, %arg33: memref<32x8xf32, #tpu.memory_space<vmem>>, %arg34: memref<1x8xf32, #tpu.memory_space<vmem>>, %arg35: memref<2x128xf32, #tpu.memory_space<vmem>>) attributes {dimension_semantics = [#tpu.dimension_semantics<arbitrary>], iteration_bounds = array<i64: 1>, scalar_prefetch = 0 : i64, scratch_operands = 0 : i64, tpu.core_type = #tpu.core_type<tc>, window_params = [{pipeline_mode = #tpu.pipeline_mode<synchronous>, transform_indices = @transform_0, window_bounds = array<i64: 2, 32>}, {pipeline_mode = #tpu.pipeline_mode<synchronous>, transform_indices = @transform_1, window_bounds = array<i64: 2, 32>}, {pipeline_mode = #tpu.pipeline_mode<synchronous>, transform_indices = @transform_2, window_bounds = array<i64: 2, 32>}, {pipeline_mode = #tpu.pipeline_mode<synchronous>, transform_indices = @transform_3, window_bounds = array<i64: 2, 32>}, {pipeline_mode = #tpu.pipeline_mode<synchronous>, transform_indices = @transform_4, window_bounds = array<i64: 2, 8>}, {pipeline_mode = #tpu.pipeline_mode<synchronous>, transform_indices = @transform_5, window_bounds = array<i64: 32, 32>}, {pipeline_mode = #tpu.pipeline_mode<synchronous>, transform_indices = @transform_6, window_bounds = array<i64: 1, 32>}, {pipeline_mode = #tpu.pipeline_mode<synchronous>, transform_indices = @transform_7, window_bounds = array<i64: 32, 32>}, {pipeline_mode = #tpu.pipeline_mode<synchronous>, transform_indices = @transform_8, window_bounds = array<i64: 1, 32>}, {pipeline_mode = #tpu.pipeline_mode<synchronous>, transform_indices = @transform_9, window_bounds = array<i64: 32, 8>}, {pipeline_mode = #tpu.pipeline_mode<synchronous>, transform_indices = @transform_10, window_bounds = array<i64: 32, 8>}, {pipeline_mode = #tpu.pipeline_mode<synchronous>, transform_indices = @transform_11, window_bounds = array<i64: 1, 8>}, {pipeline_mode = #tpu.pipeline_mode<synchronous>, transform_indices = @transform_12, window_bounds = array<i64: 8, 100>}, {pipeline_mode = #tpu.pipeline_mode<synchronous>, transform_indices = @transform_13, window_bounds = array<i64: 1, 100>}, {pipeline_mode = #tpu.pipeline_mode<synchronous>, transform_indices = @transform_14, window_bounds = array<i64: 32, 400>}, {pipeline_mode = #tpu.pipeline_mode<synchronous>, transform_indices = @transform_15, window_bounds = array<i64: 32, 400>}, {pipeline_mode = #tpu.pipeline_mode<synchronous>, transform_indices = @transform_16, window_bounds = array<i64: 1, 400>}, {pipeline_mode = #tpu.pipeline_mode<synchronous>, transform_indices = @transform_17, window_bounds = array<i64: 100, 256>}, {pipeline_mode = #tpu.pipeline_mode<synchronous>, transform_indices = @transform_18, window_bounds = array<i64: 400, 256>}, {pipeline_mode = #tpu.pipeline_mode<synchronous>, transform_indices = @transform_19, window_bounds = array<i64: 1, 256>}, {pipeline_mode = #tpu.pipeline_mode<synchronous>, transform_indices = @transform_20, window_bounds = array<i64: 256, 128>}, {pipeline_mode = #tpu.pipeline_mode<synchronous>, transform_indices = @transform_21, window_bounds = array<i64: 1, 128>}, {pipeline_mode = #tpu.pipeline_mode<synchronous>, transform_indices = @transform_22, window_bounds = array<i64: 128, 1>}, {pipeline_mode = #tpu.pipeline_mode<synchronous>, transform_indices = @transform_23, window_bounds = array<i64: 1, 1>}, {pipeline_mode = #tpu.pipeline_mode<synchronous>, transform_indices = @transform_24, window_bounds = array<i64: 8, 128>}, {pipeline_mode = #tpu.pipeline_mode<synchronous>, transform_indices = @transform_25, window_bounds = array<i64: 1, 128>}, {pipeline_mode = #tpu.pipeline_mode<synchronous>, transform_indices = @transform_26, window_bounds = array<i64: 128, 64>}, {pipeline_mode = #tpu.pipeline_mode<synchronous>, transform_indices = @transform_27, window_bounds = array<i64: 32, 64>}, {pipeline_mode = #tpu.pipeline_mode<synchronous>, transform_indices = @transform_28, window_bounds = array<i64: 32, 64>}, {pipeline_mode = #tpu.pipeline_mode<synchronous>, transform_indices = @transform_29, window_bounds = array<i64: 1, 64>}, {pipeline_mode = #tpu.pipeline_mode<synchronous>, transform_indices = @transform_30, window_bounds = array<i64: 64, 32>}, {pipeline_mode = #tpu.pipeline_mode<synchronous>, transform_indices = @transform_31, window_bounds = array<i64: 1, 32>}, {pipeline_mode = #tpu.pipeline_mode<synchronous>, transform_indices = @transform_32, window_bounds = array<i64: 32, 8>}, {pipeline_mode = #tpu.pipeline_mode<synchronous>, transform_indices = @transform_33, window_bounds = array<i64: 1, 8>}, {pipeline_mode = #tpu.pipeline_mode<synchronous>, transform_indices = @transform_34, window_bounds = array<i64: 2, 128>}]} {
    %c0 = arith.constant 0 : index
    %c0_0 = arith.constant 0 : index
    %0 = vector.load %arg1[%c0, %c0_0] : memref<2x32xf32, #tpu.memory_space<vmem>>, vector<2x32xf32>
    %c0_1 = arith.constant 0 : index
    %c0_2 = arith.constant 0 : index
    %1 = vector.load %arg3[%c0_1, %c0_2] : memref<2x32xf32, #tpu.memory_space<vmem>>, vector<2x32xf32>
    %c0_3 = arith.constant 0 : index
    %c0_4 = arith.constant 0 : index
    %2 = vector.load %arg2[%c0_3, %c0_4] : memref<2x32xf32, #tpu.memory_space<vmem>>, vector<2x32xf32>
    %c0_5 = arith.constant 0 : index
    %c0_6 = arith.constant 0 : index
    %3 = vector.load %arg6[%c0_5, %c0_6] : memref<32x32xf32, #tpu.memory_space<vmem>>, vector<32x32xf32>
    %cst = arith.constant dense<0.000000e+00> : vector<2x32xf32>
    %4 = tpu.matmul %2, %3, %cst {dimension_numbers = #tpu.dot_dimension_numbers<[1], [0], [0], [1], [0, 0, 1, 1], [], []>} : vector<2x32xf32>, vector<32x32xf32>, vector<2x32xf32> -> vector<2x32xf32>
    %c0_7 = arith.constant 0 : index
    %c0_8 = arith.constant 0 : index
    %5 = vector.load %arg7[%c0_7, %c0_8] : memref<1x32xf32, #tpu.memory_space<vmem>>, vector<1x32xf32>
    %6 = vector.broadcast %5 : vector<1x32xf32> to vector<2x32xf32>
    %7 = arith.addf %4, %6 : vector<2x32xf32>
    %8 = math.tanh %7 : vector<2x32xf32>
    %c0_9 = arith.constant 0 : index
    %c0_10 = arith.constant 0 : index
    %9 = vector.load %arg4[%c0_9, %c0_10] : memref<2x32xf32, #tpu.memory_space<vmem>>, vector<2x32xf32>
    %c0_11 = arith.constant 0 : index
    %c0_12 = arith.constant 0 : index
    %10 = vector.load %arg8[%c0_11, %c0_12] : memref<32x32xf32, #tpu.memory_space<vmem>>, vector<32x32xf32>
    %cst_13 = arith.constant dense<0.000000e+00> : vector<2x32xf32>
    %11 = tpu.matmul %9, %10, %cst_13 {dimension_numbers = #tpu.dot_dimension_numbers<[1], [0], [0], [1], [0, 0, 1, 1], [], []>} : vector<2x32xf32>, vector<32x32xf32>, vector<2x32xf32> -> vector<2x32xf32>
    %c0_14 = arith.constant 0 : index
    %c0_15 = arith.constant 0 : index
    %12 = vector.load %arg9[%c0_14, %c0_15] : memref<1x32xf32, #tpu.memory_space<vmem>>, vector<1x32xf32>
    %13 = vector.broadcast %12 : vector<1x32xf32> to vector<2x32xf32>
    %14 = arith.addf %11, %13 : vector<2x32xf32>
    %15 = math.tanh %14 : vector<2x32xf32>
    %c0_16 = arith.constant 0 : index
    %c0_17 = arith.constant 0 : index
    %16 = vector.load %arg10[%c0_16, %c0_17] : memref<32x8xf32, #tpu.memory_space<vmem>>, vector<32x8xf32>
    %cst_18 = arith.constant dense<0.000000e+00> : vector<2x8xf32>
    %17 = tpu.matmul %0, %16, %cst_18 {dimension_numbers = #tpu.dot_dimension_numbers<[1], [0], [0], [1], [0, 0, 1, 1], [], []>} : vector<2x32xf32>, vector<32x8xf32>, vector<2x8xf32> -> vector<2x8xf32>
    %c0_19 = arith.constant 0 : index
    %c0_20 = arith.constant 0 : index
    %18 = vector.load %arg11[%c0_19, %c0_20] : memref<32x8xf32, #tpu.memory_space<vmem>>, vector<32x8xf32>
    %cst_21 = arith.constant dense<0.000000e+00> : vector<2x8xf32>
    %19 = tpu.matmul %8, %18, %cst_21 {dimension_numbers = #tpu.dot_dimension_numbers<[1], [0], [0], [1], [0, 0, 1, 1], [], []>} : vector<2x32xf32>, vector<32x8xf32>, vector<2x8xf32> -> vector<2x8xf32>
    %20 = arith.addf %17, %19 : vector<2x8xf32>
    %c0_22 = arith.constant 0 : index
    %c0_23 = arith.constant 0 : index
    %21 = vector.load %arg12[%c0_22, %c0_23] : memref<1x8xf32, #tpu.memory_space<vmem>>, vector<1x8xf32>
    %22 = vector.broadcast %21 : vector<1x8xf32> to vector<2x8xf32>
    %23 = arith.addf %20, %22 : vector<2x8xf32>
    %24 = math.roundeven %23 : vector<2x8xf32>
    %c0_24 = arith.constant 0 : index
    %c0_25 = arith.constant 0 : index
    %25 = vector.load %arg5[%c0_24, %c0_25] : memref<2x8xf32, #tpu.memory_space<vmem>>, vector<2x8xf32>
    %26 = arith.cmpf oeq, %24, %25 : vector<2x8xf32>
    %cst_26 = arith.constant 1.000000e+00 : f32
    %cst_27 = arith.constant 0.000000e+00 : f32
    %27 = vector.broadcast %cst_26 : f32 to vector<2x8xf32>
    %28 = vector.broadcast %cst_27 : f32 to vector<2x8xf32>
    %29 = arith.select %26, %27, %28 : vector<2x8xi1>, vector<2x8xf32>
    %cst_28 = arith.constant dense<0x7F800000> : vector<2xf32>
    %30 = vector.multi_reduction <minimumf>, %29, %cst_28 [1] : vector<2x8xf32> to vector<2xf32>
    %31 = vector.shape_cast %30 : vector<2xf32> to vector<2x1xf32>
    %c0_29 = arith.constant 0 : index
    %c0_30 = arith.constant 0 : index
    %32 = vector.load %arg13[%c0_29, %c0_30] : memref<8x100xf32, #tpu.memory_space<vmem>>, vector<8x100xf32>
    %cst_31 = arith.constant dense<0.000000e+00> : vector<2x100xf32>
    %33 = tpu.matmul %24, %32, %cst_31 {dimension_numbers = #tpu.dot_dimension_numbers<[1], [0], [0], [1], [0, 0, 1, 1], [], []>} : vector<2x8xf32>, vector<8x100xf32>, vector<2x100xf32> -> vector<2x100xf32>
    %c0_32 = arith.constant 0 : index
    %c0_33 = arith.constant 0 : index
    %34 = vector.load %arg14[%c0_32, %c0_33] : memref<1x100xf32, #tpu.memory_space<vmem>>, vector<1x100xf32>
    %35 = vector.broadcast %34 : vector<1x100xf32> to vector<2x100xf32>
    %36 = arith.addf %33, %35 : vector<2x100xf32>
    %c0_34 = arith.constant 0 : index
    %c0_35 = arith.constant 0 : index
    %37 = vector.load %arg15[%c0_34, %c0_35] : memref<32x400xf32, #tpu.memory_space<vmem>>, vector<32x400xf32>
    %cst_36 = arith.constant dense<0.000000e+00> : vector<2x400xf32>
    %38 = tpu.matmul %0, %37, %cst_36 {dimension_numbers = #tpu.dot_dimension_numbers<[1], [0], [0], [1], [0, 0, 1, 1], [], []>} : vector<2x32xf32>, vector<32x400xf32>, vector<2x400xf32> -> vector<2x400xf32>
    %c0_37 = arith.constant 0 : index
    %c0_38 = arith.constant 0 : index
    %39 = vector.load %arg16[%c0_37, %c0_38] : memref<32x400xf32, #tpu.memory_space<vmem>>, vector<32x400xf32>
    %cst_39 = arith.constant dense<0.000000e+00> : vector<2x400xf32>
    %40 = tpu.matmul %8, %39, %cst_39 {dimension_numbers = #tpu.dot_dimension_numbers<[1], [0], [0], [1], [0, 0, 1, 1], [], []>} : vector<2x32xf32>, vector<32x400xf32>, vector<2x400xf32> -> vector<2x400xf32>
    %41 = arith.addf %38, %40 : vector<2x400xf32>
    %c0_40 = arith.constant 0 : index
    %c0_41 = arith.constant 0 : index
    %42 = vector.load %arg17[%c0_40, %c0_41] : memref<1x400xf32, #tpu.memory_space<vmem>>, vector<1x400xf32>
    %43 = vector.broadcast %42 : vector<1x400xf32> to vector<2x400xf32>
    %44 = arith.addf %41, %43 : vector<2x400xf32>
    %c0_42 = arith.constant 0 : index
    %c0_43 = arith.constant 0 : index
    %45 = vector.load %arg18[%c0_42, %c0_43] : memref<100x256xf32, #tpu.memory_space<vmem>>, vector<100x256xf32>
    %cst_44 = arith.constant dense<0.000000e+00> : vector<2x256xf32>
    %46 = tpu.matmul %36, %45, %cst_44 {dimension_numbers = #tpu.dot_dimension_numbers<[1], [0], [0], [1], [0, 0, 1, 1], [], []>} : vector<2x100xf32>, vector<100x256xf32>, vector<2x256xf32> -> vector<2x256xf32>
    %c0_45 = arith.constant 0 : index
    %c0_46 = arith.constant 0 : index
    %47 = vector.load %arg19[%c0_45, %c0_46] : memref<400x256xf32, #tpu.memory_space<vmem>>, vector<400x256xf32>
    %cst_47 = arith.constant dense<0.000000e+00> : vector<2x256xf32>
    %48 = tpu.matmul %44, %47, %cst_47 {dimension_numbers = #tpu.dot_dimension_numbers<[1], [0], [0], [1], [0, 0, 1, 1], [], []>} : vector<2x400xf32>, vector<400x256xf32>, vector<2x256xf32> -> vector<2x256xf32>
    %49 = arith.addf %46, %48 : vector<2x256xf32>
    %c0_48 = arith.constant 0 : index
    %c0_49 = arith.constant 0 : index
    %50 = vector.load %arg20[%c0_48, %c0_49] : memref<1x256xf32, #tpu.memory_space<vmem>>, vector<1x256xf32>
    %51 = vector.broadcast %50 : vector<1x256xf32> to vector<2x256xf32>
    %52 = arith.addf %49, %51 : vector<2x256xf32>
    %cst_50 = arith.constant 0.000000e+00 : f32
    %53 = vector.broadcast %cst_50 : f32 to vector<2x256xf32>
    %54 = arith.cmpf oge, %52, %53 : vector<2x256xf32>
    %cst_51 = arith.constant 2.000000e-01 : f32
    %55 = vector.broadcast %cst_51 : f32 to vector<2x256xf32>
    %56 = arith.mulf %55, %52 : vector<2x256xf32>
    %57 = arith.select %54, %52, %56 : vector<2x256xi1>, vector<2x256xf32>
    %c0_52 = arith.constant 0 : index
    %c0_53 = arith.constant 0 : index
    %58 = vector.load %arg21[%c0_52, %c0_53] : memref<256x128xf32, #tpu.memory_space<vmem>>, vector<256x128xf32>
    %cst_54 = arith.constant dense<0.000000e+00> : vector<2x128xf32>
    %59 = tpu.matmul %57, %58, %cst_54 {dimension_numbers = #tpu.dot_dimension_numbers<[1], [0], [0], [1], [0, 0, 1, 1], [], []>} : vector<2x256xf32>, vector<256x128xf32>, vector<2x128xf32> -> vector<2x128xf32>
    %c0_55 = arith.constant 0 : index
    %c0_56 = arith.constant 0 : index
    %60 = vector.load %arg22[%c0_55, %c0_56] : memref<1x128xf32, #tpu.memory_space<vmem>>, vector<1x128xf32>
    %61 = vector.broadcast %60 : vector<1x128xf32> to vector<2x128xf32>
    %62 = arith.addf %59, %61 : vector<2x128xf32>
    %cst_57 = arith.constant 0.000000e+00 : f32
    %63 = vector.broadcast %cst_57 : f32 to vector<2x128xf32>
    %64 = arith.cmpf oge, %62, %63 : vector<2x128xf32>
    %cst_58 = arith.constant 2.000000e-01 : f32
    %65 = vector.broadcast %cst_58 : f32 to vector<2x128xf32>
    %66 = arith.mulf %65, %62 : vector<2x128xf32>
    %67 = arith.select %64, %62, %66 : vector<2x128xi1>, vector<2x128xf32>
    %c0_59 = arith.constant 0 : index
    %c0_60 = arith.constant 0 : index
    %68 = vector.load %arg23[%c0_59, %c0_60] : memref<128x1xf32, #tpu.memory_space<vmem>>, vector<128x1xf32>
    %cst_61 = arith.constant dense<0.000000e+00> : vector<2x1xf32>
    %69 = tpu.matmul %67, %68, %cst_61 {dimension_numbers = #tpu.dot_dimension_numbers<[1], [0], [0], [1], [0, 0, 1, 1], [], []>} : vector<2x128xf32>, vector<128x1xf32>, vector<2x1xf32> -> vector<2x1xf32>
    %c0_62 = arith.constant 0 : index
    %c0_63 = arith.constant 0 : index
    %70 = vector.load %arg24[%c0_62, %c0_63] : memref<1x1xf32, #tpu.memory_space<vmem>>, vector<1x1xf32>
    %71 = vector.broadcast %70 : vector<1x1xf32> to vector<2x1xf32>
    %72 = arith.addf %69, %71 : vector<2x1xf32>
    %cst_64 = arith.constant 0.000000e+00 : f32
    %73 = vector.broadcast %cst_64 : f32 to vector<2x1xf32>
    %74 = arith.subf %73, %72 : vector<2x1xf32>
    %75 = math.exp %74 : vector<2x1xf32>
    %cst_65 = arith.constant 1.000000e+00 : f32
    %76 = vector.broadcast %cst_65 : f32 to vector<2x1xf32>
    %77 = arith.addf %76, %75 : vector<2x1xf32>
    %78 = tpu.reciprocal %77 {approx = true} : vector<2x1xf32> -> vector<2x1xf32>
    %c0_66 = arith.constant 0 : index
    %c0_67 = arith.constant 0 : index
    %79 = vector.load %arg25[%c0_66, %c0_67] : memref<8x128xf32, #tpu.memory_space<vmem>>, vector<8x128xf32>
    %cst_68 = arith.constant dense<0.000000e+00> : vector<2x128xf32>
    %80 = tpu.matmul %24, %79, %cst_68 {dimension_numbers = #tpu.dot_dimension_numbers<[1], [0], [0], [1], [0, 0, 1, 1], [], []>} : vector<2x8xf32>, vector<8x128xf32>, vector<2x128xf32> -> vector<2x128xf32>
    %c0_69 = arith.constant 0 : index
    %c0_70 = arith.constant 0 : index
    %81 = vector.load %arg26[%c0_69, %c0_70] : memref<1x128xf32, #tpu.memory_space<vmem>>, vector<1x128xf32>
    %82 = vector.broadcast %81 : vector<1x128xf32> to vector<2x128xf32>
    %83 = arith.addf %80, %82 : vector<2x128xf32>
    %c0_71 = arith.constant 0 : index
    %c0_72 = arith.constant 0 : index
    %84 = vector.load %arg27[%c0_71, %c0_72] : memref<128x64xf32, #tpu.memory_space<vmem>>, vector<128x64xf32>
    %cst_73 = arith.constant dense<0.000000e+00> : vector<2x64xf32>
    %85 = tpu.matmul %83, %84, %cst_73 {dimension_numbers = #tpu.dot_dimension_numbers<[1], [0], [0], [1], [0, 0, 1, 1], [], []>} : vector<2x128xf32>, vector<128x64xf32>, vector<2x64xf32> -> vector<2x64xf32>
    %c0_74 = arith.constant 0 : index
    %c0_75 = arith.constant 0 : index
    %86 = vector.load %arg28[%c0_74, %c0_75] : memref<32x64xf32, #tpu.memory_space<vmem>>, vector<32x64xf32>
    %cst_76 = arith.constant dense<0.000000e+00> : vector<2x64xf32>
    %87 = tpu.matmul %1, %86, %cst_76 {dimension_numbers = #tpu.dot_dimension_numbers<[1], [0], [0], [1], [0, 0, 1, 1], [], []>} : vector<2x32xf32>, vector<32x64xf32>, vector<2x64xf32> -> vector<2x64xf32>
    %88 = arith.addf %85, %87 : vector<2x64xf32>
    %c0_77 = arith.constant 0 : index
    %c0_78 = arith.constant 0 : index
    %89 = vector.load %arg29[%c0_77, %c0_78] : memref<32x64xf32, #tpu.memory_space<vmem>>, vector<32x64xf32>
    %cst_79 = arith.constant dense<0.000000e+00> : vector<2x64xf32>
    %90 = tpu.matmul %15, %89, %cst_79 {dimension_numbers = #tpu.dot_dimension_numbers<[1], [0], [0], [1], [0, 0, 1, 1], [], []>} : vector<2x32xf32>, vector<32x64xf32>, vector<2x64xf32> -> vector<2x64xf32>
    %91 = arith.addf %88, %90 : vector<2x64xf32>
    %c0_80 = arith.constant 0 : index
    %c0_81 = arith.constant 0 : index
    %92 = vector.load %arg30[%c0_80, %c0_81] : memref<1x64xf32, #tpu.memory_space<vmem>>, vector<1x64xf32>
    %93 = vector.broadcast %92 : vector<1x64xf32> to vector<2x64xf32>
    %94 = arith.addf %91, %93 : vector<2x64xf32>
    %c0_82 = arith.constant 0 : index
    %c0_83 = arith.constant 0 : index
    %95 = vector.load %arg31[%c0_82, %c0_83] : memref<64x32xf32, #tpu.memory_space<vmem>>, vector<64x32xf32>
    %cst_84 = arith.constant dense<0.000000e+00> : vector<2x32xf32>
    %96 = tpu.matmul %94, %95, %cst_84 {dimension_numbers = #tpu.dot_dimension_numbers<[1], [0], [0], [1], [0, 0, 1, 1], [], []>} : vector<2x64xf32>, vector<64x32xf32>, vector<2x32xf32> -> vector<2x32xf32>
    %c0_85 = arith.constant 0 : index
    %c0_86 = arith.constant 0 : index
    %97 = vector.load %arg32[%c0_85, %c0_86] : memref<1x32xf32, #tpu.memory_space<vmem>>, vector<1x32xf32>
    %98 = vector.broadcast %97 : vector<1x32xf32> to vector<2x32xf32>
    %99 = arith.addf %96, %98 : vector<2x32xf32>
    %c0_87 = arith.constant 0 : index
    %c0_88 = arith.constant 0 : index
    %100 = vector.load %arg33[%c0_87, %c0_88] : memref<32x8xf32, #tpu.memory_space<vmem>>, vector<32x8xf32>
    %cst_89 = arith.constant dense<0.000000e+00> : vector<2x8xf32>
    %101 = tpu.matmul %99, %100, %cst_89 {dimension_numbers = #tpu.dot_dimension_numbers<[1], [0], [0], [1], [0, 0, 1, 1], [], []>} : vector<2x32xf32>, vector<32x8xf32>, vector<2x8xf32> -> vector<2x8xf32>
    %c0_90 = arith.constant 0 : index
    %c0_91 = arith.constant 0 : index
    %102 = vector.load %arg34[%c0_90, %c0_91] : memref<1x8xf32, #tpu.memory_space<vmem>>, vector<1x8xf32>
    %103 = vector.broadcast %102 : vector<1x8xf32> to vector<2x8xf32>
    %104 = arith.addf %101, %103 : vector<2x8xf32>
    %105 = math.roundeven %104 : vector<2x8xf32>
    %cst_92 = arith.constant 0.000000e+00 : f32
    %106 = vector.broadcast %cst_92 : f32 to vector<2x128xf32>
    %c0_93 = arith.constant 0 : index
    %c0_94 = arith.constant 0 : index
    %107 = vector.load %arg35[%c0_93, %c0_94] : memref<2x128xf32, #tpu.memory_space<vmem>>, vector<2x128xf32>
    tpu.vector_store %arg35[%c0_93, %c0_94], %106 {strides = array<i32>} : memref<2x128xf32, #tpu.memory_space<vmem>>, vector<2x128xf32>,
    %c0_95 = arith.constant 0 : index
    %c0_96 = arith.constant 0 : index
    %108 = vector.load %arg35[%c0_95, %c0_96] : memref<2x128xf32, #tpu.memory_space<vmem>>, vector<2x8xf32>
    tpu.vector_store %arg35[%c0_95, %c0_96], %24 {strides = array<i32>} : memref<2x128xf32, #tpu.memory_space<vmem>>, vector<2x8xf32>,
    %c0_97 = arith.constant 0 : index
    %c8 = arith.constant 8 : index
    %109 = vector.load %arg35[%c0_97, %c8] : memref<2x128xf32, #tpu.memory_space<vmem>>, vector<2x8xf32>
    tpu.vector_store %arg35[%c0_97, %c8], %105 {strides = array<i32>} : memref<2x128xf32, #tpu.memory_space<vmem>>, vector<2x8xf32>,
    %c0_98 = arith.constant 0 : index
    %c16 = arith.constant 16 : index
    %110 = vector.load %arg35[%c0_98, %c16] : memref<2x128xf32, #tpu.memory_space<vmem>>, vector<2x1xf32>
    tpu.vector_store %arg35[%c0_98, %c16], %78 {strides = array<i32>} : memref<2x128xf32, #tpu.memory_space<vmem>>, vector<2x1xf32>,
    %c0_99 = arith.constant 0 : index
    %c17 = arith.constant 17 : index
    %111 = vector.load %arg35[%c0_99, %c17] : memref<2x128xf32, #tpu.memory_space<vmem>>, vector<2x1xf32>
    tpu.vector_store %arg35[%c0_99, %c17], %31 {strides = array<i32>} : memref<2x128xf32, #tpu.memory_space<vmem>>, vector<2x1xf32>,
    return
  }
  func.func @transform_0(%arg0: i32) -> (i32, i32) {
    %c0_i32 = arith.constant 0 : i32
    %c0_i32_0 = arith.constant 0 : i32
    %c0_i32_1 = arith.constant 0 : i32
    return %c0_i32, %c0_i32_0 : i32, i32
  }
  func.func @transform_1(%arg0: i32) -> (i32, i32) {
    %c0_i32 = arith.constant 0 : i32
    %c0_i32_0 = arith.constant 0 : i32
    %c0_i32_1 = arith.constant 0 : i32
    return %c0_i32, %c0_i32_0 : i32, i32
  }
  func.func @transform_2(%arg0: i32) -> (i32, i32) {
    %c0_i32 = arith.constant 0 : i32
    %c0_i32_0 = arith.constant 0 : i32
    %c0_i32_1 = arith.constant 0 : i32
    return %c0_i32, %c0_i32_0 : i32, i32
  }
  func.func @transform_3(%arg0: i32) -> (i32, i32) {
    %c0_i32 = arith.constant 0 : i32
    %c0_i32_0 = arith.constant 0 : i32
    %c0_i32_1 = arith.constant 0 : i32
    return %c0_i32, %c0_i32_0 : i32, i32
  }
  func.func @transform_4(%arg0: i32) -> (i32, i32) {
    %c0_i32 = arith.constant 0 : i32
    %c0_i32_0 = arith.constant 0 : i32
    %c0_i32_1 = arith.constant 0 : i32
    return %c0_i32, %c0_i32_0 : i32, i32
  }
  func.func @transform_5(%arg0: i32) -> (i32, i32) {
    %c0_i32 = arith.constant 0 : i32
    %c0_i32_0 = arith.constant 0 : i32
    %c0_i32_1 = arith.constant 0 : i32
    return %c0_i32, %c0_i32_0 : i32, i32
  }
  func.func @transform_6(%arg0: i32) -> (i32, i32) {
    %c0_i32 = arith.constant 0 : i32
    %c0_i32_0 = arith.constant 0 : i32
    %c0_i32_1 = arith.constant 0 : i32
    return %c0_i32, %c0_i32_0 : i32, i32
  }
  func.func @transform_7(%arg0: i32) -> (i32, i32) {
    %c0_i32 = arith.constant 0 : i32
    %c0_i32_0 = arith.constant 0 : i32
    %c0_i32_1 = arith.constant 0 : i32
    return %c0_i32, %c0_i32_0 : i32, i32
  }
  func.func @transform_8(%arg0: i32) -> (i32, i32) {
    %c0_i32 = arith.constant 0 : i32
    %c0_i32_0 = arith.constant 0 : i32
    %c0_i32_1 = arith.constant 0 : i32
    return %c0_i32, %c0_i32_0 : i32, i32
  }
  func.func @transform_9(%arg0: i32) -> (i32, i32) {
    %c0_i32 = arith.constant 0 : i32
    %c0_i32_0 = arith.constant 0 : i32
    %c0_i32_1 = arith.constant 0 : i32
    return %c0_i32, %c0_i32_0 : i32, i32
  }
  func.func @transform_10(%arg0: i32) -> (i32, i32) {
    %c0_i32 = arith.constant 0 : i32
    %c0_i32_0 = arith.constant 0 : i32
    %c0_i32_1 = arith.constant 0 : i32
    return %c0_i32, %c0_i32_0 : i32, i32
  }
  func.func @transform_11(%arg0: i32) -> (i32, i32) {
    %c0_i32 = arith.constant 0 : i32
    %c0_i32_0 = arith.constant 0 : i32
    %c0_i32_1 = arith.constant 0 : i32
    return %c0_i32, %c0_i32_0 : i32, i32
  }
  func.func @transform_12(%arg0: i32) -> (i32, i32) {
    %c0_i32 = arith.constant 0 : i32
    %c0_i32_0 = arith.constant 0 : i32
    %c0_i32_1 = arith.constant 0 : i32
    return %c0_i32, %c0_i32_0 : i32, i32
  }
  func.func @transform_13(%arg0: i32) -> (i32, i32) {
    %c0_i32 = arith.constant 0 : i32
    %c0_i32_0 = arith.constant 0 : i32
    %c0_i32_1 = arith.constant 0 : i32
    return %c0_i32, %c0_i32_0 : i32, i32
  }
  func.func @transform_14(%arg0: i32) -> (i32, i32) {
    %c0_i32 = arith.constant 0 : i32
    %c0_i32_0 = arith.constant 0 : i32
    %c0_i32_1 = arith.constant 0 : i32
    return %c0_i32, %c0_i32_0 : i32, i32
  }
  func.func @transform_15(%arg0: i32) -> (i32, i32) {
    %c0_i32 = arith.constant 0 : i32
    %c0_i32_0 = arith.constant 0 : i32
    %c0_i32_1 = arith.constant 0 : i32
    return %c0_i32, %c0_i32_0 : i32, i32
  }
  func.func @transform_16(%arg0: i32) -> (i32, i32) {
    %c0_i32 = arith.constant 0 : i32
    %c0_i32_0 = arith.constant 0 : i32
    %c0_i32_1 = arith.constant 0 : i32
    return %c0_i32, %c0_i32_0 : i32, i32
  }
  func.func @transform_17(%arg0: i32) -> (i32, i32) {
    %c0_i32 = arith.constant 0 : i32
    %c0_i32_0 = arith.constant 0 : i32
    %c0_i32_1 = arith.constant 0 : i32
    return %c0_i32, %c0_i32_0 : i32, i32
  }
  func.func @transform_18(%arg0: i32) -> (i32, i32) {
    %c0_i32 = arith.constant 0 : i32
    %c0_i32_0 = arith.constant 0 : i32
    %c0_i32_1 = arith.constant 0 : i32
    return %c0_i32, %c0_i32_0 : i32, i32
  }
  func.func @transform_19(%arg0: i32) -> (i32, i32) {
    %c0_i32 = arith.constant 0 : i32
    %c0_i32_0 = arith.constant 0 : i32
    %c0_i32_1 = arith.constant 0 : i32
    return %c0_i32, %c0_i32_0 : i32, i32
  }
  func.func @transform_20(%arg0: i32) -> (i32, i32) {
    %c0_i32 = arith.constant 0 : i32
    %c0_i32_0 = arith.constant 0 : i32
    %c0_i32_1 = arith.constant 0 : i32
    return %c0_i32, %c0_i32_0 : i32, i32
  }
  func.func @transform_21(%arg0: i32) -> (i32, i32) {
    %c0_i32 = arith.constant 0 : i32
    %c0_i32_0 = arith.constant 0 : i32
    %c0_i32_1 = arith.constant 0 : i32
    return %c0_i32, %c0_i32_0 : i32, i32
  }
  func.func @transform_22(%arg0: i32) -> (i32, i32) {
    %c0_i32 = arith.constant 0 : i32
    %c0_i32_0 = arith.constant 0 : i32
    %c0_i32_1 = arith.constant 0 : i32
    return %c0_i32, %c0_i32_0 : i32, i32
  }
  func.func @transform_23(%arg0: i32) -> (i32, i32) {
    %c0_i32 = arith.constant 0 : i32
    %c0_i32_0 = arith.constant 0 : i32
    %c0_i32_1 = arith.constant 0 : i32
    return %c0_i32, %c0_i32_0 : i32, i32
  }
  func.func @transform_24(%arg0: i32) -> (i32, i32) {
    %c0_i32 = arith.constant 0 : i32
    %c0_i32_0 = arith.constant 0 : i32
    %c0_i32_1 = arith.constant 0 : i32
    return %c0_i32, %c0_i32_0 : i32, i32
  }
  func.func @transform_25(%arg0: i32) -> (i32, i32) {
    %c0_i32 = arith.constant 0 : i32
    %c0_i32_0 = arith.constant 0 : i32
    %c0_i32_1 = arith.constant 0 : i32
    return %c0_i32, %c0_i32_0 : i32, i32
  }
  func.func @transform_26(%arg0: i32) -> (i32, i32) {
    %c0_i32 = arith.constant 0 : i32
    %c0_i32_0 = arith.constant 0 : i32
    %c0_i32_1 = arith.constant 0 : i32
    return %c0_i32, %c0_i32_0 : i32, i32
  }
  func.func @transform_27(%arg0: i32) -> (i32, i32) {
    %c0_i32 = arith.constant 0 : i32
    %c0_i32_0 = arith.constant 0 : i32
    %c0_i32_1 = arith.constant 0 : i32
    return %c0_i32, %c0_i32_0 : i32, i32
  }
  func.func @transform_28(%arg0: i32) -> (i32, i32) {
    %c0_i32 = arith.constant 0 : i32
    %c0_i32_0 = arith.constant 0 : i32
    %c0_i32_1 = arith.constant 0 : i32
    return %c0_i32, %c0_i32_0 : i32, i32
  }
  func.func @transform_29(%arg0: i32) -> (i32, i32) {
    %c0_i32 = arith.constant 0 : i32
    %c0_i32_0 = arith.constant 0 : i32
    %c0_i32_1 = arith.constant 0 : i32
    return %c0_i32, %c0_i32_0 : i32, i32
  }
  func.func @transform_30(%arg0: i32) -> (i32, i32) {
    %c0_i32 = arith.constant 0 : i32
    %c0_i32_0 = arith.constant 0 : i32
    %c0_i32_1 = arith.constant 0 : i32
    return %c0_i32, %c0_i32_0 : i32, i32
  }
  func.func @transform_31(%arg0: i32) -> (i32, i32) {
    %c0_i32 = arith.constant 0 : i32
    %c0_i32_0 = arith.constant 0 : i32
    %c0_i32_1 = arith.constant 0 : i32
    return %c0_i32, %c0_i32_0 : i32, i32
  }
  func.func @transform_32(%arg0: i32) -> (i32, i32) {
    %c0_i32 = arith.constant 0 : i32
    %c0_i32_0 = arith.constant 0 : i32
    %c0_i32_1 = arith.constant 0 : i32
    return %c0_i32, %c0_i32_0 : i32, i32
  }
  func.func @transform_33(%arg0: i32) -> (i32, i32) {
    %c0_i32 = arith.constant 0 : i32
    %c0_i32_0 = arith.constant 0 : i32
    %c0_i32_1 = arith.constant 0 : i32
    return %c0_i32, %c0_i32_0 : i32, i32
  }
  func.func @transform_34(%arg0: i32) -> (i32, i32) {
    %c0_i32 = arith.constant 0 : i32
    %c0_i32_0 = arith.constant 0 : i32
    %c0_i32_1 = arith.constant 0 : i32
    return %c0_i32, %c0_i32_0 : i32, i32
  }
}

</mosaic_0001>

<llo_original>
// kernel: mwp_forward.2
$region0: #{mwp_forward.2}
  #allocation0 [shape = 'u32[]', space=smem, size = 0x4, offset = 0x4, fixed_abs, tag = 'smem constant byte address 0x4 - core index']
  #allocation1 [shape = 'u32[144,128]{1,0:T(1,128)}', space=vmem, size = 0x12000, scoped, tag = 'internal scratch']
  #allocation2 [shape = 'f32[2,8,32]{2,1,0:T(8,128)}', space=vmem, size = 0x2000, scoped, tag = 'scratch operand']
  %s0 = inlined_call_operand.vmem [shape: f32[2,16,32], index: 0, kind: input, shape index: {}]
  %s1 = inlined_call_operand.vmem [shape: f32[2,8,8], index: 1, kind: input, shape index: {}]
  %s2 = inlined_call_operand.hbm [shape: f32[2,2,32], index: 2, kind: input, shape index: {}]
  %s3 = inlined_call_operand.vmem [shape: bf16[2,2,32,96], index: 3, kind: input, shape index: {}]
  %s4 = inlined_call_operand.vmem [shape: bf16[2,2,32,32], index: 4, kind: input, shape index: {}]
  %s5 = inlined_call_operand.vmem [shape: bf16[2,2,32,64], index: 5, kind: input, shape index: {}]
  %s6 = inlined_call_operand.vmem [shape: bf16[2,2,64,32], index: 6, kind: input, shape index: {}]
  %s7 = inlined_call_operand.hbm [shape: f32[2,2,8,96], index: 7, kind: input, shape index: {}]
  %s8 = inlined_call_operand.vmem [shape: f32[2,16,32], index: 8, kind: output, shape index: {}]
  %s9 = sld [smem:[#allocation0]]
  $region77: #{mwp_forward.2} parent=0
    _
  %s11 = ssub.s32 1, %s9
  %s12 = scalar_select 0, %s11, %s9
  $region1: #{mwp_forward.2} parent=0
    #allocation3 [shape = 'u8[2048]{0}', space=vmem, size = 0x800, scoped, tag = 'input window, operand 2']
    #allocation4 [shape = 's32[2]{0}', space=sflag, size = 0x8, scoped, tag = 'scoped memory for mwp_forward.2']
    #allocation5 [shape = 'u8[8192]{0}', space=vmem, size = 0x2000, scoped, tag = 'input window, operand 7']
    #allocation6 [shape = 's32[2]{0}', space=sflag, size = 0x8, scoped, tag = 'scoped memory for mwp_forward.2']
    %13 = vsyncpa [#allocation4], 0
    %s14 = scalar_lea.sflag [#allocation4], 1
    %15 = vsyncpa %s14, 0
    %16 = vsyncpa [#allocation6], 0
    %s17 = scalar_lea.sflag [#allocation6], 1
    %18 = vsyncpa %s17, 0
    loop: start=0, step=1, limit=6
    $region2: #{mwp_forward.2} parent=1 // loop_pre_header
      _
    $region3: #{mwp_forward.2} parent=1 // loop_header
      %s20 = sphi 0, %s24
      %p21 = scmp.ge.s32.totalorder %s20, 6
      %s27 = sphi 0, %s39
      %s28 = sphi 0, %s35
      %s29 = sphi 0, %s27
      %s30 = sphi 0, %s28
      %s31 = sphi 0, %s29
      %s32 = sphi 0, %s30
      %s42 = sphi 0, %s44
      %s45 = sphi 0, %s42
      %s46 = sphi 0, %s45
      %s62 = sphi 0, %s46
      %s66 = sphi 0, %s66
      %s68 = sphi 0, %s66
      %s69 = sphi 0, %s68
      %s83 = sphi 0, %s69
      %s89 = sphi 0, %s91
      %s92 = sphi 0, %s89
      %s93 = sphi 0, %s92
      %s109 = sphi 0, %s93
      %s117 = sphi 0, %s119
      %s120 = sphi 0, %s117
      %s121 = sphi 0, %s120
      %s137 = sphi 0, %s121
      %s145 = sphi 0, %s147
      %s148 = sphi 0, %s145
      %s149 = sphi 0, %s148
      %s165 = sphi 0, %s149
      %s173 = sphi 0, %s175
      %s176 = sphi 0, %s173
      %s177 = sphi 0, %s176
      %s193 = sphi 0, %s177
      %s201 = sphi 0, %s203
      %s204 = sphi 0, %s201
      %s205 = sphi 0, %s204
      %s221 = sphi 0, %s205
      %s229 = sphi 0, %s231
      %s232 = sphi 0, %s229
      %s233 = sphi 0, %s232
      %s249 = sphi 0, %s233
      %s255 = sphi 0, %s257
      %s258 = sphi 0, %s255
      %s259 = sphi 0, %s258
      %s275 = sphi 0, %s259
    $region4: #{mwp_forward.2} parent=1 // loop_header_branch
      %23 = sbr.rel (%p21) target = $region8
    $region5: #{mwp_forward.2} parent=1 // loop_body
      %s25 = ssub.s32 %s20, 1
      %s26 = ssub.s32 %s20, 2
      %s33 = sadd.s32 1, %s28
      %p34 = scmp.ge.s32.totalorder %s33, 2
      %s35 = scalar_select %p34, 0, %s33
      %s36 = sadd.s32 1, %s27
      %s37 = scalar_select %p34, %s36, %s27
      %p38 = scmp.ge.s32.totalorder %s37, 2
      %s39 = scalar_select %p38, 0, %s37
      %s40 = ssub.s32 %s27, %s39
      %p41 = scmp.eq.s32.totalorder %s40, 0
      %s43 = sadd.s32 %s42, 1
      %s44 = scalar_select %p41, %s42, %s43
      %p47 = pneg %p41
      %p48 = scmp.eq.s32.totalorder %s20, 3
      %p49 = por %p47, %p48
      %p50 = scmp.ne.s32.totalorder %s42, %s45
      %p51 = scmp.eq.s32.totalorder %s20, 0
      %p52 = por %p50, %p51
      %p53 = scmp.ne.s32.totalorder %s42, %s45
      %p54 = scmp.eq.s32.totalorder %s25, 3
      %p55 = por %p53, %p54
      %p56 = scmp.ne.s32.totalorder %s45, %s46
      %p57 = scmp.eq.s32.totalorder %s25, 0
      %p58 = por %p56, %p57
      %p59 = scmp.ne.s32.totalorder %s45, %s46
      %p60 = scmp.eq.s32.totalorder %s26, 3
      %p61 = por %p59, %p60
      %p63 = scmp.ne.s32.totalorder %s46, %s62
      %p64 = scmp.eq.s32.totalorder %s26, 0
      %p65 = por %p63, %p64
      %s67 = sadd.s32 %s66, 1
      %p70 = scmp.eq.s32.totalorder %s20, 3
      %p71 = scmp.ne.s32.totalorder %s66, %s68
      %p72 = scmp.eq.s32.totalorder %s20, 0
      %p73 = por %p71, %p72
      %p74 = scmp.ne.s32.totalorder %s66, %s68
      %p75 = scmp.eq.s32.totalorder %s25, 3
      %p76 = por %p74, %p75
      %p77 = scmp.ne.s32.totalorder %s68, %s69
      %p78 = scmp.eq.s32.totalorder %s25, 0
      %p79 = por %p77, %p78
      %p80 = scmp.ne.s32.totalorder %s68, %s69
      %p81 = scmp.eq.s32.totalorder %s26, 3
      %p82 = por %p80, %p81
      %p84 = scmp.ne.s32.totalorder %s69, %s83
      %p85 = scmp.eq.s32.totalorder %s26, 0
      %p86 = por %p84, %p85
      %s87 = ssub.s32 %s27, %s39
      %p88 = scmp.eq.s32.totalorder %s87, 0
      %s90 = sadd.s32 %s89, 1
      %s91 = scalar_select %p88, %s89, %s90
      %p94 = pneg %p88
      %p95 = scmp.eq.s32.totalorder %s20, 3
      %p96 = por %p94, %p95
      %p97 = scmp.ne.s32.totalorder %s89, %s92
      %p98 = scmp.eq.s32.totalorder %s20, 0
      %p99 = por %p97, %p98
      %p100 = scmp.ne.s32.totalorder %s89, %s92
      %p101 = scmp.eq.s32.totalorder %s25, 3
      %p102 = por %p100, %p101
      %p103 = scmp.ne.s32.totalorder %s92, %s93
      %p104 = scmp.eq.s32.totalorder %s25, 0
      %p105 = por %p103, %p104
      %p106 = scmp.ne.s32.totalorder %s92, %s93
      %p107 = scmp.eq.s32.totalorder %s26, 3
      %p108 = por %p106, %p107
      %p110 = scmp.ne.s32.totalorder %s93, %s109
      %p111 = scmp.eq.s32.totalorder %s26, 0
      %p112 = por %p110, %p111
      %s113 = ssub.s32 %s27, %s39
      %s114 = ssub.s32 %s28, %s35
      %s115 = sor.u32 %s113, %s114
      %p116 = scmp.eq.s32.totalorder %s115, 0
      %s118 = sadd.s32 %s117, 1
      %s119 = scalar_select %p116, %s117, %s118
      %p122 = pneg %p116
      %p123 = scmp.eq.s32.totalorder %s20, 3
      %p124 = por %p122, %p123
      %p125 = scmp.ne.s32.totalorder %s117, %s120
      %p126 = scmp.eq.s32.totalorder %s20, 0
      %p127 = por %p125, %p126
      %p128 = scmp.ne.s32.totalorder %s117, %s120
      %p129 = scmp.eq.s32.totalorder %s25, 3
      %p130 = por %p128, %p129
      %p131 = scmp.ne.s32.totalorder %s120, %s121
      %p132 = scmp.eq.s32.totalorder %s25, 0
      %p133 = por %p131, %p132
      %p134 = scmp.ne.s32.totalorder %s120, %s121
      %p135 = scmp.eq.s32.totalorder %s26, 3
      %p136 = por %p134, %p135
      %p138 = scmp.ne.s32.totalorder %s121, %s137
      %p139 = scmp.eq.s32.totalorder %s26, 0
      %p140 = por %p138, %p139
      %s141 = ssub.s32 %s27, %s39
      %s142 = ssub.s32 %s28, %s35
      %s143 = sor.u32 %s141, %s142
      %p144 = scmp.eq.s32.totalorder %s143, 0
      %s146 = sadd.s32 %s145, 1
      %s147 = scalar_select %p144, %s145, %s146
      %p150 = pneg %p144
      %p151 = scmp.eq.s32.totalorder %s20, 3
      %p152 = por %p150, %p151
      %p153 = scmp.ne.s32.totalorder %s145, %s148
      %p154 = scmp.eq.s32.totalorder %s20, 0
      %p155 = por %p153, %p154
      %p156 = scmp.ne.s32.totalorder %s145, %s148
      %p157 = scmp.eq.s32.totalorder %s25, 3
      %p158 = por %p156, %p157
      %p159 = scmp.ne.s32.totalorder %s148, %s149
      %p160 = scmp.eq.s32.totalorder %s25, 0
      %p161 = por %p159, %p160
      %p162 = scmp.ne.s32.totalorder %s148, %s149
      %p163 = scmp.eq.s32.totalorder %s26, 3
      %p164 = por %p162, %p163
      %p166 = scmp.ne.s32.totalorder %s149, %s165
      %p167 = scmp.eq.s32.totalorder %s26, 0
      %p168 = por %p166, %p167
      %s169 = ssub.s32 %s27, %s39
      %s170 = ssub.s32 %s28, %s35
      %s171 = sor.u32 %s169, %s170
      %p172 = scmp.eq.s32.totalorder %s171, 0
      %s174 = sadd.s32 %s173, 1
      %s175 = scalar_select %p172, %s173, %s174
      %p178 = pneg %p172
      %p179 = scmp.eq.s32.totalorder %s20, 3
      %p180 = por %p178, %p179
      %p181 = scmp.ne.s32.totalorder %s173, %s176
      %p182 = scmp.eq.s32.totalorder %s20, 0
      %p183 = por %p181, %p182
      %p184 = scmp.ne.s32.totalorder %s173, %s176
      %p185 = scmp.eq.s32.totalorder %s25, 3
      %p186 = por %p184, %p185
      %p187 = scmp.ne.s32.totalorder %s176, %s177
      %p188 = scmp.eq.s32.totalorder %s25, 0
      %p189 = por %p187, %p188
      %p190 = scmp.ne.s32.totalorder %s176, %s177
      %p191 = scmp.eq.s32.totalorder %s26, 3
      %p192 = por %p190, %p191
      %p194 = scmp.ne.s32.totalorder %s177, %s193
      %p195 = scmp.eq.s32.totalorder %s26, 0
      %p196 = por %p194, %p195
      %s197 = ssub.s32 %s27, %s39
      %s198 = ssub.s32 %s28, %s35
      %s199 = sor.u32 %s197, %s198
      %p200 = scmp.eq.s32.totalorder %s199, 0
      %s202 = sadd.s32 %s201, 1
      %s203 = scalar_select %p200, %s201, %s202
      %p206 = pneg %p200
      %p207 = scmp.eq.s32.totalorder %s20, 3
      %p208 = por %p206, %p207
      %p209 = scmp.ne.s32.totalorder %s201, %s204
      %p210 = scmp.eq.s32.totalorder %s20, 0
      %p211 = por %p209, %p210
      %p212 = scmp.ne.s32.totalorder %s201, %s204
      %p213 = scmp.eq.s32.totalorder %s25, 3
      %p214 = por %p212, %p213
      %p215 = scmp.ne.s32.totalorder %s204, %s205
      %p216 = scmp.eq.s32.totalorder %s25, 0
      %p217 = por %p215, %p216
      %p218 = scmp.ne.s32.totalorder %s204, %s205
      %p219 = scmp.eq.s32.totalorder %s26, 3
      %p220 = por %p218, %p219
      %p222 = scmp.ne.s32.totalorder %s205, %s221
      %p223 = scmp.eq.s32.totalorder %s26, 0
      %p224 = por %p222, %p223
      %s225 = ssub.s32 %s27, %s39
      %s226 = ssub.s32 %s28, %s35
      %s227 = sor.u32 %s225, %s226
      %p228 = scmp.eq.s32.totalorder %s227, 0
      %s230 = sadd.s32 %s229, 1
      %s231 = scalar_select %p228, %s229, %s230
      %p234 = pneg %p228
      %p235 = scmp.eq.s32.totalorder %s20, 3
      %p236 = por %p234, %p235
      %p237 = scmp.ne.s32.totalorder %s229, %s232
      %p238 = scmp.eq.s32.totalorder %s20, 0
      %p239 = por %p237, %p238
      %p240 = scmp.ne.s32.totalorder %s229, %s232
      %p241 = scmp.eq.s32.totalorder %s25, 3
      %p242 = por %p240, %p241
      %p243 = scmp.ne.s32.totalorder %s232, %s233
      %p244 = scmp.eq.s32.totalorder %s25, 0
      %p245 = por %p243, %p244
      %p246 = scmp.ne.s32.totalorder %s232, %s233
      %p247 = scmp.eq.s32.totalorder %s26, 3
      %p248 = por %p246, %p247
      %p250 = scmp.ne.s32.totalorder %s233, %s249
      %p251 = scmp.eq.s32.totalorder %s26, 0
      %p252 = por %p250, %p251
      %s253 = ssub.s32 %s27, %s39
      %p254 = scmp.eq.s32.totalorder %s253, 0
      %s256 = sadd.s32 %s255, 1
      %s257 = scalar_select %p254, %s255, %s256
      %p260 = pneg %p254
      %p261 = scmp.eq.s32.totalorder %s20, 3
      %p262 = por %p260, %p261
      %p263 = scmp.ne.s32.totalorder %s255, %s258
      %p264 = scmp.eq.s32.totalorder %s20, 0
      %p265 = por %p263, %p264
      %p266 = scmp.ne.s32.totalorder %s255, %s258
      %p267 = scmp.eq.s32.totalorder %s25, 3
      %p268 = por %p266, %p267
      %p269 = scmp.ne.s32.totalorder %s258, %s259
      %p270 = scmp.eq.s32.totalorder %s25, 0
      %p271 = por %p269, %p270
      %p272 = scmp.ne.s32.totalorder %s258, %s259
      %p273 = scmp.eq.s32.totalorder %s26, 3
      %p274 = por %p272, %p273
      %p276 = scmp.ne.s32.totalorder %s259, %s275
      %p277 = scmp.eq.s32.totalorder %s26, 0
      %p278 = por %p276, %p277
      %p279 = scmp.le.s32.totalorder 1, %s20
      %p280 = scmp.lt.s32.totalorder %s20, 5
      %p281 = pnand %p279, %p280
      %p282 = pneg %p281
      // Predicated region
      $region9: #{mwp_forward.2} parent=5 // pred_check
        _
      $region10: #{mwp_forward.2} parent=5 // pred_check_branch
        %284 = sbr.rel (%p281) target = $region12
      $region11: #{mwp_forward.2} parent=5 // pred_region
        %s285 = ssub.s32 %s20, 1
        // Predicated region
        $region13: #{mwp_forward.2} parent=11 // pred_check
          %p286 = pneg %p79
        $region14: #{mwp_forward.2} parent=11 // pred_check_branch
          %288 = sbr.rel (%p286) target = $region16
        $region15: #{mwp_forward.2} parent=11 // pred_region
          _
        $region16: #{mwp_forward.2} parent=11 // pred_fallthru
          _
      $region12: #{mwp_forward.2} parent=5 // pred_fallthru
        _
      %p289 = scmp.lt.s32.totalorder %s20, 4
      // Predicated region
      $region17: #{mwp_forward.2} parent=5 // pred_check
        %p290 = pneg %p289
      $region18: #{mwp_forward.2} parent=5 // pred_check_branch
        %292 = sbr.rel (%p290) target = $region20
      $region19: #{mwp_forward.2} parent=5 // pred_region
        // Predicated region
        $region21: #{mwp_forward.2} parent=19 // pred_check
          %p293 = pneg %p52
        $region22: #{mwp_forward.2} parent=19 // pred_check_branch
          %295 = sbr.rel (%p293) target = $region24
        $region23: #{mwp_forward.2} parent=19 // pred_region
          %p296 = scmp.lt.s32.totalorder %s27, 1
          %s297 = scalar_select %p296, %s27, 1
          %s298 = smul.addr %s297, 2
          %s299 = smul.addr %s298, 8
          %s300 = scalar_lea.vmem %s0, %s299
        $region24: #{mwp_forward.2} parent=19 // pred_fallthru
          _
        // Predicated region
        $region25: #{mwp_forward.2} parent=19 // pred_check
          %p301 = pneg %p99
        $region26: #{mwp_forward.2} parent=19 // pred_check_branch
          %303 = sbr.rel (%p301) target = $region28
        $region27: #{mwp_forward.2} parent=19 // pred_region
          %s304 = sand.u32 %s89, 1
          %s305 = scalar_lea.sflag [#allocation4], %s304
          %s306 = sand.u32 %s89, 1
          %s307 = smul.addr %s306, 2
          %s308 = scalar_lea.vmem [#allocation3], %s307
          %s310 = ssub.s32 32, 32
          %311 = vsyncadd %s305, %s310
          %s312 = smul.addr %s27, 32
          %s313 = scalar_lea.hbm %s2, %s312
          %s315 = sshll.u32 %s308, 4
          %s316 = int_to_ptr.vmem [resolvable:$true] %s315
          %318 = dma.hbm_to_vmem [thread:$0]  %s313, 32, %s316, %s305
        $region28: #{mwp_forward.2} parent=19 // pred_fallthru
          _
        // Predicated region
        $region29: #{mwp_forward.2} parent=19 // pred_check
          %p319 = pneg %p127
        $region30: #{mwp_forward.2} parent=19 // pred_check_branch
          %321 = sbr.rel (%p319) target = $region32
        $region31: #{mwp_forward.2} parent=19 // pred_region
          %p322 = scmp.lt.s32.totalorder %s27, 1
          %s323 = scalar_select %p322, %s27, 1
          %p324 = scmp.lt.s32.totalorder %s28, 1
          %s325 = scalar_select %p324, %s28, 1
          %s326 = smul.addr %s325, 4
          %s327 = smul.addr %s323, 8
          %s328 = sadd.s32 %s326, %s327
          %s329 = smul.addr %s328, 4
          %s330 = scalar_lea.vmem %s3, %s329
        $region32: #{mwp_forward.2} parent=19 // pred_fallthru
          _
        // Predicated region
        $region33: #{mwp_forward.2} parent=19 // pred_check
          %p331 = pneg %p155
        $region34: #{mwp_forward.2} parent=19 // pred_check_branch
          %333 = sbr.rel (%p331) target = $region36
        $region35: #{mwp_forward.2} parent=19 // pred_region
          %p334 = scmp.lt.s32.totalorder %s27, 1
          %s335 = scalar_select %p334, %s27, 1
          %p336 = scmp.lt.s32.totalorder %s28, 1
          %s337 = scalar_select %p336, %s28, 1
          %s338 = smul.addr %s337, 4
          %s339 = smul.addr %s335, 8
          %s340 = sadd.s32 %s338, %s339
          %s341 = smul.addr %s340, 4
          %s342 = scalar_lea.vmem %s4, %s341
        $region36: #{mwp_forward.2} parent=19 // pred_fallthru
          _
        // Predicated region
        $region37: #{mwp_forward.2} parent=19 // pred_check
          %p343 = pneg %p183
        $region38: #{mwp_forward.2} parent=19 // pred_check_branch
          %345 = sbr.rel (%p343) target = $region40
        $region39: #{mwp_forward.2} parent=19 // pred_region
          %p346 = scmp.lt.s32.totalorder %s27, 1
          %s347 = scalar_select %p346, %s27, 1
          %p348 = scmp.lt.s32.totalorder %s28, 1
          %s349 = scalar_select %p348, %s28, 1
          %s350 = smul.addr %s349, 4
          %s351 = smul.addr %s347, 8
          %s352 = sadd.s32 %s350, %s351
          %s353 = smul.addr %s352, 4
          %s354 = scalar_lea.vmem %s5, %s353
        $region40: #{mwp_forward.2} parent=19 // pred_fallthru
          _
        // Predicated region
        $region41: #{mwp_forward.2} parent=19 // pred_check
          %p355 = pneg %p211
        $region42: #{mwp_forward.2} parent=19 // pred_check_branch
          %357 = sbr.rel (%p355) target = $region44
        $region43: #{mwp_forward.2} parent=19 // pred_region
          %p358 = scmp.lt.s32.totalorder %s27, 1
          %s359 = scalar_select %p358, %s27, 1
          %p360 = scmp.lt.s32.totalorder %s28, 1
          %s361 = scalar_select %p360, %s28, 1
          %s362 = smul.addr %s361, 8
          %s363 = smul.addr %s359, 16
          %s364 = sadd.s32 %s362, %s363
          %s365 = smul.addr %s364, 4
          %s366 = scalar_lea.vmem %s6, %s365
        $region44: #{mwp_forward.2} parent=19 // pred_fallthru
          _
        // Predicated region
        $region45: #{mwp_forward.2} parent=19 // pred_check
          %p367 = pneg %p239
        $region46: #{mwp_forward.2} parent=19 // pred_check_branch
          %369 = sbr.rel (%p367) target = $region48
        $region47: #{mwp_forward.2} parent=19 // pred_region
          %s370 = sand.u32 %s229, 1
          %s371 = scalar_lea.sflag [#allocation6], %s370
          %s372 = sand.u32 %s229, 1
          %s373 = smul.addr %s372, 8
          %s374 = scalar_lea.vmem [#allocation5], %s373
          %s376 = ssub.s32 128, 128
          %377 = vsyncadd %s371, %s376
          %s378 = smul.addr %s27, 2
          %s379 = sadd.s32 %s28, %s378
          %s380 = smul.addr %s379, 128
          %s381 = scalar_lea.hbm %s7, %s380
          %s383 = sshll.u32 %s374, 4
          %s384 = int_to_ptr.vmem [resolvable:$true] %s383
          %386 = dma.hbm_to_vmem [thread:$0]  %s381, 128, %s384, %s371
        $region48: #{mwp_forward.2} parent=19 // pred_fallthru
          _
      $region20: #{mwp_forward.2} parent=5 // pred_fallthru
        _
      %p387 = scmp.le.s32.totalorder 1, %s20
      %p388 = scmp.lt.s32.totalorder %s20, 5
      %p389 = pnand %p387, %p388
      %p390 = pneg %p389
      // Predicated region
      $region49: #{mwp_forward.2} parent=5 // pred_check
        _
      $region50: #{mwp_forward.2} parent=5 // pred_check_branch
        %392 = sbr.rel (%p389) target = $region52
      $region51: #{mwp_forward.2} parent=5 // pred_region
        %s393 = ssub.s32 %s20, 1
        %s394 = sand.u32 %s92, 1
        %s395 = scalar_lea.sflag [#allocation4], %s394
        %s396 = sand.u32 %s92, 1
        %s397 = smul.addr %s396, 2
        %s398 = scalar_lea.vmem [#allocation3], %s397
        // Predicated region
        $region53: #{mwp_forward.2} parent=51 // pred_check
          %p399 = pneg %p105
        $region54: #{mwp_forward.2} parent=51 // pred_check_branch
          %401 = sbr.rel (%p399) target = $region56
        $region55: #{mwp_forward.2} parent=51 // pred_region
          %402 = dma.done %s395, 32
        $region56: #{mwp_forward.2} parent=51 // pred_fallthru
          _
        %s403 = sand.u32 %s232, 1
        %s404 = scalar_lea.sflag [#allocation6], %s403
        %s405 = sand.u32 %s232, 1
        %s406 = smul.addr %s405, 8
        %s407 = scalar_lea.vmem [#allocation5], %s406
        // Predicated region
        $region57: #{mwp_forward.2} parent=51 // pred_check
          %p408 = pneg %p245
        $region58: #{mwp_forward.2} parent=51 // pred_check_branch
          %410 = sbr.rel (%p408) target = $region60
        $region59: #{mwp_forward.2} parent=51 // pred_region
          %411 = dma.done %s404, 128
        $region60: #{mwp_forward.2} parent=51 // pred_fallthru
          _
        %p412 = scmp.lt.s32.totalorder %s29, 1
        %s413 = scalar_select %p412, %s29, 1
        %s414 = smul.addr %s413, 2
        %s415 = smul.addr %s414, 8
        %s416 = scalar_lea.vmem %s0, %s415
        %p417 = pneg %p58
        %p418 = pneg %p55
        %p419 = pneg %p79
        %p420 = pneg %p76
        %s421 = sand.u32 %s92, 1
        %s422 = scalar_lea.sflag [#allocation4], %s421
        %s423 = sand.u32 %s92, 1
        %s424 = smul.addr %s423, 2
        %s425 = scalar_lea.vmem [#allocation3], %s424
        %p426 = pneg %p105
        %p427 = pneg %p102
        %p428 = scmp.lt.s32.totalorder %s29, 1
        %s429 = scalar_select %p428, %s29, 1
        %p430 = scmp.lt.s32.totalorder %s30, 1
        %s431 = scalar_select %p430, %s30, 1
        %s432 = smul.addr %s431, 4
        %s433 = smul.addr %s429, 8
        %s434 = sadd.s32 %s432, %s433
        %s435 = smul.addr %s434, 4
        %s436 = scalar_lea.vmem %s3, %s435
        %p437 = pneg %p133
        %p438 = pneg %p130
        %p439 = scmp.lt.s32.totalorder %s29, 1
        %s440 = scalar_select %p439, %s29, 1
        %p441 = scmp.lt.s32.totalorder %s30, 1
        %s442 = scalar_select %p441, %s30, 1
        %s443 = smul.addr %s442, 4
        %s444 = smul.addr %s440, 8
        %s445 = sadd.s32 %s443, %s444
        %s446 = smul.addr %s445, 4
        %s447 = scalar_lea.vmem %s4, %s446
        %p448 = pneg %p161
        %p449 = pneg %p158
        %p450 = scmp.lt.s32.totalorder %s29, 1
        %s451 = scalar_select %p450, %s29, 1
        %p452 = scmp.lt.s32.totalorder %s30, 1
        %s453 = scalar_select %p452, %s30, 1
        %s454 = smul.addr %s453, 4
        %s455 = smul.addr %s451, 8
        %s456 = sadd.s32 %s454, %s455
        %s457 = smul.addr %s456, 4
        %s458 = scalar_lea.vmem %s5, %s457
        %p459 = pneg %p189
        %p460 = pneg %p186
        %p461 = scmp.lt.s32.totalorder %s29, 1
        %s462 = scalar_select %p461, %s29, 1
        %p463 = scmp.lt.s32.totalorder %s30, 1
        %s464 = scalar_select %p463, %s30, 1
        %s465 = smul.addr %s464, 8
        %s466 = smul.addr %s462, 16
        %s467 = sadd.s32 %s465, %s466
        %s468 = smul.addr %s467, 4
        %s469 = scalar_lea.vmem %s6, %s468
        %p470 = pneg %p217
        %p471 = pneg %p214
        %s472 = sand.u32 %s232, 1
        %s473 = scalar_lea.sflag [#allocation6], %s472
        %s474 = sand.u32 %s232, 1
        %s475 = smul.addr %s474, 8
        %s476 = scalar_lea.vmem [#allocation5], %s475
        %p477 = pneg %p245
        %p478 = pneg %p242
        %p479 = pneg %p271
        %p480 = pneg %p268
        %p481 = scmp.lt.s32.totalorder %s29, 1
        %s482 = scalar_select %p481, %s29, 1
        %s483 = smul.addr %s482, 2
        %s484 = smul.addr %s483, 8
        %s485 = scalar_lea.vmem %s8, %s484
        %p486 = scmp.lt.s32.totalorder %s29, 1
        %s487 = scalar_select %p486, %s29, 1
        %s488 = smul.addr %s487, 2
        %s489 = smul.addr %s488, 8
        %s490 = scalar_lea.vmem %s0, %s489
        %p491 = scmp.lt.s32.totalorder %s29, 1
        %s492 = scalar_select %p491, %s29, 1
        %p493 = scmp.lt.s32.totalorder %s30, 1
        %s494 = scalar_select %p493, %s30, 1
        %s495 = smul.addr %s494, 4
        %s496 = smul.addr %s492, 8
        %s497 = sadd.s32 %s495, %s496
        %s498 = smul.addr %s497, 4
        %s499 = scalar_lea.vmem %s3, %s498
        %p500 = scmp.lt.s32.totalorder %s29, 1
        %s501 = scalar_select %p500, %s29, 1
        %p502 = scmp.lt.s32.totalorder %s30, 1
        %s503 = scalar_select %p502, %s30, 1
        %s504 = smul.addr %s503, 4
        %s505 = smul.addr %s501, 8
        %s506 = sadd.s32 %s504, %s505
        %s507 = smul.addr %s506, 4
        %s508 = scalar_lea.vmem %s4, %s507
        %p509 = scmp.lt.s32.totalorder %s29, 1
        %s510 = scalar_select %p509, %s29, 1
        %p511 = scmp.lt.s32.totalorder %s30, 1
        %s512 = scalar_select %p511, %s30, 1
        %s513 = smul.addr %s512, 4
        %s514 = smul.addr %s510, 8
        %s515 = sadd.s32 %s513, %s514
        %s516 = smul.addr %s515, 4
        %s517 = scalar_lea.vmem %s5, %s516
        %p518 = scmp.lt.s32.totalorder %s29, 1
        %s519 = scalar_select %p518, %s29, 1
        %p520 = scmp.lt.s32.totalorder %s30, 1
        %s521 = scalar_select %p520, %s30, 1
        %s522 = smul.addr %s521, 8
        %s523 = smul.addr %s519, 16
        %s524 = sadd.s32 %s522, %s523
        %s525 = smul.addr %s524, 4
        %s526 = scalar_lea.vmem %s6, %s525
        %p527 = scmp.lt.s32.totalorder %s29, 1
        %s528 = scalar_select %p527, %s29, 1
        %s529 = smul.addr %s528, 2
        %s530 = smul.addr %s529, 8
        %s531 = scalar_lea.vmem %s8, %s530
        %p533 = scmp.eq.s32.totalorder %s30, 0
        // Predicated region
        $region61: #{mwp_forward.2} parent=51 // pred_check
          %p534 = pneg %p533
        $region62: #{mwp_forward.2} parent=51 // pred_check_branch
          %536 = sbr.rel (%p534) target = $region64
        $region63: #{mwp_forward.2} parent=51 // pred_region
          %v537 = vld [vmem:[%s398] sm:$0x1]
          %v538 = vld [vmem:[%s398 + $0x1] sm:$0x1]
          %v539 = vld [vmem:[%s490] sm:$0xff]
          %v540 = vld [vmem:[%s490 + $0x8] sm:$0xff]
          %vm541 = vcmask 261120
          %v542 = vsel %vm541, %v539, 0.0
          %543 = vadd.xlane.f32.xlu0 %v542
          %v544 = vpop.xlane.xlu0 %543
          %v545 = vsel %vm541, %v540, 0.0
          %546 = vadd.xlane.f32.xlu0 %v545
          %v547 = vpop.xlane.xlu0 %546
          %v548 = vrcp.pop 32.0
          %v549 = vmul.f32 %v544, %v548
          %v550 = vmul.f32 %v547, %v548
          %v551 = vsub.f32 %v539, %v549
          %v552 = vsub.f32 %v540, %v550
          %v553 = vmul.f32 %v551, %v551
          %v554 = vmul.f32 %v552, %v552
          %v555 = vsel %vm541, %v553, 0.0
          %556 = vadd.xlane.f32.xlu0 %v555
          %v557 = vpop.xlane.xlu0 %556
          %v558 = vsel %vm541, %v554, 0.0
          %559 = vadd.xlane.f32.xlu0 %v558
          %v560 = vpop.xlane.xlu0 %559
          %v561 = vmul.f32 %v557, %v548
          %v562 = vmul.f32 %v560, %v548
          %v563 = vadd.f32 %v561, 1e-12
          %v564 = vadd.f32 %v562, 1e-12
          %v565 = vrsqrt.pop %v563
          %v566 = vrsqrt.pop %v564
          %v567 = vmul.f32 %v551, %v565
          %v568 = vmul.f32 %v552, %v566
          %v569 = vlaneseq
          %v570 = vshrl.u32 %v569, 7
          %v571 = vsub.s32 0, %v570
          %v572 = vrot.slane %v537, %v571
          %v573 = vmul.f32 %v567, %v572
          %v574 = vmul.f32 %v568, %v572
          %v575 = vlaneseq
          %v576 = vshrl.u32 %v575, 7
          %v577 = vsub.s32 0, %v576
          %v578 = vrot.slane %v538, %v577
          %v579 = vadd.f32 %v573, %v578
          %v580 = vadd.f32 %v574, %v578
          %581 = vst.msk [vmem:[%s531] sm:$0xff] %vm541, %v579
          %582 = vst.msk [vmem:[%s531 + $0x8] sm:$0xff] %vm541, %v580
        $region64: #{mwp_forward.2} parent=51 // pred_fallthru
          _
        %v583 = vld [vmem:[%s531] sm:$0xff]
        %v584 = vld [vmem:[%s531 + $0x8] sm:$0xff]
        %v585 = vld [vmem:[%s407] sm:$0xff]
        %v586 = vpack.c.bf16 %v584, %v583
        %v587 = vld [vmem:[%s499] sm:$0xf]
        %v588 = vld [vmem:[%s499 + $0x4] sm:$0xf]
        %v589 = vld [vmem:[%s499 + $0x8] sm:$0xf]
        %v590 = vld [vmem:[%s499 + $0xc] sm:$0xf]
        %v591 = vlaneseq
        %v592 = vshrl.u32 %v591, 7
        %v593 = vsub.s32 0, %v592
        %v594 = vrot.slane %v585, %v593
        %v599 = vunpack.c.l.b16 %v587
        %v600 = vunpack.c.l.b16 %v588
        %v601 = vunpack.c.l.b16 %v589
        %v602 = vunpack.c.l.b16 %v590
        %v603 = vpack.c.b16 %v600, %v599
        %v604 = vpack.c.b16 %v602, %v601
        %vm607 = vcmask 261120
        %v609 = vsel %vm607, %v586, 0
        %611 = vmatprep.subr.bf16.mxu0 0
        %612 = vmatpush1.bf16.msra.mxu0 %v603
        %613 = vmatprep.subr.bf16.mxu0 0
        %614 = vmatpush1.bf16.msra.mxu0 %v604
        %615 = vmatprep.subr.bf16.mxu0 0
        %616 = vmatpush1.bf16.msra.mxu0 0
        %617 = vmatprep.subr.bf16.mxu0 0
        %618 = vmatpush1.bf16.msra.mxu0 0
        %619 = vmatprep.subr.bf16.mxu0 0
        %620 = vmatpush1.bf16.msra.mxu0 0
        %621 = vmatprep.subr.bf16.mxu0 0
        %622 = vmatpush1.bf16.msra.mxu0 0
        %623 = vmatprep.subr.bf16.mxu0 0
        %624 = vmatpush1.bf16.msra.mxu0 0
        %625 = vmatprep.subr.bf16.mxu0 0
        %626 = vmatpush1.bf16.msra.mxu0 0
        %627 = vmatprep.subr.bf16.mxu0 0
        %628 = vmatpush1.bf16.msra.mxu0 0
        %629 = vmatprep.subr.bf16.mxu0 0
        %630 = vmatpush1.bf16.msra.mxu0 0
        %631 = vmatprep.subr.bf16.mxu0 0
        %632 = vmatpush1.bf16.msra.mxu0 0
        %633 = vmatprep.subr.bf16.mxu0 0
        %634 = vmatpush1.bf16.msra.mxu0 0
        %635 = vmatprep.subr.bf16.mxu0 0
        %636 = vmatpush1.bf16.msra.mxu0 0
        %637 = vmatprep.subr.bf16.mxu0 0
        %638 = vmatpush1.bf16.msra.mxu0 0
        %639 = vmatprep.subr.bf16.mxu0 0
        %640 = vmatpush1.bf16.msra.mxu0 0
        %641 = vmatprep.subr.bf16.mxu0 0
        %642 = vmatpush1.bf16.msra.mxu0 0
        %643 = vmatprep.mubr.bf16.mxu0 0
        %644 = vmatmul.mubr.bf16.gmra.mrb[0].mxu0 %v609
        %v645 = vpop.f32.mrb[0].mxu0
        %v646 = vadd.f32 %v594, %v645
        %v647 = vpop.f32.mrb[0].mxu0
        %v648 = vpop.f32.mrb[0].mxu0
        %v649 = vadd.f32 %v594, %v648
        %v650 = vpop.f32.mrb[0].mxu0
        %651 = vdwg.mxu0
        %v652 = vld [vmem:[%s1] sm:$0xff]
        %v653 = vld [vmem:[%s1 + $0x8] sm:$0xff]
        %v654 = vpack.c.bf16 %v646, %v646
        %v655 = vpack.c.bf16 %v649, %v649
        %657 = vrot.lane.b32.xlu0 %v654, 96
        %v658 = vpop.permute.xlu0 %657
        %vm659 = vcmask 130048
        %v661 = vsel %vm659, %v654, 0
        %v664 = vsel %vm659, %v658, 0
        %666 = vmatprep.subr.bf16.mxu0 0
        %667 = vmatpush1.bf16.xpose.msra.mxu0 %v664
        %668 = vmatprep.subr.bf16.mxu0 0
        %669 = vmatpush1.bf16.xpose.msra.mxu0 0
        %670 = vmatprep.subr.bf16.mxu0 0
        %671 = vmatpush1.bf16.xpose.msra.mxu0 0
        %672 = vmatprep.subr.bf16.mxu0 0
        %673 = vmatpush1.bf16.xpose.msra.mxu0 0
        %674 = vmatprep.subr.bf16.mxu0 0
        %675 = vmatpush1.bf16.xpose.msra.mxu0 0
        %676 = vmatprep.subr.bf16.mxu0 0
        %677 = vmatpush1.bf16.xpose.msra.mxu0 0
        %678 = vmatprep.subr.bf16.mxu0 0
        %679 = vmatpush1.bf16.xpose.msra.mxu0 0
        %680 = vmatprep.subr.bf16.mxu0 0
        %681 = vmatpush1.bf16.xpose.msra.mxu0 0
        %682 = vmatprep.subr.bf16.mxu0 0
        %683 = vmatpush1.bf16.xpose.msra.mxu0 0
        %684 = vmatprep.subr.bf16.mxu0 0
        %685 = vmatpush1.bf16.xpose.msra.mxu0 0
        %686 = vmatprep.subr.bf16.mxu0 0
        %687 = vmatpush1.bf16.xpose.msra.mxu0 0
        %688 = vmatprep.subr.bf16.mxu0 0
        %689 = vmatpush1.bf16.xpose.msra.mxu0 0
        %690 = vmatprep.subr.bf16.mxu0 0
        %691 = vmatpush1.bf16.xpose.msra.mxu0 0
        %692 = vmatprep.subr.bf16.mxu0 0
        %693 = vmatpush1.bf16.xpose.msra.mxu0 0
        %694 = vmatprep.subr.bf16.mxu0 0
        %695 = vmatpush1.bf16.xpose.msra.mxu0 0
        %696 = vmatprep.subr.bf16.mxu0 0
        %697 = vmatpush1.bf16.xpose.msra.mxu0 0
        %698 = vmatprep.mubr.bf16.mxu0 0
        %699 = vmatmul.mubr.bf16.gmra.mrb[0].mxu0 %v661
        %v700 = vpop.f32.mrb[0].mxu0
        %v701 = vadd.f32 0.0, %v700
        %v702 = vpop.f32.mrb[0].mxu0
        %v703 = vpop.f32.mrb[0].mxu0
        %v704 = vpop.f32.mrb[0].mxu0
        %705 = vdwg.mxu0
        %707 = vrot.lane.b32.xlu0 %v655, 96
        %v708 = vpop.permute.xlu0 %707
        %v710 = vsel %vm659, %v655, 0
        %v713 = vsel %vm659, %v708, 0
        %715 = vmatprep.subr.bf16.mxu0 0
        %716 = vmatpush1.bf16.xpose.msra.mxu0 %v713
        %717 = vmatprep.subr.bf16.mxu0 0
        %718 = vmatpush1.bf16.xpose.msra.mxu0 0
        %719 = vmatprep.subr.bf16.mxu0 0
        %720 = vmatpush1.bf16.xpose.msra.mxu0 0
        %721 = vmatprep.subr.bf16.mxu0 0
        %722 = vmatpush1.bf16.xpose.msra.mxu0 0
        %723 = vmatprep.subr.bf16.mxu0 0
        %724 = vmatpush1.bf16.xpose.msra.mxu0 0
        %725 = vmatprep.subr.bf16.mxu0 0
        %726 = vmatpush1.bf16.xpose.msra.mxu0 0
        %727 = vmatprep.subr.bf16.mxu0 0
        %728 = vmatpush1.bf16.xpose.msra.mxu0 0
        %729 = vmatprep.subr.bf16.mxu0 0
        %730 = vmatpush1.bf16.xpose.msra.mxu0 0
        %731 = vmatprep.subr.bf16.mxu0 0
        %732 = vmatpush1.bf16.xpose.msra.mxu0 0
        %733 = vmatprep.subr.bf16.mxu0 0
        %734 = vmatpush1.bf16.xpose.msra.mxu0 0
        %735 = vmatprep.subr.bf16.mxu0 0
        %736 = vmatpush1.bf16.xpose.msra.mxu0 0
        %737 = vmatprep.subr.bf16.mxu0 0
        %738 = vmatpush1.bf16.xpose.msra.mxu0 0
        %739 = vmatprep.subr.bf16.mxu0 0
        %740 = vmatpush1.bf16.xpose.msra.mxu0 0
        %741 = vmatprep.subr.bf16.mxu0 0
        %742 = vmatpush1.bf16.xpose.msra.mxu0 0
        %743 = vmatprep.subr.bf16.mxu0 0
        %744 = vmatpush1.bf16.xpose.msra.mxu0 0
        %745 = vmatprep.subr.bf16.mxu0 0
        %746 = vmatpush1.bf16.xpose.msra.mxu0 0
        %747 = vmatprep.mubr.bf16.mxu0 0
        %748 = vmatmul.mubr.bf16.gmra.mrb[0].mxu0 %v710
        %v749 = vpop.f32.mrb[0].mxu0
        %v750 = vadd.f32 0.0, %v749
        %v751 = vpop.f32.mrb[0].mxu0
        %v752 = vpop.f32.mrb[0].mxu0
        %v753 = vpop.f32.mrb[0].mxu0
        %754 = vdwg.mxu0
        %v755 = vmul.f32 %v701, 0.25
        %v756 = vmul.f32 %v750, 0.25
        %v757 = vadd.f32 %v755, %v652
        %v758 = vadd.f32 %v756, %v653
        %vm759 = vcmask 64512
        %v760 = vsel %vm759, %v757, -inf
        %761 = vmax.xlane.f32.xlu0 %v760
        %v762 = vpop.xlane.xlu0 %761
        %v763 = vsel %vm759, %v758, -inf
        %764 = vmax.xlane.f32.xlu0 %v763
        %v765 = vpop.xlane.xlu0 %764
        %v766 = vsub.f32 %v757, %v762
        %v767 = vsub.f32 %v758, %v765
        %v768 = vmul.f32 %v766, 1.442695
        %v769 = vpow.pop %v768
        %v770 = vmul.f32 %v767, 1.442695
        %v771 = vpow.pop %v770
        %v772 = vsel %vm759, %v769, 0.0
        %773 = vadd.xlane.f32.xlu0 %v772
        %v774 = vpop.xlane.xlu0 %773
        %v775 = vsel %vm759, %v771, 0.0
        %776 = vadd.xlane.f32.xlu0 %v775
        %v777 = vpop.xlane.xlu0 %776
        %v778 = vrcp.pop %v774
        %v779 = vrcp.pop %v777
        %v780 = vmul.f32 %v769, %v778
        %v781 = vmul.f32 %v771, %v779
        %v782 = vpack.c.bf16 %v780, %v780
        %v783 = vpack.c.bf16 %v781, %v781
        %784 = vrot.lane.b32.xlu0 %v654, 64
        %v785 = vpop.permute.xlu0 %784
        %v787 = vsel %vm759, %v782, 0
        %vm789 = vcmask 1043456
        %v791 = vsel %vm789, %v785, 0
        %793 = vmatprep.subr.bf16.mxu0 0
        %794 = vmatpush1.bf16.msra.mxu0 %v791
        %795 = vmatprep.subr.bf16.mxu0 0
        %796 = vmatpush1.bf16.msra.mxu0 0
        %797 = vmatprep.subr.bf16.mxu0 0
        %798 = vmatpush1.bf16.msra.mxu0 0
        %799 = vmatprep.subr.bf16.mxu0 0
        %800 = vmatpush1.bf16.msra.mxu0 0
        %801 = vmatprep.subr.bf16.mxu0 0
        %802 = vmatpush1.bf16.msra.mxu0 0
        %803 = vmatprep.subr.bf16.mxu0 0
        %804 = vmatpush1.bf16.msra.mxu0 0
        %805 = vmatprep.subr.bf16.mxu0 0
        %806 = vmatpush1.bf16.msra.mxu0 0
        %807 = vmatprep.subr.bf16.mxu0 0
        %808 = vmatpush1.bf16.msra.mxu0 0
        %809 = vmatprep.subr.bf16.mxu0 0
        %810 = vmatpush1.bf16.msra.mxu0 0
        %811 = vmatprep.subr.bf16.mxu0 0
        %812 = vmatpush1.bf16.msra.mxu0 0
        %813 = vmatprep.subr.bf16.mxu0 0
        %814 = vmatpush1.bf16.msra.mxu0 0
        %815 = vmatprep.subr.bf16.mxu0 0
        %816 = vmatpush1.bf16.msra.mxu0 0
        %817 = vmatprep.subr.bf16.mxu0 0
        %818 = vmatpush1.bf16.msra.mxu0 0
        %819 = vmatprep.subr.bf16.mxu0 0
        %820 = vmatpush1.bf16.msra.mxu0 0
        %821 = vmatprep.subr.bf16.mxu0 0
        %822 = vmatpush1.bf16.msra.mxu0 0
        %823 = vmatprep.subr.bf16.mxu0 0
        %824 = vmatpush1.bf16.msra.mxu0 0
        %825 = vmatprep.mubr.bf16.mxu0 0
        %826 = vmatmul.mubr.bf16.gmra.mrb[0].mxu0 %v787
        %v827 = vpop.f32.mrb[0].mxu0
        %v828 = vadd.f32 0.0, %v827
        %v829 = vpop.f32.mrb[0].mxu0
        %v830 = vpop.f32.mrb[0].mxu0
        %v831 = vpop.f32.mrb[0].mxu0
        %832 = vdwg.mxu0
        %833 = vrot.lane.b32.xlu0 %v655, 64
        %v834 = vpop.permute.xlu0 %833
        %v836 = vsel %vm759, %v783, 0
        %v839 = vsel %vm789, %v834, 0
        %841 = vmatprep.subr.bf16.mxu0 0
        %842 = vmatpush1.bf16.msra.mxu0 %v839
        %843 = vmatprep.subr.bf16.mxu0 0
        %844 = vmatpush1.bf16.msra.mxu0 0
        %845 = vmatprep.subr.bf16.mxu0 0
        %846 = vmatpush1.bf16.msra.mxu0 0
        %847 = vmatprep.subr.bf16.mxu0 0
        %848 = vmatpush1.bf16.msra.mxu0 0
        %849 = vmatprep.subr.bf16.mxu0 0
        %850 = vmatpush1.bf16.msra.mxu0 0
        %851 = vmatprep.subr.bf16.mxu0 0
        %852 = vmatpush1.bf16.msra.mxu0 0
        %853 = vmatprep.subr.bf16.mxu0 0
        %854 = vmatpush1.bf16.msra.mxu0 0
        %855 = vmatprep.subr.bf16.mxu0 0
        %856 = vmatpush1.bf16.msra.mxu0 0
        %857 = vmatprep.subr.bf16.mxu0 0
        %858 = vmatpush1.bf16.msra.mxu0 0
        %859 = vmatprep.subr.bf16.mxu0 0
        %860 = vmatpush1.bf16.msra.mxu0 0
        %861 = vmatprep.subr.bf16.mxu0 0
        %862 = vmatpush1.bf16.msra.mxu0 0
        %863 = vmatprep.subr.bf16.mxu0 0
        %864 = vmatpush1.bf16.msra.mxu0 0
        %865 = vmatprep.subr.bf16.mxu0 0
        %866 = vmatpush1.bf16.msra.mxu0 0
        %867 = vmatprep.subr.bf16.mxu0 0
        %868 = vmatpush1.bf16.msra.mxu0 0
        %869 = vmatprep.subr.bf16.mxu0 0
        %870 = vmatpush1.bf16.msra.mxu0 0
        %871 = vmatprep.subr.bf16.mxu0 0
        %872 = vmatpush1.bf16.msra.mxu0 0
        %873 = vmatprep.mubr.bf16.mxu0 0
        %874 = vmatmul.mubr.bf16.gmra.mrb[0].mxu0 %v836
        %v875 = vpop.f32.mrb[0].mxu0
        %v876 = vadd.f32 0.0, %v875
        %v877 = vpop.f32.mrb[0].mxu0
        %v878 = vpop.f32.mrb[0].mxu0
        %v879 = vpop.f32.mrb[0].mxu0
        %880 = vdwg.mxu0
        %881 = vst.msk [vmem:[#allocation2] sm:$0xff] %vm659, %v828
        %882 = vst.msk [vmem:[#allocation2 + $0x8] sm:$0xff] %vm659, %v876
        %883 = vrot.lane.b32.xlu0 %v654, 112
        %v884 = vpop.permute.xlu0 %883
        %885 = vrot.lane.b32.xlu0 %v654, 80
        %v886 = vpop.permute.xlu0 %885
        %v888 = vsel %vm659, %v884, 0
        %v891 = vsel %vm659, %v886, 0
        %893 = vmatprep.subr.bf16.mxu0 0
        %894 = vmatpush1.bf16.xpose.msra.mxu0 %v891
        %895 = vmatprep.subr.bf16.mxu0 0
        %896 = vmatpush1.bf16.xpose.msra.mxu0 0
        %897 = vmatprep.subr.bf16.mxu0 0
        %898 = vmatpush1.bf16.xpose.msra.mxu0 0
        %899 = vmatprep.subr.bf16.mxu0 0
        %900 = vmatpush1.bf16.xpose.msra.mxu0 0
        %901 = vmatprep.subr.bf16.mxu0 0
        %902 = vmatpush1.bf16.xpose.msra.mxu0 0
        %903 = vmatprep.subr.bf16.mxu0 0
        %904 = vmatpush1.bf16.xpose.msra.mxu0 0
        %905 = vmatprep.subr.bf16.mxu0 0
        %906 = vmatpush1.bf16.xpose.msra.mxu0 0
        %907 = vmatprep.subr.bf16.mxu0 0
        %908 = vmatpush1.bf16.xpose.msra.mxu0 0
        %909 = vmatprep.subr.bf16.mxu0 0
        %910 = vmatpush1.bf16.xpose.msra.mxu0 0
        %911 = vmatprep.subr.bf16.mxu0 0
        %912 = vmatpush1.bf16.xpose.msra.mxu0 0
        %913 = vmatprep.subr.bf16.mxu0 0
        %914 = vmatpush1.bf16.xpose.msra.mxu0 0
        %915 = vmatprep.subr.bf16.mxu0 0
        %916 = vmatpush1.bf16.xpose.msra.mxu0 0
        %917 = vmatprep.subr.bf16.mxu0 0
        %918 = vmatpush1.bf16.xpose.msra.mxu0 0
        %919 = vmatprep.subr.bf16.mxu0 0
        %920 = vmatpush1.bf16.xpose.msra.mxu0 0
        %921 = vmatprep.subr.bf16.mxu0 0
        %922 = vmatpush1.bf16.xpose.msra.mxu0 0
        %923 = vmatprep.subr.bf16.mxu0 0
        %924 = vmatpush1.bf16.xpose.msra.mxu0 0
        %925 = vmatprep.mubr.bf16.mxu0 0
        %926 = vmatmul.mubr.bf16.gmra.mrb[0].mxu0 %v888
        %v927 = vpop.f32.mrb[0].mxu0
        %v928 = vadd.f32 0.0, %v927
        %v929 = vpop.f32.mrb[0].mxu0
        %v930 = vpop.f32.mrb[0].mxu0
        %v931 = vpop.f32.mrb[0].mxu0
        %932 = vdwg.mxu0
        %933 = vrot.lane.b32.xlu0 %v655, 112
        %v934 = vpop.permute.xlu0 %933
        %935 = vrot.lane.b32.xlu0 %v655, 80
        %v936 = vpop.permute.xlu0 %935
        %v938 = vsel %vm659, %v934, 0
        %v941 = vsel %vm659, %v936, 0
        %943 = vmatprep.subr.bf16.mxu0 0
        %944 = vmatpush1.bf16.xpose.msra.mxu0 %v941
        %945 = vmatprep.subr.bf16.mxu0 0
        %946 = vmatpush1.bf16.xpose.msra.mxu0 0
        %947 = vmatprep.subr.bf16.mxu0 0
        %948 = vmatpush1.bf16.xpose.msra.mxu0 0
        %949 = vmatprep.subr.bf16.mxu0 0
        %950 = vmatpush1.bf16.xpose.msra.mxu0 0
        %951 = vmatprep.subr.bf16.mxu0 0
        %952 = vmatpush1.bf16.xpose.msra.mxu0 0
        %953 = vmatprep.subr.bf16.mxu0 0
        %954 = vmatpush1.bf16.xpose.msra.mxu0 0
        %955 = vmatprep.subr.bf16.mxu0 0
        %956 = vmatpush1.bf16.xpose.msra.mxu0 0
        %957 = vmatprep.subr.bf16.mxu0 0
        %958 = vmatpush1.bf16.xpose.msra.mxu0 0
        %959 = vmatprep.subr.bf16.mxu0 0
        %960 = vmatpush1.bf16.xpose.msra.mxu0 0
        %961 = vmatprep.subr.bf16.mxu0 0
        %962 = vmatpush1.bf16.xpose.msra.mxu0 0
        %963 = vmatprep.subr.bf16.mxu0 0
        %964 = vmatpush1.bf16.xpose.msra.mxu0 0
        %965 = vmatprep.subr.bf16.mxu0 0
        %966 = vmatpush1.bf16.xpose.msra.mxu0 0
        %967 = vmatprep.subr.bf16.mxu0 0
        %968 = vmatpush1.bf16.xpose.msra.mxu0 0
        %969 = vmatprep.subr.bf16.mxu0 0
        %970 = vmatpush1.bf16.xpose.msra.mxu0 0
        %971 = vmatprep.subr.bf16.mxu0 0
        %972 = vmatpush1.bf16.xpose.msra.mxu0 0
        %973 = vmatprep.subr.bf16.mxu0 0
        %974 = vmatpush1.bf16.xpose.msra.mxu0 0
        %975 = vmatprep.mubr.bf16.mxu0 0
        %976 = vmatmul.mubr.bf16.gmra.mrb[0].mxu0 %v938
        %v977 = vpop.f32.mrb[0].mxu0
        %v978 = vadd.f32 0.0, %v977
        %v979 = vpop.f32.mrb[0].mxu0
        %v980 = vpop.f32.mrb[0].mxu0
        %v981 = vpop.f32.mrb[0].mxu0
        %982 = vdwg.mxu0
        %v983 = vmul.f32 %v928, 0.25
        %v984 = vmul.f32 %v978, 0.25
        %v985 = vadd.f32 %v983, %v652
        %v986 = vadd.f32 %v984, %v653
        %v987 = vsel %vm759, %v985, -inf
        %988 = vmax.xlane.f32.xlu0 %v987
        %v989 = vpop.xlane.xlu0 %988
        %v990 = vsel %vm759, %v986, -inf
        %991 = vmax.xlane.f32.xlu0 %v990
        %v992 = vpop.xlane.xlu0 %991
        %v993 = vsub.f32 %v985, %v989
        %v994 = vsub.f32 %v986, %v992
        %v995 = vmul.f32 %v993, 1.442695
        %v996 = vpow.pop %v995
        %v997 = vmul.f32 %v994, 1.442695
        %v998 = vpow.pop %v997
        %v999 = vsel %vm759, %v996, 0.0
        %1000 = vadd.xlane.f32.xlu0 %v999
        %v1001 = vpop.xlane.xlu0 %1000
        %v1002 = vsel %vm759, %v998, 0.0
        %1003 = vadd.xlane.f32.xlu0 %v1002
        %v1004 = vpop.xlane.xlu0 %1003
        %v1005 = vrcp.pop %v1001
        %v1006 = vrcp.pop %v1004
        %v1007 = vmul.f32 %v996, %v1005
        %v1008 = vmul.f32 %v998, %v1006
        %v1009 = vpack.c.bf16 %v1007, %v1007
        %v1010 = vpack.c.bf16 %v1008, %v1008
        %1011 = vrot.lane.b32.xlu0 %v654, 48
        %v1012 = vpop.permute.xlu0 %1011
        %v1014 = vsel %vm759, %v1009, 0
        %v1017 = vsel %vm789, %v1012, 0
        %1019 = vmatprep.subr.bf16.mxu0 0
        %1020 = vmatpush1.bf16.msra.mxu0 %v1017
        %1021 = vmatprep.subr.bf16.mxu0 0
        %1022 = vmatpush1.bf16.msra.mxu0 0
        %1023 = vmatprep.subr.bf16.mxu0 0
        %1024 = vmatpush1.bf16.msra.mxu0 0
        %1025 = vmatprep.subr.bf16.mxu0 0
        %1026 = vmatpush1.bf16.msra.mxu0 0
        %1027 = vmatprep.subr.bf16.mxu0 0
        %1028 = vmatpush1.bf16.msra.mxu0 0
        %1029 = vmatprep.subr.bf16.mxu0 0
        %1030 = vmatpush1.bf16.msra.mxu0 0
        %1031 = vmatprep.subr.bf16.mxu0 0
        %1032 = vmatpush1.bf16.msra.mxu0 0
        %1033 = vmatprep.subr.bf16.mxu0 0
        %1034 = vmatpush1.bf16.msra.mxu0 0
        %1035 = vmatprep.subr.bf16.mxu0 0
        %1036 = vmatpush1.bf16.msra.mxu0 0
        %1037 = vmatprep.subr.bf16.mxu0 0
        %1038 = vmatpush1.bf16.msra.mxu0 0
        %1039 = vmatprep.subr.bf16.mxu0 0
        %1040 = vmatpush1.bf16.msra.mxu0 0
        %1041 = vmatprep.subr.bf16.mxu0 0
        %1042 = vmatpush1.bf16.msra.mxu0 0
        %1043 = vmatprep.subr.bf16.mxu0 0
        %1044 = vmatpush1.bf16.msra.mxu0 0
        %1045 = vmatprep.subr.bf16.mxu0 0
        %1046 = vmatpush1.bf16.msra.mxu0 0
        %1047 = vmatprep.subr.bf16.mxu0 0
        %1048 = vmatpush1.bf16.msra.mxu0 0
        %1049 = vmatprep.subr.bf16.mxu0 0
        %1050 = vmatpush1.bf16.msra.mxu0 0
        %1051 = vmatprep.mubr.bf16.mxu0 0
        %1052 = vmatmul.mubr.bf16.gmra.mrb[0].mxu0 %v1014
        %v1053 = vpop.f32.mrb[0].mxu0
        %v1054 = vadd.f32 0.0, %v1053
        %v1055 = vpop.f32.mrb[0].mxu0
        %v1056 = vpop.f32.mrb[0].mxu0
        %v1057 = vpop.f32.mrb[0].mxu0
        %1058 = vdwg.mxu0
        %1059 = vrot.lane.b32.xlu0 %v655, 48
        %v1060 = vpop.permute.xlu0 %1059
        %v1062 = vsel %vm759, %v1010, 0
        %v1065 = vsel %vm789, %v1060, 0
        %1067 = vmatprep.subr.bf16.mxu0 0
        %1068 = vmatpush1.bf16.msra.mxu0 %v1065
        %1069 = vmatprep.subr.bf16.mxu0 0
        %1070 = vmatpush1.bf16.msra.mxu0 0
        %1071 = vmatprep.subr.bf16.mxu0 0
        %1072 = vmatpush1.bf16.msra.mxu0 0
        %1073 = vmatprep.subr.bf16.mxu0 0
        %1074 = vmatpush1.bf16.msra.mxu0 0
        %1075 = vmatprep.subr.bf16.mxu0 0
        %1076 = vmatpush1.bf16.msra.mxu0 0
        %1077 = vmatprep.subr.bf16.mxu0 0
        %1078 = vmatpush1.bf16.msra.mxu0 0
        %1079 = vmatprep.subr.bf16.mxu0 0
        %1080 = vmatpush1.bf16.msra.mxu0 0
        %1081 = vmatprep.subr.bf16.mxu0 0
        %1082 = vmatpush1.bf16.msra.mxu0 0
        %1083 = vmatprep.subr.bf16.mxu0 0
        %1084 = vmatpush1.bf16.msra.mxu0 0
        %1085 = vmatprep.subr.bf16.mxu0 0
        %1086 = vmatpush1.bf16.msra.mxu0 0
        %1087 = vmatprep.subr.bf16.mxu0 0
        %1088 = vmatpush1.bf16.msra.mxu0 0
        %1089 = vmatprep.subr.bf16.mxu0 0
        %1090 = vmatpush1.bf16.msra.mxu0 0
        %1091 = vmatprep.subr.bf16.mxu0 0
        %1092 = vmatpush1.bf16.msra.mxu0 0
        %1093 = vmatprep.subr.bf16.mxu0 0
        %1094 = vmatpush1.bf16.msra.mxu0 0
        %1095 = vmatprep.subr.bf16.mxu0 0
        %1096 = vmatpush1.bf16.msra.mxu0 0
        %1097 = vmatprep.subr.bf16.mxu0 0
        %1098 = vmatpush1.bf16.msra.mxu0 0
        %1099 = vmatprep.mubr.bf16.mxu0 0
        %1100 = vmatmul.mubr.bf16.gmra.mrb[0].mxu0 %v1062
        %v1101 = vpop.f32.mrb[0].mxu0
        %v1102 = vadd.f32 0.0, %v1101
        %v1103 = vpop.f32.mrb[0].mxu0
        %v1104 = vpop.f32.mrb[0].mxu0
        %v1105 = vpop.f32.mrb[0].mxu0
        %1106 = vdwg.mxu0
        %1109 = vrot.lane.b32.xlu0 %v1054, 16
        %v1110 = vpop.permute.xlu0 %1109
        %1111 = vrot.lane.b32.xlu0 %v1102, 16
        %v1112 = vpop.permute.xlu0 %1111
        %vm1115 = vcmask 261248
        %1116 = vst.msk [vmem:[#allocation2] sm:$0xff] %vm1115, %v1110
        %1117 = vst.msk [vmem:[#allocation2 + $0x8] sm:$0xff] %vm1115, %v1112
        %v1118 = vld [vmem:[#allocation2] sm:$0xff]
        %v1119 = vld [vmem:[#allocation2 + $0x8] sm:$0xff]
        %v1120 = vpack.c.bf16 %v1119, %v1118
        %v1121 = vld [vmem:[%s508] sm:$0xf]
        %v1122 = vld [vmem:[%s508 + $0x4] sm:$0xf]
        %v1123 = vld [vmem:[%s508 + $0x8] sm:$0xf]
        %v1124 = vld [vmem:[%s508 + $0xc] sm:$0xf]
        %v1125 = vlaneseq
        %v1126 = vshrl.u32 %v1125, 7
        %v1127 = vsub.s32 1, %v1126
        %v1128 = vrot.slane %v585, %v1127
        %v1133 = vunpack.c.l.b16 %v1121
        %v1134 = vunpack.c.l.b16 %v1122
        %v1135 = vunpack.c.l.b16 %v1123
        %v1136 = vunpack.c.l.b16 %v1124
        %v1137 = vpack.c.b16 %v1134, %v1133
        %v1138 = vpack.c.b16 %v1136, %v1135
        %v1142 = vsel %vm607, %v1120, 0
        %1144 = vmatprep.subr.bf16.mxu0 0
        %1145 = vmatpush1.bf16.msra.mxu0 %v1137
        %1146 = vmatprep.subr.bf16.mxu0 0
        %1147 = vmatpush1.bf16.msra.mxu0 %v1138
        %1148 = vmatprep.subr.bf16.mxu0 0
        %1149 = vmatpush1.bf16.msra.mxu0 0
        %1150 = vmatprep.subr.bf16.mxu0 0
        %1151 = vmatpush1.bf16.msra.mxu0 0
        %1152 = vmatprep.subr.bf16.mxu0 0
        %1153 = vmatpush1.bf16.msra.mxu0 0
        %1154 = vmatprep.subr.bf16.mxu0 0
        %1155 = vmatpush1.bf16.msra.mxu0 0
        %1156 = vmatprep.subr.bf16.mxu0 0
        %1157 = vmatpush1.bf16.msra.mxu0 0
        %1158 = vmatprep.subr.bf16.mxu0 0
        %1159 = vmatpush1.bf16.msra.mxu0 0
        %1160 = vmatprep.subr.bf16.mxu0 0
        %1161 = vmatpush1.bf16.msra.mxu0 0
        %1162 = vmatprep.subr.bf16.mxu0 0
        %1163 = vmatpush1.bf16.msra.mxu0 0
        %1164 = vmatprep.subr.bf16.mxu0 0
        %1165 = vmatpush1.bf16.msra.mxu0 0
        %1166 = vmatprep.subr.bf16.mxu0 0
        %1167 = vmatpush1.bf16.msra.mxu0 0
        %1168 = vmatprep.subr.bf16.mxu0 0
        %1169 = vmatpush1.bf16.msra.mxu0 0
        %1170 = vmatprep.subr.bf16.mxu0 0
        %1171 = vmatpush1.bf16.msra.mxu0 0
        %1172 = vmatprep.subr.bf16.mxu0 0
        %1173 = vmatpush1.bf16.msra.mxu0 0
        %1174 = vmatprep.subr.bf16.mxu0 0
        %1175 = vmatpush1.bf16.msra.mxu0 0
        %1176 = vmatprep.mubr.bf16.mxu0 0
        %1177 = vmatmul.mubr.bf16.gmra.mrb[0].mxu0 %v1142
        %v1178 = vpop.f32.mrb[0].mxu0
        %v1179 = vadd.f32 %v1128, %v1178
        %v1180 = vpop.f32.mrb[0].mxu0
        %v1181 = vpop.f32.mrb[0].mxu0
        %v1182 = vadd.f32 %v1128, %v1181
        %v1183 = vpop.f32.mrb[0].mxu0
        %1184 = vdwg.mxu0
        %v1185 = vadd.f32 %v583, %v1179
        %v1186 = vadd.f32 %v584, %v1182
        %v1187 = vsel %vm607, %v1185, 0.0
        %1188 = vadd.xlane.f32.xlu0 %v1187
        %v1189 = vpop.xlane.xlu0 %1188
        %v1190 = vsel %vm607, %v1186, 0.0
        %1191 = vadd.xlane.f32.xlu0 %v1190
        %v1192 = vpop.xlane.xlu0 %1191
        %v1193 = vrcp.pop 32.0
        %v1194 = vmul.f32 %v1189, %v1193
        %v1195 = vmul.f32 %v1192, %v1193
        %v1196 = vsub.f32 %v1185, %v1194
        %v1197 = vsub.f32 %v1186, %v1195
        %v1198 = vmul.f32 %v1196, %v1196
        %v1199 = vmul.f32 %v1197, %v1197
        %v1200 = vsel %vm607, %v1198, 0.0
        %1201 = vadd.xlane.f32.xlu0 %v1200
        %v1202 = vpop.xlane.xlu0 %1201
        %v1203 = vsel %vm607, %v1199, 0.0
        %1204 = vadd.xlane.f32.xlu0 %v1203
        %v1205 = vpop.xlane.xlu0 %1204
        %v1206 = vmul.f32 %v1202, %v1193
        %v1207 = vmul.f32 %v1205, %v1193
        %v1208 = vadd.f32 %v1206, 1e-12
        %v1209 = vadd.f32 %v1207, 1e-12
        %v1210 = vrsqrt.pop %v1208
        %v1211 = vrsqrt.pop %v1209
        %v1212 = vmul.f32 %v1196, %v1210
        %v1213 = vmul.f32 %v1197, %v1211
        %v1214 = vlaneseq
        %v1215 = vshrl.u32 %v1214, 7
        %v1216 = vsub.s32 2, %v1215
        %v1217 = vrot.slane %v585, %v1216
        %v1218 = vmul.f32 %v1212, %v1217
        %v1219 = vmul.f32 %v1213, %v1217
        %v1220 = vlaneseq
        %v1221 = vshrl.u32 %v1220, 7
        %v1222 = vsub.s32 3, %v1221
        %v1223 = vrot.slane %v585, %v1222
        %v1224 = vadd.f32 %v1218, %v1223
        %v1225 = vadd.f32 %v1219, %v1223
        %v1226 = vpack.c.bf16 %v1225, %v1224
        %v1227 = vld [vmem:[%s517] sm:$0xf]
        %v1228 = vld [vmem:[%s517 + $0x4] sm:$0xf]
        %v1229 = vld [vmem:[%s517 + $0x8] sm:$0xf]
        %v1230 = vld [vmem:[%s517 + $0xc] sm:$0xf]
        %v1231 = vlaneseq
        %v1232 = vshrl.u32 %v1231, 7
        %v1233 = vsub.s32 4, %v1232
        %v1234 = vrot.slane %v585, %v1233
        %v1239 = vunpack.c.l.b16 %v1227
        %v1240 = vunpack.c.l.b16 %v1228
        %v1241 = vunpack.c.l.b16 %v1229
        %v1242 = vunpack.c.l.b16 %v1230
        %v1243 = vpack.c.b16 %v1240, %v1239
        %v1244 = vpack.c.b16 %v1242, %v1241
        %v1248 = vsel %vm607, %v1226, 0
        %1250 = vmatprep.subr.bf16.mxu0 0
        %1251 = vmatpush1.bf16.msra.mxu0 %v1243
        %1252 = vmatprep.subr.bf16.mxu0 0
        %1253 = vmatpush1.bf16.msra.mxu0 %v1244
        %1254 = vmatprep.subr.bf16.mxu0 0
        %1255 = vmatpush1.bf16.msra.mxu0 0
        %1256 = vmatprep.subr.bf16.mxu0 0
        %1257 = vmatpush1.bf16.msra.mxu0 0
        %1258 = vmatprep.subr.bf16.mxu0 0
        %1259 = vmatpush1.bf16.msra.mxu0 0
        %1260 = vmatprep.subr.bf16.mxu0 0
        %1261 = vmatpush1.bf16.msra.mxu0 0
        %1262 = vmatprep.subr.bf16.mxu0 0
        %1263 = vmatpush1.bf16.msra.mxu0 0
        %1264 = vmatprep.subr.bf16.mxu0 0
        %1265 = vmatpush1.bf16.msra.mxu0 0
        %1266 = vmatprep.subr.bf16.mxu0 0
        %1267 = vmatpush1.bf16.msra.mxu0 0
        %1268 = vmatprep.subr.bf16.mxu0 0
        %1269 = vmatpush1.bf16.msra.mxu0 0
        %1270 = vmatprep.subr.bf16.mxu0 0
        %1271 = vmatpush1.bf16.msra.mxu0 0
        %1272 = vmatprep.subr.bf16.mxu0 0
        %1273 = vmatpush1.bf16.msra.mxu0 0
        %1274 = vmatprep.subr.bf16.mxu0 0
        %1275 = vmatpush1.bf16.msra.mxu0 0
        %1276 = vmatprep.subr.bf16.mxu0 0
        %1277 = vmatpush1.bf16.msra.mxu0 0
        %1278 = vmatprep.subr.bf16.mxu0 0
        %1279 = vmatpush1.bf16.msra.mxu0 0
        %1280 = vmatprep.subr.bf16.mxu0 0
        %1281 = vmatpush1.bf16.msra.mxu0 0
        %1282 = vmatprep.mubr.bf16.mxu0 0
        %1283 = vmatmul.mubr.bf16.gmra.mrb[0].mxu0 %v1248
        %v1284 = vpop.f32.mrb[0].mxu0
        %v1285 = vadd.f32 %v1234, %v1284
        %v1286 = vpop.f32.mrb[0].mxu0
        %v1287 = vpop.f32.mrb[0].mxu0
        %v1288 = vadd.f32 %v1234, %v1287
        %v1289 = vpop.f32.mrb[0].mxu0
        %1290 = vdwg.mxu0
        %v1291 = vmul.f32 %v1285, 0.5
        %v1292 = vmul.f32 %v1288, 0.5
        %v1293 = vmul.f32 %v1285, 0.70710677
        %v1294 = vmul.f32 %v1288, 0.70710677
        %v1295 = verf.f32.pop %v1293
        %v1296 = verf.f32.pop %v1294
        %v1297 = vadd.f32 %v1295, 1.0
        %v1298 = vadd.f32 %v1296, 1.0
        %v1299 = vmul.f32 %v1291, %v1297
        %v1300 = vmul.f32 %v1292, %v1298
        %v1301 = vpack.c.bf16 %v1300, %v1299
        %v1302 = vld [vmem:[%s526] sm:$0xf]
        %v1303 = vld [vmem:[%s526 + $0x4] sm:$0xf]
        %v1304 = vld [vmem:[%s526 + $0x8] sm:$0xf]
        %v1305 = vld [vmem:[%s526 + $0xc] sm:$0xf]
        %v1306 = vld [vmem:[%s526 + $0x10] sm:$0xf]
        %v1307 = vld [vmem:[%s526 + $0x14] sm:$0xf]
        %v1308 = vld [vmem:[%s526 + $0x18] sm:$0xf]
        %v1309 = vld [vmem:[%s526 + $0x1c] sm:$0xf]
        %v1310 = vlaneseq
        %v1311 = vshrl.u32 %v1310, 7
        %v1312 = vsub.s32 5, %v1311
        %v1313 = vrot.slane %v585, %v1312
        %v1322 = vunpack.c.l.b16 %v1302
        %v1323 = vunpack.c.l.b16 %v1303
        %v1324 = vunpack.c.l.b16 %v1304
        %v1325 = vunpack.c.l.b16 %v1305
        %v1326 = vunpack.c.l.b16 %v1306
        %v1327 = vunpack.c.l.b16 %v1307
        %v1328 = vunpack.c.l.b16 %v1308
        %v1329 = vunpack.c.l.b16 %v1309
        %v1330 = vpack.c.b16 %v1323, %v1322
        %v1331 = vpack.c.b16 %v1325, %v1324
        %v1332 = vpack.c.b16 %v1327, %v1326
        %v1333 = vpack.c.b16 %v1329, %v1328
        %vm1338 = vcmask 523264
        %v1340 = vsel %vm1338, %v1301, 0
        %1342 = vmatprep.subr.bf16.mxu0 0
        %1343 = vmatpush1.bf16.msra.mxu0 %v1330
        %1344 = vmatprep.subr.bf16.mxu0 0
        %1345 = vmatpush1.bf16.msra.mxu0 %v1331
        %1346 = vmatprep.subr.bf16.mxu0 0
        %1347 = vmatpush1.bf16.msra.mxu0 %v1332
        %1348 = vmatprep.subr.bf16.mxu0 0
        %1349 = vmatpush1.bf16.msra.mxu0 %v1333
        %1350 = vmatprep.subr.bf16.mxu0 0
        %1351 = vmatpush1.bf16.msra.mxu0 0
        %1352 = vmatprep.subr.bf16.mxu0 0
        %1353 = vmatpush1.bf16.msra.mxu0 0
        %1354 = vmatprep.subr.bf16.mxu0 0
        %1355 = vmatpush1.bf16.msra.mxu0 0
        %1356 = vmatprep.subr.bf16.mxu0 0
        %1357 = vmatpush1.bf16.msra.mxu0 0
        %1358 = vmatprep.subr.bf16.mxu0 0
        %1359 = vmatpush1.bf16.msra.mxu0 0
        %1360 = vmatprep.subr.bf16.mxu0 0
        %1361 = vmatpush1.bf16.msra.mxu0 0
        %1362 = vmatprep.subr.bf16.mxu0 0
        %1363 = vmatpush1.bf16.msra.mxu0 0
        %1364 = vmatprep.subr.bf16.mxu0 0
        %1365 = vmatpush1.bf16.msra.mxu0 0
        %1366 = vmatprep.subr.bf16.mxu0 0
        %1367 = vmatpush1.bf16.msra.mxu0 0
        %1368 = vmatprep.subr.bf16.mxu0 0
        %1369 = vmatpush1.bf16.msra.mxu0 0
        %1370 = vmatprep.subr.bf16.mxu0 0
        %1371 = vmatpush1.bf16.msra.mxu0 0
        %1372 = vmatprep.subr.bf16.mxu0 0
        %1373 = vmatpush1.bf16.msra.mxu0 0
        %1374 = vmatprep.mubr.bf16.mxu0 0
        %1375 = vmatmul.mubr.bf16.gmra.mrb[0].mxu0 %v1340
        %v1376 = vpop.f32.mrb[0].mxu0
        %v1377 = vadd.f32 %v1313, %v1376
        %v1378 = vpop.f32.mrb[0].mxu0
        %v1379 = vpop.f32.mrb[0].mxu0
        %v1380 = vadd.f32 %v1313, %v1379
        %v1381 = vpop.f32.mrb[0].mxu0
        %1382 = vdwg.mxu0
        %v1383 = vadd.f32 %v1224, %v1377
        %v1384 = vadd.f32 %v1225, %v1380
        %v1385 = vsel %vm607, %v1383, 0.0
        %1386 = vadd.xlane.f32.xlu0 %v1385
        %v1387 = vpop.xlane.xlu0 %1386
        %v1388 = vsel %vm607, %v1384, 0.0
        %1389 = vadd.xlane.f32.xlu0 %v1388
        %v1390 = vpop.xlane.xlu0 %1389
        %v1391 = vmul.f32 %v1387, %v1193
        %v1392 = vmul.f32 %v1390, %v1193
        %v1393 = vsub.f32 %v1383, %v1391
        %v1394 = vsub.f32 %v1384, %v1392
        %v1395 = vmul.f32 %v1393, %v1393
        %v1396 = vmul.f32 %v1394, %v1394
        %v1397 = vsel %vm607, %v1395, 0.0
        %1398 = vadd.xlane.f32.xlu0 %v1397
        %v1399 = vpop.xlane.xlu0 %1398
        %v1400 = vsel %vm607, %v1396, 0.0
        %1401 = vadd.xlane.f32.xlu0 %v1400
        %v1402 = vpop.xlane.xlu0 %1401
        %v1403 = vmul.f32 %v1399, %v1193
        %v1404 = vmul.f32 %v1402, %v1193
        %v1405 = vadd.f32 %v1403, 1e-12
        %v1406 = vadd.f32 %v1404, 1e-12
        %v1407 = vrsqrt.pop %v1405
        %v1408 = vrsqrt.pop %v1406
        %v1409 = vmul.f32 %v1393, %v1407
        %v1410 = vmul.f32 %v1394, %v1408
        %v1411 = vlaneseq
        %v1412 = vshrl.u32 %v1411, 7
        %v1413 = vsub.s32 6, %v1412
        %v1414 = vrot.slane %v585, %v1413
        %v1415 = vmul.f32 %v1409, %v1414
        %v1416 = vmul.f32 %v1410, %v1414
        %v1417 = vlaneseq
        %v1418 = vshrl.u32 %v1417, 7
        %v1419 = vsub.s32 7, %v1418
        %v1420 = vrot.slane %v585, %v1419
        %v1421 = vadd.f32 %v1415, %v1420
        %v1422 = vadd.f32 %v1416, %v1420
        %1423 = vst.msk [vmem:[%s531] sm:$0xff] %vm607, %v1421
        %1424 = vst.msk [vmem:[%s531 + $0x8] sm:$0xff] %vm607, %v1422
        %p1425 = scmp.lt.s32.totalorder %s29, 1
        %s1426 = scalar_select %p1425, %s29, 1
        %s1427 = smul.addr %s1426, 2
        %s1428 = smul.addr %s1427, 8
        %s1429 = scalar_lea.vmem %s8, %s1428
        // Predicated region
        $region65: #{mwp_forward.2} parent=51 // pred_check
          %p1430 = pneg %p268
        $region66: #{mwp_forward.2} parent=51 // pred_check_branch
          %1432 = sbr.rel (%p1430) target = $region68
        $region67: #{mwp_forward.2} parent=51 // pred_region
          _
        $region68: #{mwp_forward.2} parent=51 // pred_fallthru
          _
      $region52: #{mwp_forward.2} parent=5 // pred_fallthru
        _
      %p1433 = scmp.le.s32.totalorder 2, %s20
      // Predicated region
      $region69: #{mwp_forward.2} parent=5 // pred_check
        %p1434 = pneg %p1433
      $region70: #{mwp_forward.2} parent=5 // pred_check_branch
        %1436 = sbr.rel (%p1434) target = $region72
      $region71: #{mwp_forward.2} parent=5 // pred_region
        %s1437 = ssub.s32 %s20, 2
        // Predicated region
        $region73: #{mwp_forward.2} parent=71 // pred_check
          %p1438 = pneg %p274
        $region74: #{mwp_forward.2} parent=71 // pred_check_branch
          %1440 = sbr.rel (%p1438) target = $region76
        $region75: #{mwp_forward.2} parent=71 // pred_region
          %p1441 = scmp.lt.s32.totalorder %s31, 1
          %s1442 = scalar_select %p1441, %s31, 1
          %s1443 = smul.addr %s1442, 2
          %s1444 = smul.addr %s1443, 8
          %s1445 = scalar_lea.vmem %s8, %s1444
        $region76: #{mwp_forward.2} parent=71 // pred_fallthru
          _
      $region72: #{mwp_forward.2} parent=5 // pred_fallthru
        _
    $region6: #{mwp_forward.2} parent=1 // loop_footer
      %s24 = sadd.s32 1, %s20
    $region7: #{mwp_forward.2} parent=1 // loop_footer_branch
      %19 = sbr.rel target = $region3
    $region8: #{mwp_forward.2} parent=1 // loop_exit
      _
    %1446 = vsyncpa [#allocation4], 1
    %s1447 = scalar_lea.sflag [#allocation4], 1
    %1448 = vsyncpa %s1447, 1
    %1449 = vsyncpa [#allocation6], 1
    %s1450 = scalar_lea.sflag [#allocation6], 1
    %1451 = vsyncpa %s1450, 1

// kernel: mwp_forward.3
$region0: #{mwp_forward.3}
  #allocation0 [shape = 'u32[]', space=smem, size = 0x4, offset = 0x4, fixed_abs, tag = 'smem constant byte address 0x4 - core index']
  #allocation1 [shape = 'u32[144,128]{1,0:T(1,128)}', space=vmem, size = 0x12000, scoped, tag = 'internal scratch']
  #allocation2 [shape = 'f32[1,1]{1,0:T(1,128)S(1)}', space=vmem, size = 0x200, scoped, tag = 'scoped memory for mwp_forward.3']
  %s0 = inlined_call_operand.smem [shape: u32[35], index: -1, kind: input, shape index: {}]
  %s1 = sld [smem:[%s0]]
  %s2 = scalar_lea.smem %s0, 1
  %s3 = sld [smem:[%s2]]
  %s4 = scalar_lea.smem %s0, 2
  %s5 = sld [smem:[%s4]]
  %s6 = scalar_lea.smem %s0, 3
  %s7 = sld [smem:[%s6]]
  %s8 = scalar_lea.smem %s0, 4
  %s9 = sld [smem:[%s8]]
  %s10 = scalar_lea.smem %s0, 5
  %s11 = sld [smem:[%s10]]
  %s12 = scalar_lea.smem %s0, 6
  %s13 = sld [smem:[%s12]]
  %s14 = scalar_lea.smem %s0, 7
  %s15 = sld [smem:[%s14]]
  %s16 = scalar_lea.smem %s0, 8
  %s17 = sld [smem:[%s16]]
  %s18 = scalar_lea.smem %s0, 9
  %s19 = sld [smem:[%s18]]
  %s20 = scalar_lea.smem %s0, 10
  %s21 = sld [smem:[%s20]]
  %s22 = scalar_lea.smem %s0, 11
  %s23 = sld [smem:[%s22]]
  %s24 = scalar_lea.smem %s0, 12
  %s25 = sld [smem:[%s24]]
  %s26 = scalar_lea.smem %s0, 13
  %s27 = sld [smem:[%s26]]
  %s28 = scalar_lea.smem %s0, 14
  %s29 = sld [smem:[%s28]]
  %s30 = scalar_lea.smem %s0, 15
  %s31 = sld [smem:[%s30]]
  %s32 = scalar_lea.smem %s0, 16
  %s33 = sld [smem:[%s32]]
  %s34 = scalar_lea.smem %s0, 17
  %s35 = sld [smem:[%s34]]
  %s36 = scalar_lea.smem %s0, 18
  %s37 = sld [smem:[%s36]]
  %s38 = scalar_lea.smem %s0, 19
  %s39 = sld [smem:[%s38]]
  %s40 = scalar_lea.smem %s0, 20
  %s41 = sld [smem:[%s40]]
  %s42 = scalar_lea.smem %s0, 21
  %s43 = sld [smem:[%s42]]
  %s44 = scalar_lea.smem %s0, 22
  %s45 = sld [smem:[%s44]]
  %s46 = scalar_lea.smem %s0, 23
  %s47 = sld [smem:[%s46]]
  %s48 = scalar_lea.smem %s0, 24
  %s49 = sld [smem:[%s48]]
  %s50 = scalar_lea.smem %s0, 25
  %s51 = sld [smem:[%s50]]
  %s52 = scalar_lea.smem %s0, 26
  %s53 = sld [smem:[%s52]]
  %s54 = scalar_lea.smem %s0, 27
  %s55 = sld [smem:[%s54]]
  %s56 = scalar_lea.smem %s0, 28
  %s57 = sld [smem:[%s56]]
  %s58 = scalar_lea.smem %s0, 29
  %s59 = sld [smem:[%s58]]
  %s60 = scalar_lea.smem %s0, 30
  %s61 = sld [smem:[%s60]]
  %s62 = scalar_lea.smem %s0, 31
  %s63 = sld [smem:[%s62]]
  %s64 = scalar_lea.smem %s0, 32
  %s65 = sld [smem:[%s64]]
  %s66 = scalar_lea.smem %s0, 33
  %s67 = sld [smem:[%s66]]
  %s68 = scalar_lea.smem %s0, 34
  %s69 = sld [smem:[%s68]]
  %s70 = sld [smem:[#allocation0]]
  $region178: #{mwp_forward.3} parent=0
    _
  %s72 = ssub.s32 1, %s70
  %s73 = scalar_select 0, %s72, %s70
  %v74 = vstv %s47
  %75 = vst [vmem:[#allocation2] sm:$0x1] %v74
  $region1: #{mwp_forward.3} parent=0
    #allocation3 [shape = 'u8[512]{0}', space=vmem, size = 0x400, scoped, tag = 'input window, operand 13, single buffered']
    #allocation4 [shape = 's32[1]{0}', space=sflag, size = 0x4, scoped, tag = 'scoped memory for mwp_forward.3']
    #allocation5 [shape = 'u8[1024]{0}', space=vmem, size = 0x400, scoped, tag = 'input window, operand 19, single buffered']
    #allocation6 [shape = 's32[1]{0}', space=sflag, size = 0x4, scoped, tag = 'scoped memory for mwp_forward.3']
    #allocation7 [shape = 'u8[512]{0}', space=vmem, size = 0x400, scoped, tag = 'input window, operand 21, single buffered']
    #allocation8 [shape = 'u8[512]{0}', space=vmem, size = 0x400, scoped, tag = 'input window, operand 25, single buffered']
    #allocation9 [shape = 's32[1]{0}', space=sflag, size = 0x4, scoped, tag = 'scoped memory for mwp_forward.3']
    #allocation10 [shape = 'u8[16384]{0}', space=vmem, size = 0x4000, scoped, tag = 'input window, operand 28, single buffered']
    #allocation11 [shape = 'u8[512]{0}', space=vmem, size = 0x400, scoped, tag = 'input window, operand 29, single buffered']
    #allocation12 [shape = 's32[1]{0}', space=sflag, size = 0x4, scoped, tag = 'scoped memory for mwp_forward.3']
    #allocation13 [shape = 'u8[512]{0}', space=vmem, size = 0x400, scoped, tag = 'input window, operand 31, single buffered']
    #allocation14 [shape = 'u8[512]{0}', space=vmem, size = 0x400, scoped, tag = 'input window, operand 33, single buffered']
    #allocation15 [shape = 's32[1]{0}', space=sflag, size = 0x4, scoped, tag = 'scoped memory for mwp_forward.3']
    %76 = vsyncpa [#allocation4], 0
    %77 = vsyncpa [#allocation6], 0
    %78 = vsyncpa [#allocation9], 0
    %79 = vsyncpa [#allocation12], 0
    %80 = vsyncpa [#allocation15], 0
    // Predicated region
    $region2: #{mwp_forward.3} parent=1 // pred_check
      _
    $region3: #{mwp_forward.3} parent=1 // pred_check_branch
      %82 = sbr.rel (0) target = $region5
    $region4: #{mwp_forward.3} parent=1 // pred_region
      _
    $region5: #{mwp_forward.3} parent=1 // pred_fallthru
      _
    // Predicated region
    $region6: #{mwp_forward.3} parent=1 // pred_check
      _
    $region7: #{mwp_forward.3} parent=1 // pred_check_branch
      %84 = sbr.rel (0) target = $region9
    $region8: #{mwp_forward.3} parent=1 // pred_region
      _
    $region9: #{mwp_forward.3} parent=1 // pred_fallthru
      _
    // Predicated region
    $region10: #{mwp_forward.3} parent=1 // pred_check
      _
    $region11: #{mwp_forward.3} parent=1 // pred_check_branch
      %86 = sbr.rel (0) target = $region13
    $region12: #{mwp_forward.3} parent=1 // pred_region
      _
    $region13: #{mwp_forward.3} parent=1 // pred_fallthru
      _
    // Predicated region
    $region14: #{mwp_forward.3} parent=1 // pred_check
      _
    $region15: #{mwp_forward.3} parent=1 // pred_check_branch
      %88 = sbr.rel (0) target = $region17
    $region16: #{mwp_forward.3} parent=1 // pred_region
      _
    $region17: #{mwp_forward.3} parent=1 // pred_fallthru
      _
    // Predicated region
    $region18: #{mwp_forward.3} parent=1 // pred_check
      _
    $region19: #{mwp_forward.3} parent=1 // pred_check_branch
      %90 = sbr.rel (0) target = $region21
    $region20: #{mwp_forward.3} parent=1 // pred_region
      _
    $region21: #{mwp_forward.3} parent=1 // pred_fallthru
      _
    // Predicated region
    $region22: #{mwp_forward.3} parent=1 // pred_check
      _
    $region23: #{mwp_forward.3} parent=1 // pred_check_branch
      %92 = sbr.rel (0) target = $region25
    $region24: #{mwp_forward.3} parent=1 // pred_region
      _
    $region25: #{mwp_forward.3} parent=1 // pred_fallthru
      _
    // Predicated region
    $region26: #{mwp_forward.3} parent=1 // pred_check
      _
    $region27: #{mwp_forward.3} parent=1 // pred_check_branch
      %94 = sbr.rel (0) target = $region29
    $region28: #{mwp_forward.3} parent=1 // pred_region
      _
    $region29: #{mwp_forward.3} parent=1 // pred_fallthru
      _
    // Predicated region
    $region30: #{mwp_forward.3} parent=1 // pred_check
      _
    $region31: #{mwp_forward.3} parent=1 // pred_check_branch
      %96 = sbr.rel (0) target = $region33
    $region32: #{mwp_forward.3} parent=1 // pred_region
      _
    $region33: #{mwp_forward.3} parent=1 // pred_fallthru
      _
    // Predicated region
    $region34: #{mwp_forward.3} parent=1 // pred_check
      _
    $region35: #{mwp_forward.3} parent=1 // pred_check_branch
      %98 = sbr.rel (0) target = $region37
    $region36: #{mwp_forward.3} parent=1 // pred_region
      _
    $region37: #{mwp_forward.3} parent=1 // pred_fallthru
      _
    // Predicated region
    $region38: #{mwp_forward.3} parent=1 // pred_check
      _
    $region39: #{mwp_forward.3} parent=1 // pred_check_branch
      %100 = sbr.rel (0) target = $region41
    $region40: #{mwp_forward.3} parent=1 // pred_region
      _
    $region41: #{mwp_forward.3} parent=1 // pred_fallthru
      _
    // Predicated region
    $region42: #{mwp_forward.3} parent=1 // pred_check
      _
    $region43: #{mwp_forward.3} parent=1 // pred_check_branch
      %102 = sbr.rel (0) target = $region45
    $region44: #{mwp_forward.3} parent=1 // pred_region
      _
    $region45: #{mwp_forward.3} parent=1 // pred_fallthru
      _
    // Predicated region
    $region46: #{mwp_forward.3} parent=1 // pred_check
      _
    $region47: #{mwp_forward.3} parent=1 // pred_check_branch
      %104 = sbr.rel (0) target = $region49
    $region48: #{mwp_forward.3} parent=1 // pred_region
      _
    $region49: #{mwp_forward.3} parent=1 // pred_fallthru
      _
    // Predicated region
    $region50: #{mwp_forward.3} parent=1 // pred_check
      _
    $region51: #{mwp_forward.3} parent=1 // pred_check_branch
      %106 = sbr.rel (0) target = $region53
    $region52: #{mwp_forward.3} parent=1 // pred_region
      _
    $region53: #{mwp_forward.3} parent=1 // pred_fallthru
      _
    // Predicated region
    $region54: #{mwp_forward.3} parent=1 // pred_check
      _
    $region55: #{mwp_forward.3} parent=1 // pred_check_branch
      %108 = sbr.rel (0) target = $region57
    $region56: #{mwp_forward.3} parent=1 // pred_region
      %s110 = ssub.s32 16, 16
      %111 = vsyncadd [#allocation4], %s110
      %s113 = sshll.u32 [#allocation3], 4
      %s114 = int_to_ptr.vmem [resolvable:$true] %s113
      %116 = dma.hbm_to_vmem [thread:$0]  %s27, 16, %s114, [#allocation4]
    $region57: #{mwp_forward.3} parent=1 // pred_fallthru
      _
    // Predicated region
    $region58: #{mwp_forward.3} parent=1 // pred_check
      _
    $region59: #{mwp_forward.3} parent=1 // pred_check_branch
      %118 = sbr.rel (0) target = $region61
    $region60: #{mwp_forward.3} parent=1 // pred_region
      _
    $region61: #{mwp_forward.3} parent=1 // pred_fallthru
      _
    // Predicated region
    $region62: #{mwp_forward.3} parent=1 // pred_check
      _
    $region63: #{mwp_forward.3} parent=1 // pred_check_branch
      %120 = sbr.rel (0) target = $region65
    $region64: #{mwp_forward.3} parent=1 // pred_region
      _
    $region65: #{mwp_forward.3} parent=1 // pred_fallthru
      _
    // Predicated region
    $region66: #{mwp_forward.3} parent=1 // pred_check
      _
    $region67: #{mwp_forward.3} parent=1 // pred_check_branch
      %122 = sbr.rel (0) target = $region69
    $region68: #{mwp_forward.3} parent=1 // pred_region
      _
    $region69: #{mwp_forward.3} parent=1 // pred_fallthru
      _
    // Predicated region
    $region70: #{mwp_forward.3} parent=1 // pred_check
      _
    $region71: #{mwp_forward.3} parent=1 // pred_check_branch
      %124 = sbr.rel (0) target = $region73
    $region72: #{mwp_forward.3} parent=1 // pred_region
      _
    $region73: #{mwp_forward.3} parent=1 // pred_fallthru
      _
    // Predicated region
    $region74: #{mwp_forward.3} parent=1 // pred_check
      _
    $region75: #{mwp_forward.3} parent=1 // pred_check_branch
      %126 = sbr.rel (0) target = $region77
    $region76: #{mwp_forward.3} parent=1 // pred_region
      _
    $region77: #{mwp_forward.3} parent=1 // pred_fallthru
      _
    // Predicated region
    $region78: #{mwp_forward.3} parent=1 // pred_check
      _
    $region79: #{mwp_forward.3} parent=1 // pred_check_branch
      %128 = sbr.rel (0) target = $region81
    $region80: #{mwp_forward.3} parent=1 // pred_region
      %s130 = ssub.s32 32, 32
      %131 = vsyncadd [#allocation6], %s130
      %s133 = sshll.u32 [#allocation5], 4
      %s134 = int_to_ptr.vmem [resolvable:$true] %s133
      %136 = dma.hbm_to_vmem [thread:$0]  %s39, 32, %s134, [#allocation6]
    $region81: #{mwp_forward.3} parent=1 // pred_fallthru
      _
    // Predicated region
    $region82: #{mwp_forward.3} parent=1 // pred_check
      _
    $region83: #{mwp_forward.3} parent=1 // pred_check_branch
      %138 = sbr.rel (0) target = $region85
    $region84: #{mwp_forward.3} parent=1 // pred_region
      _
    $region85: #{mwp_forward.3} parent=1 // pred_fallthru
      _
    // Predicated region
    $region86: #{mwp_forward.3} parent=1 // pred_check
      _
    $region87: #{mwp_forward.3} parent=1 // pred_check_branch
      %140 = sbr.rel (0) target = $region89
    $region88: #{mwp_forward.3} parent=1 // pred_region
      %s142 = ssub.s32 16, 16
      %143 = vsyncadd [#allocation6], %s142
      %s145 = sshll.u32 [#allocation7], 4
      %s146 = int_to_ptr.vmem [resolvable:$true] %s145
      %148 = dma.hbm_to_vmem [thread:$0]  %s43, 16, %s146, [#allocation6]
    $region89: #{mwp_forward.3} parent=1 // pred_fallthru
      _
    // Predicated region
    $region90: #{mwp_forward.3} parent=1 // pred_check
      _
    $region91: #{mwp_forward.3} parent=1 // pred_check_branch
      %150 = sbr.rel (0) target = $region93
    $region92: #{mwp_forward.3} parent=1 // pred_region
      _
    $region93: #{mwp_forward.3} parent=1 // pred_fallthru
      _
    // Predicated region
    $region94: #{mwp_forward.3} parent=1 // pred_check
      _
    $region95: #{mwp_forward.3} parent=1 // pred_check_branch
      %152 = sbr.rel (0) target = $region97
    $region96: #{mwp_forward.3} parent=1 // pred_region
      _
    $region97: #{mwp_forward.3} parent=1 // pred_fallthru
      _
    // Predicated region
    $region98: #{mwp_forward.3} parent=1 // pred_check
      _
    $region99: #{mwp_forward.3} parent=1 // pred_check_branch
      %154 = sbr.rel (0) target = $region101
    $region100: #{mwp_forward.3} parent=1 // pred_region
      _
    $region101: #{mwp_forward.3} parent=1 // pred_fallthru
      _
    // Predicated region
    $region102: #{mwp_forward.3} parent=1 // pred_check
      _
    $region103: #{mwp_forward.3} parent=1 // pred_check_branch
      %156 = sbr.rel (0) target = $region105
    $region104: #{mwp_forward.3} parent=1 // pred_region
      %s158 = ssub.s32 16, 16
      %159 = vsyncadd [#allocation9], %s158
      %s161 = sshll.u32 [#allocation8], 4
      %s162 = int_to_ptr.vmem [resolvable:$true] %s161
      %164 = dma.hbm_to_vmem [thread:$0]  %s51, 16, %s162, [#allocation9]
    $region105: #{mwp_forward.3} parent=1 // pred_fallthru
      _
    // Predicated region
    $region106: #{mwp_forward.3} parent=1 // pred_check
      _
    $region107: #{mwp_forward.3} parent=1 // pred_check_branch
      %166 = sbr.rel (0) target = $region109
    $region108: #{mwp_forward.3} parent=1 // pred_region
      _
    $region109: #{mwp_forward.3} parent=1 // pred_fallthru
      _
    // Predicated region
    $region110: #{mwp_forward.3} parent=1 // pred_check
      _
    $region111: #{mwp_forward.3} parent=1 // pred_check_branch
      %168 = sbr.rel (0) target = $region113
    $region112: #{mwp_forward.3} parent=1 // pred_region
      _
    $region113: #{mwp_forward.3} parent=1 // pred_fallthru
      _
    // Predicated region
    $region114: #{mwp_forward.3} parent=1 // pred_check
      _
    $region115: #{mwp_forward.3} parent=1 // pred_check_branch
      %170 = sbr.rel (0) target = $region117
    $region116: #{mwp_forward.3} parent=1 // pred_region
      %s172 = ssub.s32 512, 512
      %173 = vsyncadd [#allocation9], %s172
      %s174 = sshll.u32 [#allocation10], 4
      %s175 = int_to_ptr.vmem [resolvable:$true] %s174
      %180 = dma.hbm_to_vmem [thread:$0]  %s57, 512, %s175, [#allocation9], 128, 128, 8
    $region117: #{mwp_forward.3} parent=1 // pred_fallthru
      _
    // Predicated region
    $region118: #{mwp_forward.3} parent=1 // pred_check
      _
    $region119: #{mwp_forward.3} parent=1 // pred_check_branch
      %182 = sbr.rel (0) target = $region121
    $region120: #{mwp_forward.3} parent=1 // pred_region
      %s184 = ssub.s32 16, 16
      %185 = vsyncadd [#allocation12], %s184
      %s187 = sshll.u32 [#allocation11], 4
      %s188 = int_to_ptr.vmem [resolvable:$true] %s187
      %190 = dma.hbm_to_vmem [thread:$0]  %s59, 16, %s188, [#allocation12]
    $region121: #{mwp_forward.3} parent=1 // pred_fallthru
      _
    // Predicated region
    $region122: #{mwp_forward.3} parent=1 // pred_check
      _
    $region123: #{mwp_forward.3} parent=1 // pred_check_branch
      %192 = sbr.rel (0) target = $region125
    $region124: #{mwp_forward.3} parent=1 // pred_region
      _
    $region125: #{mwp_forward.3} parent=1 // pred_fallthru
      _
    // Predicated region
    $region126: #{mwp_forward.3} parent=1 // pred_check
      _
    $region127: #{mwp_forward.3} parent=1 // pred_check_branch
      %194 = sbr.rel (0) target = $region129
    $region128: #{mwp_forward.3} parent=1 // pred_region
      %s196 = ssub.s32 16, 16
      %197 = vsyncadd [#allocation12], %s196
      %s199 = sshll.u32 [#allocation13], 4
      %s200 = int_to_ptr.vmem [resolvable:$true] %s199
      %202 = dma.hbm_to_vmem [thread:$0]  %s63, 16, %s200, [#allocation12]
    $region129: #{mwp_forward.3} parent=1 // pred_fallthru
      _
    // Predicated region
    $region130: #{mwp_forward.3} parent=1 // pred_check
      _
    $region131: #{mwp_forward.3} parent=1 // pred_check_branch
      %204 = sbr.rel (0) target = $region133
    $region132: #{mwp_forward.3} parent=1 // pred_region
      _
    $region133: #{mwp_forward.3} parent=1 // pred_fallthru
      _
    // Predicated region
    $region134: #{mwp_forward.3} parent=1 // pred_check
      _
    $region135: #{mwp_forward.3} parent=1 // pred_check_branch
      %206 = sbr.rel (0) target = $region137
    $region136: #{mwp_forward.3} parent=1 // pred_region
      %s208 = ssub.s32 16, 16
      %209 = vsyncadd [#allocation15], %s208
      %s211 = sshll.u32 [#allocation14], 4
      %s212 = int_to_ptr.vmem [resolvable:$true] %s211
      %214 = dma.hbm_to_vmem [thread:$0]  %s67, 16, %s212, [#allocation15]
    $region137: #{mwp_forward.3} parent=1 // pred_fallthru
      _
    // Predicated region
    $region138: #{mwp_forward.3} parent=1 // pred_check
      _
    $region139: #{mwp_forward.3} parent=1 // pred_check_branch
      %216 = sbr.rel (0) target = $region141
    $region140: #{mwp_forward.3} parent=1 // pred_region
      %217 = dma.done [#allocation4], 16
    $region141: #{mwp_forward.3} parent=1 // pred_fallthru
      _
    // Predicated region
    $region142: #{mwp_forward.3} parent=1 // pred_check
      _
    $region143: #{mwp_forward.3} parent=1 // pred_check_branch
      %219 = sbr.rel (0) target = $region145
    $region144: #{mwp_forward.3} parent=1 // pred_region
      %220 = dma.done [#allocation6], 32
    $region145: #{mwp_forward.3} parent=1 // pred_fallthru
      _
    // Predicated region
    $region146: #{mwp_forward.3} parent=1 // pred_check
      _
    $region147: #{mwp_forward.3} parent=1 // pred_check_branch
      %222 = sbr.rel (0) target = $region149
    $region148: #{mwp_forward.3} parent=1 // pred_region
      %223 = dma.done [#allocation6], 16
    $region149: #{mwp_forward.3} parent=1 // pred_fallthru
      _
    // Predicated region
    $region150: #{mwp_forward.3} parent=1 // pred_check
      _
    $region151: #{mwp_forward.3} parent=1 // pred_check_branch
      %225 = sbr.rel (0) target = $region153
    $region152: #{mwp_forward.3} parent=1 // pred_region
      %226 = dma.done [#allocation9], 16
    $region153: #{mwp_forward.3} parent=1 // pred_fallthru
      _
    // Predicated region
    $region154: #{mwp_forward.3} parent=1 // pred_check
      _
    $region155: #{mwp_forward.3} parent=1 // pred_check_branch
      %228 = sbr.rel (0) target = $region157
    $region156: #{mwp_forward.3} parent=1 // pred_region
      %229 = dma.done [#allocation9], 512
    $region157: #{mwp_forward.3} parent=1 // pred_fallthru
      _
    // Predicated region
    $region158: #{mwp_forward.3} parent=1 // pred_check
      _
    $region159: #{mwp_forward.3} parent=1 // pred_check_branch
      %231 = sbr.rel (0) target = $region161
    $region160: #{mwp_forward.3} parent=1 // pred_region
      %232 = dma.done [#allocation12], 16
    $region161: #{mwp_forward.3} parent=1 // pred_fallthru
      _
    // Predicated region
    $region162: #{mwp_forward.3} parent=1 // pred_check
      _
    $region163: #{mwp_forward.3} parent=1 // pred_check_branch
      %234 = sbr.rel (0) target = $region165
    $region164: #{mwp_forward.3} parent=1 // pred_region
      %235 = dma.done [#allocation12], 16
    $region165: #{mwp_forward.3} parent=1 // pred_fallthru
      _
    // Predicated region
    $region166: #{mwp_forward.3} parent=1 // pred_check
      _
    $region167: #{mwp_forward.3} parent=1 // pred_check_branch
      %237 = sbr.rel (0) target = $region169
    $region168: #{mwp_forward.3} parent=1 // pred_region
      %238 = dma.done [#allocation15], 16
    $region169: #{mwp_forward.3} parent=1 // pred_fallthru
      _
    %v239 = vld [vmem:[%s1] sm:$0x3]
    %v240 = vld [vmem:[%s5] sm:$0x3]
    %v241 = vld [vmem:[%s3] sm:$0x3]
    %v242 = vld [vmem:[%s11] sm:$0xff]
    %v243 = vld [vmem:[%s11 + $0x8] sm:$0xff]
    %v244 = vld [vmem:[%s11 + $0x10] sm:$0xff]
    %v245 = vld [vmem:[%s11 + $0x18] sm:$0xff]
    %v246 = vld [vmem:[%s13] sm:$0x1]
    %v248 = vlaneseq
    %v249 = vshrl.u32 %v248, 7
    %v250 = vsub.s32 0, %v249
    %v251 = vrot.slane %v246, %v250
    %vm253 = vcmask 261120
    %v255 = vsel %vm253, %v241, 0
    %257 = vmatprep.subr.mxu0 0.0
    %258 = vmatpush1.msra.mxu0 %v242
    %259 = vmatprep.subr.mxu0 0.0
    %260 = vmatpush1.msra.mxu0 %v243
    %261 = vmatprep.subr.mxu0 0.0
    %262 = vmatpush1.msra.mxu0 %v244
    %263 = vmatprep.subr.mxu0 0.0
    %264 = vmatpush1.msra.mxu0 %v245
    %265 = vmatprep.subr.mxu0 0.0
    %266 = vmatpush1.msra.mxu0 0.0
    %267 = vmatprep.subr.mxu0 0.0
    %268 = vmatpush1.msra.mxu0 0.0
    %269 = vmatprep.subr.mxu0 0.0
    %270 = vmatpush1.msra.mxu0 0.0
    %271 = vmatprep.subr.mxu0 0.0
    %272 = vmatpush1.msra.mxu0 0.0
    %273 = vmatprep.subr.mxu0 0.0
    %274 = vmatpush1.msra.mxu0 0.0
    %275 = vmatprep.subr.mxu0 0.0
    %276 = vmatpush1.msra.mxu0 0.0
    %277 = vmatprep.subr.mxu0 0.0
    %278 = vmatpush1.msra.mxu0 0.0
    %279 = vmatprep.subr.mxu0 0.0
    %280 = vmatpush1.msra.mxu0 0.0
    %281 = vmatprep.subr.mxu0 0.0
    %282 = vmatpush1.msra.mxu0 0.0
    %283 = vmatprep.subr.mxu0 0.0
    %284 = vmatpush1.msra.mxu0 0.0
    %285 = vmatprep.subr.mxu0 0.0
    %286 = vmatpush1.msra.mxu0 0.0
    %287 = vmatprep.subr.mxu0 0.0
    %288 = vmatpush1.msra.mxu0 0.0
    %289 = vmatprep.subr.mxu0 0.0
    %290 = vmatpush1.msra.mxu0 0.0
    %291 = vmatprep.subr.mxu0 0.0
    %292 = vmatpush1.msra.mxu0 0.0
    %293 = vmatprep.subr.mxu0 0.0
    %294 = vmatpush1.msra.mxu0 0.0
    %295 = vmatprep.subr.mxu0 0.0
    %296 = vmatpush1.msra.mxu0 0.0
    %297 = vmatprep.subr.mxu0 0.0
    %298 = vmatpush1.msra.mxu0 0.0
    %299 = vmatprep.subr.mxu0 0.0
    %300 = vmatpush1.msra.mxu0 0.0
    %301 = vmatprep.subr.mxu0 0.0
    %302 = vmatpush1.msra.mxu0 0.0
    %303 = vmatprep.subr.mxu0 0.0
    %304 = vmatpush1.msra.mxu0 0.0
    %305 = vmatprep.subr.mxu0 0.0
    %306 = vmatpush1.msra.mxu0 0.0
    %307 = vmatprep.subr.mxu0 0.0
    %308 = vmatpush1.msra.mxu0 0.0
    %309 = vmatprep.subr.mxu0 0.0
    %310 = vmatpush1.msra.mxu0 0.0
    %311 = vmatprep.subr.mxu0 0.0
    %312 = vmatpush1.msra.mxu0 0.0
    %313 = vmatprep.subr.mxu0 0.0
    %314 = vmatpush1.msra.mxu0 0.0
    %315 = vmatprep.subr.mxu0 0.0
    %316 = vmatpush1.msra.mxu0 0.0
    %317 = vmatprep.subr.mxu0 0.0
    %318 = vmatpush1.msra.mxu0 0.0
    %319 = vmatprep.subr.mxu0 0.0
    %320 = vmatpush1.msra.mxu0 0.0
    %321 = vmatprep.mubr.f32.mxu0 0.0
    %322 = vmatmul.mubr.f32.gmra.mrb[0].mxu0 %v255
    %v323 = vpop.f32.mrb[0].mxu0
    %v324 = vadd.f32 %v251, %v323
    %v325 = vpop.f32.mrb[0].mxu0
    %326 = vdwg.mxu0
    %v327 = vtanh.pop %v324
    %v328 = vld [vmem:[%s7] sm:$0x3]
    %v329 = vld [vmem:[%s15] sm:$0xff]
    %v330 = vld [vmem:[%s15 + $0x8] sm:$0xff]
    %v331 = vld [vmem:[%s15 + $0x10] sm:$0xff]
    %v332 = vld [vmem:[%s15 + $0x18] sm:$0xff]
    %v333 = vld [vmem:[%s17] sm:$0x1]
    %v335 = vlaneseq
    %v336 = vshrl.u32 %v335, 7
    %v337 = vsub.s32 0, %v336
    %v338 = vrot.slane %v333, %v337
    %v341 = vsel %vm253, %v328, 0
    %343 = vmatprep.subr.mxu0 0.0
    %344 = vmatpush1.msra.mxu0 %v329
    %345 = vmatprep.subr.mxu0 0.0
    %346 = vmatpush1.msra.mxu0 %v330
    %347 = vmatprep.subr.mxu0 0.0
    %348 = vmatpush1.msra.mxu0 %v331
    %349 = vmatprep.subr.mxu0 0.0
    %350 = vmatpush1.msra.mxu0 %v332
    %351 = vmatprep.subr.mxu0 0.0
    %352 = vmatpush1.msra.mxu0 0.0
    %353 = vmatprep.subr.mxu0 0.0
    %354 = vmatpush1.msra.mxu0 0.0
    %355 = vmatprep.subr.mxu0 0.0
    %356 = vmatpush1.msra.mxu0 0.0
    %357 = vmatprep.subr.mxu0 0.0
    %358 = vmatpush1.msra.mxu0 0.0
    %359 = vmatprep.subr.mxu0 0.0
    %360 = vmatpush1.msra.mxu0 0.0
    %361 = vmatprep.subr.mxu0 0.0
    %362 = vmatpush1.msra.mxu0 0.0
    %363 = vmatprep.subr.mxu0 0.0
    %364 = vmatpush1.msra.mxu0 0.0
    %365 = vmatprep.subr.mxu0 0.0
    %366 = vmatpush1.msra.mxu0 0.0
    %367 = vmatprep.subr.mxu0 0.0
    %368 = vmatpush1.msra.mxu0 0.0
    %369 = vmatprep.subr.mxu0 0.0
    %370 = vmatpush1.msra.mxu0 0.0
    %371 = vmatprep.subr.mxu0 0.0
    %372 = vmatpush1.msra.mxu0 0.0
    %373 = vmatprep.subr.mxu0 0.0
    %374 = vmatpush1.msra.mxu0 0.0
    %375 = vmatprep.subr.mxu0 0.0
    %376 = vmatpush1.msra.mxu0 0.0
    %377 = vmatprep.subr.mxu0 0.0
    %378 = vmatpush1.msra.mxu0 0.0
    %379 = vmatprep.subr.mxu0 0.0
    %380 = vmatpush1.msra.mxu0 0.0
    %381 = vmatprep.subr.mxu0 0.0
    %382 = vmatpush1.msra.mxu0 0.0
    %383 = vmatprep.subr.mxu0 0.0
    %384 = vmatpush1.msra.mxu0 0.0
    %385 = vmatprep.subr.mxu0 0.0
    %386 = vmatpush1.msra.mxu0 0.0
    %387 = vmatprep.subr.mxu0 0.0
    %388 = vmatpush1.msra.mxu0 0.0
    %389 = vmatprep.subr.mxu0 0.0
    %390 = vmatpush1.msra.mxu0 0.0
    %391 = vmatprep.subr.mxu0 0.0
    %392 = vmatpush1.msra.mxu0 0.0
    %393 = vmatprep.subr.mxu0 0.0
    %394 = vmatpush1.msra.mxu0 0.0
    %395 = vmatprep.subr.mxu0 0.0
    %396 = vmatpush1.msra.mxu0 0.0
    %397 = vmatprep.subr.mxu0 0.0
    %398 = vmatpush1.msra.mxu0 0.0
    %399 = vmatprep.subr.mxu0 0.0
    %400 = vmatpush1.msra.mxu0 0.0
    %401 = vmatprep.subr.mxu0 0.0
    %402 = vmatpush1.msra.mxu0 0.0
    %403 = vmatprep.subr.mxu0 0.0
    %404 = vmatpush1.msra.mxu0 0.0
    %405 = vmatprep.subr.mxu0 0.0
    %406 = vmatpush1.msra.mxu0 0.0
    %407 = vmatprep.mubr.f32.mxu0 0.0
    %408 = vmatmul.mubr.f32.gmra.mrb[0].mxu0 %v341
    %v409 = vpop.f32.mrb[0].mxu0
    %v410 = vadd.f32 %v338, %v409
    %v411 = vpop.f32.mrb[0].mxu0
    %412 = vdwg.mxu0
    %v413 = vtanh.pop %v410
    %v414 = vld [vmem:[%s19] sm:$0xff]
    %v415 = vld [vmem:[%s19 + $0x8] sm:$0xff]
    %v416 = vld [vmem:[%s19 + $0x10] sm:$0xff]
    %v417 = vld [vmem:[%s19 + $0x18] sm:$0xff]
    %v418 = vld [vmem:[%s21] sm:$0xff]
    %v419 = vld [vmem:[%s21 + $0x8] sm:$0xff]
    %v420 = vld [vmem:[%s21 + $0x10] sm:$0xff]
    %v421 = vld [vmem:[%s21 + $0x18] sm:$0xff]
    %v423 = vsel %vm253, %v327, 0
    %425 = vmatprep.subr.mxu0 0.0
    %426 = vmatpush1.msra.mxu0 %v418
    %427 = vmatprep.subr.mxu0 0.0
    %428 = vmatpush1.msra.mxu0 %v419
    %429 = vmatprep.subr.mxu0 0.0
    %430 = vmatpush1.msra.mxu0 %v420
    %431 = vmatprep.subr.mxu0 0.0
    %432 = vmatpush1.msra.mxu0 %v421
    %433 = vmatprep.subr.mxu0 0.0
    %434 = vmatpush1.msra.mxu0 0.0
    %435 = vmatprep.subr.mxu0 0.0
    %436 = vmatpush1.msra.mxu0 0.0
    %437 = vmatprep.subr.mxu0 0.0
    %438 = vmatpush1.msra.mxu0 0.0
    %439 = vmatprep.subr.mxu0 0.0
    %440 = vmatpush1.msra.mxu0 0.0
    %441 = vmatprep.subr.mxu0 0.0
    %442 = vmatpush1.msra.mxu0 0.0
    %443 = vmatprep.subr.mxu0 0.0
    %444 = vmatpush1.msra.mxu0 0.0
    %445 = vmatprep.subr.mxu0 0.0
    %446 = vmatpush1.msra.mxu0 0.0
    %447 = vmatprep.subr.mxu0 0.0
    %448 = vmatpush1.msra.mxu0 0.0
    %449 = vmatprep.subr.mxu0 0.0
    %450 = vmatpush1.msra.mxu0 0.0
    %451 = vmatprep.subr.mxu0 0.0
    %452 = vmatpush1.msra.mxu0 0.0
    %453 = vmatprep.subr.mxu0 0.0
    %454 = vmatpush1.msra.mxu0 0.0
    %455 = vmatprep.subr.mxu0 0.0
    %456 = vmatpush1.msra.mxu0 0.0
    %457 = vmatprep.subr.mxu0 0.0
    %458 = vmatpush1.msra.mxu0 0.0
    %459 = vmatprep.subr.mxu0 0.0
    %460 = vmatpush1.msra.mxu0 0.0
    %461 = vmatprep.subr.mxu0 0.0
    %462 = vmatpush1.msra.mxu0 0.0
    %463 = vmatprep.subr.mxu0 0.0
    %464 = vmatpush1.msra.mxu0 0.0
    %465 = vmatprep.subr.mxu0 0.0
    %466 = vmatpush1.msra.mxu0 0.0
    %467 = vmatprep.subr.mxu0 0.0
    %468 = vmatpush1.msra.mxu0 0.0
    %469 = vmatprep.subr.mxu0 0.0
    %470 = vmatpush1.msra.mxu0 0.0
    %471 = vmatprep.subr.mxu0 0.0
    %472 = vmatpush1.msra.mxu0 0.0
    %473 = vmatprep.subr.mxu0 0.0
    %474 = vmatpush1.msra.mxu0 0.0
    %475 = vmatprep.subr.mxu0 0.0
    %476 = vmatpush1.msra.mxu0 0.0
    %477 = vmatprep.subr.mxu0 0.0
    %478 = vmatpush1.msra.mxu0 0.0
    %479 = vmatprep.subr.mxu0 0.0
    %480 = vmatpush1.msra.mxu0 0.0
    %481 = vmatprep.subr.mxu0 0.0
    %482 = vmatpush1.msra.mxu0 0.0
    %483 = vmatprep.subr.mxu0 0.0
    %484 = vmatpush1.msra.mxu0 0.0
    %485 = vmatprep.subr.mxu0 0.0
    %486 = vmatpush1.msra.mxu0 0.0
    %487 = vmatprep.subr.mxu0 0.0
    %488 = vmatpush1.msra.mxu0 0.0
    %489 = vmatprep.mubr.f32.mxu0 0.0
    %490 = vmatmul.mubr.f32.gmra.mrb[0].mxu0 %v423
    %v491 = vpop.f32.mrb[0].mxu0
    %v492 = vadd.f32 0.0, %v491
    %v493 = vpop.f32.mrb[0].mxu0
    %494 = vdwg.mxu0
    %v496 = vsel %vm253, %v239, 0
    %498 = vmatprep.subr.mxu0 0.0
    %499 = vmatpush1.msra.mxu0 %v414
    %500 = vmatprep.subr.mxu0 0.0
    %501 = vmatpush1.msra.mxu0 %v415
    %502 = vmatprep.subr.mxu0 0.0
    %503 = vmatpush1.msra.mxu0 %v416
    %504 = vmatprep.subr.mxu0 0.0
    %505 = vmatpush1.msra.mxu0 %v417
    %506 = vmatprep.subr.mxu0 0.0
    %507 = vmatpush1.msra.mxu0 0.0
    %508 = vmatprep.subr.mxu0 0.0
    %509 = vmatpush1.msra.mxu0 0.0
    %510 = vmatprep.subr.mxu0 0.0
    %511 = vmatpush1.msra.mxu0 0.0
    %512 = vmatprep.subr.mxu0 0.0
    %513 = vmatpush1.msra.mxu0 0.0
    %514 = vmatprep.subr.mxu0 0.0
    %515 = vmatpush1.msra.mxu0 0.0
    %516 = vmatprep.subr.mxu0 0.0
    %517 = vmatpush1.msra.mxu0 0.0
    %518 = vmatprep.subr.mxu0 0.0
    %519 = vmatpush1.msra.mxu0 0.0
    %520 = vmatprep.subr.mxu0 0.0
    %521 = vmatpush1.msra.mxu0 0.0
    %522 = vmatprep.subr.mxu0 0.0
    %523 = vmatpush1.msra.mxu0 0.0
    %524 = vmatprep.subr.mxu0 0.0
    %525 = vmatpush1.msra.mxu0 0.0
    %526 = vmatprep.subr.mxu0 0.0
    %527 = vmatpush1.msra.mxu0 0.0
    %528 = vmatprep.subr.mxu0 0.0
    %529 = vmatpush1.msra.mxu0 0.0
    %530 = vmatprep.subr.mxu0 0.0
    %531 = vmatpush1.msra.mxu0 0.0
    %532 = vmatprep.subr.mxu0 0.0
    %533 = vmatpush1.msra.mxu0 0.0
    %534 = vmatprep.subr.mxu0 0.0
    %535 = vmatpush1.msra.mxu0 0.0
    %536 = vmatprep.subr.mxu0 0.0
    %537 = vmatpush1.msra.mxu0 0.0
    %538 = vmatprep.subr.mxu0 0.0
    %539 = vmatpush1.msra.mxu0 0.0
    %540 = vmatprep.subr.mxu0 0.0
    %541 = vmatpush1.msra.mxu0 0.0
    %542 = vmatprep.subr.mxu0 0.0
    %543 = vmatpush1.msra.mxu0 0.0
    %544 = vmatprep.subr.mxu0 0.0
    %545 = vmatpush1.msra.mxu0 0.0
    %546 = vmatprep.subr.mxu0 0.0
    %547 = vmatpush1.msra.mxu0 0.0
    %548 = vmatprep.subr.mxu0 0.0
    %549 = vmatpush1.msra.mxu0 0.0
    %550 = vmatprep.subr.mxu0 0.0
    %551 = vmatpush1.msra.mxu0 0.0
    %552 = vmatprep.subr.mxu0 0.0
    %553 = vmatpush1.msra.mxu0 0.0
    %554 = vmatprep.subr.mxu0 0.0
    %555 = vmatpush1.msra.mxu0 0.0
    %556 = vmatprep.subr.mxu0 0.0
    %557 = vmatpush1.msra.mxu0 0.0
    %558 = vmatprep.subr.mxu0 0.0
    %559 = vmatpush1.msra.mxu0 0.0
    %560 = vmatprep.subr.mxu0 0.0
    %561 = vmatpush1.msra.mxu0 0.0
    %562 = vmatprep.mubr.f32.mxu0 0.0
    %563 = vmatmul.mubr.f32.gmra.mrb[0].mxu0 %v496
    %v564 = vpop.f32.mrb[0].mxu0
    %v565 = vadd.f32 %v492, %v564
    %v566 = vpop.f32.mrb[0].mxu0
    %567 = vdwg.mxu0
    %v568 = vld [vmem:[%s23] sm:$0x1]
    %v570 = vlaneseq
    %v571 = vshrl.u32 %v570, 7
    %v572 = vsub.s32 0, %v571
    %v573 = vrot.slane %v568, %v572
    %v575 = vadd.f32 %v565, %v573
    %v576 = vround.ne.pseudo %v575
    %v577 = vld [vmem:[%s9] sm:$0x3]
    %vm578 = vcmp.eq.f32.partialorder %v576, %v577
    %v579 = vsel %vm578, 1.0, 0.0
    %vm580 = vcmask 58368
    %v581 = vsel %vm580, %v579, inf
    %582 = vmin.xlane.f32.xlu0 %v581
    %v583 = vpop.xlane.xlu0 %582
    %v584 = vld [vmem:[%s25] sm:$0xff]
    %v585 = vld [vmem:[#allocation3] sm:$0x1]
    %v587 = vlaneseq
    %v588 = vshrl.u32 %v587, 7
    %v589 = vsub.s32 0, %v588
    %v590 = vrot.slane %v585, %v589
    %vm592 = vcmask 64512
    %v594 = vsel %vm592, %v576, 0
    %596 = vmatprep.subr.mxu0 0.0
    %597 = vmatpush1.msra.mxu0 %v584
    %598 = vmatprep.subr.mxu0 0.0
    %599 = vmatpush1.msra.mxu0 0.0
    %600 = vmatprep.subr.mxu0 0.0
    %601 = vmatpush1.msra.mxu0 0.0
    %602 = vmatprep.subr.mxu0 0.0
    %603 = vmatpush1.msra.mxu0 0.0
    %604 = vmatprep.subr.mxu0 0.0
    %605 = vmatpush1.msra.mxu0 0.0
    %606 = vmatprep.subr.mxu0 0.0
    %607 = vmatpush1.msra.mxu0 0.0
    %608 = vmatprep.subr.mxu0 0.0
    %609 = vmatpush1.msra.mxu0 0.0
    %610 = vmatprep.subr.mxu0 0.0
    %611 = vmatpush1.msra.mxu0 0.0
    %612 = vmatprep.subr.mxu0 0.0
    %613 = vmatpush1.msra.mxu0 0.0
    %614 = vmatprep.subr.mxu0 0.0
    %615 = vmatpush1.msra.mxu0 0.0
    %616 = vmatprep.subr.mxu0 0.0
    %617 = vmatpush1.msra.mxu0 0.0
    %618 = vmatprep.subr.mxu0 0.0
    %619 = vmatpush1.msra.mxu0 0.0
    %620 = vmatprep.subr.mxu0 0.0
    %621 = vmatpush1.msra.mxu0 0.0
    %622 = vmatprep.subr.mxu0 0.0
    %623 = vmatpush1.msra.mxu0 0.0
    %624 = vmatprep.subr.mxu0 0.0
    %625 = vmatpush1.msra.mxu0 0.0
    %626 = vmatprep.subr.mxu0 0.0
    %627 = vmatpush1.msra.mxu0 0.0
    %628 = vmatprep.subr.mxu0 0.0
    %629 = vmatpush1.msra.mxu0 0.0
    %630 = vmatprep.subr.mxu0 0.0
    %631 = vmatpush1.msra.mxu0 0.0
    %632 = vmatprep.subr.mxu0 0.0
    %633 = vmatpush1.msra.mxu0 0.0
    %634 = vmatprep.subr.mxu0 0.0
    %635 = vmatpush1.msra.mxu0 0.0
    %636 = vmatprep.subr.mxu0 0.0
    %637 = vmatpush1.msra.mxu0 0.0
    %638 = vmatprep.subr.mxu0 0.0
    %639 = vmatpush1.msra.mxu0 0.0
    %640 = vmatprep.subr.mxu0 0.0
    %641 = vmatpush1.msra.mxu0 0.0
    %642 = vmatprep.subr.mxu0 0.0
    %643 = vmatpush1.msra.mxu0 0.0
    %644 = vmatprep.subr.mxu0 0.0
    %645 = vmatpush1.msra.mxu0 0.0
    %646 = vmatprep.subr.mxu0 0.0
    %647 = vmatpush1.msra.mxu0 0.0
    %648 = vmatprep.subr.mxu0 0.0
    %649 = vmatpush1.msra.mxu0 0.0
    %650 = vmatprep.subr.mxu0 0.0
    %651 = vmatpush1.msra.mxu0 0.0
    %652 = vmatprep.subr.mxu0 0.0
    %653 = vmatpush1.msra.mxu0 0.0
    %654 = vmatprep.subr.mxu0 0.0
    %655 = vmatpush1.msra.mxu0 0.0
    %656 = vmatprep.subr.mxu0 0.0
    %657 = vmatpush1.msra.mxu0 0.0
    %658 = vmatprep.subr.mxu0 0.0
    %659 = vmatpush1.msra.mxu0 0.0
    %660 = vmatprep.mubr.f32.mxu0 0.0
    %661 = vmatmul.mubr.f32.gmra.mrb[0].mxu0 %v594
    %v662 = vpop.f32.mrb[0].mxu0
    %v663 = vadd.f32 %v590, %v662
    %v664 = vpop.f32.mrb[0].mxu0
    %665 = vdwg.mxu0
    %v666 = vld [vmem:[%s29] sm:$0xff]
    %v667 = vld [vmem:[%s29 + $0x8] sm:$0xff]
    %v668 = vld [vmem:[%s29 + $0x10] sm:$0xff]
    %v669 = vld [vmem:[%s29 + $0x18] sm:$0xff]
    %v670 = vld [vmem:[%s29 + $0x20] sm:$0xff]
    %v671 = vld [vmem:[%s29 + $0x28] sm:$0xff]
    %v672 = vld [vmem:[%s29 + $0x30] sm:$0xff]
    %v673 = vld [vmem:[%s29 + $0x38] sm:$0xff]
    %v674 = vld [vmem:[%s29 + $0x40] sm:$0xff]
    %v675 = vld [vmem:[%s29 + $0x48] sm:$0xff]
    %v676 = vld [vmem:[%s29 + $0x50] sm:$0xff]
    %v677 = vld [vmem:[%s29 + $0x58] sm:$0xff]
    %v678 = vld [vmem:[%s29 + $0x60] sm:$0xff]
    %v679 = vld [vmem:[%s29 + $0x68] sm:$0xff]
    %v680 = vld [vmem:[%s29 + $0x70] sm:$0xff]
    %v681 = vld [vmem:[%s29 + $0x78] sm:$0xff]
    %v682 = vld [vmem:[%s31] sm:$0xff]
    %v683 = vld [vmem:[%s31 + $0x8] sm:$0xff]
    %v684 = vld [vmem:[%s31 + $0x10] sm:$0xff]
    %v685 = vld [vmem:[%s31 + $0x18] sm:$0xff]
    %v686 = vld [vmem:[%s31 + $0x20] sm:$0xff]
    %v687 = vld [vmem:[%s31 + $0x28] sm:$0xff]
    %v688 = vld [vmem:[%s31 + $0x30] sm:$0xff]
    %v689 = vld [vmem:[%s31 + $0x38] sm:$0xff]
    %v690 = vld [vmem:[%s31 + $0x40] sm:$0xff]
    %v691 = vld [vmem:[%s31 + $0x48] sm:$0xff]
    %v692 = vld [vmem:[%s31 + $0x50] sm:$0xff]
    %v693 = vld [vmem:[%s31 + $0x58] sm:$0xff]
    %v694 = vld [vmem:[%s31 + $0x60] sm:$0xff]
    %v695 = vld [vmem:[%s31 + $0x68] sm:$0xff]
    %v696 = vld [vmem:[%s31 + $0x70] sm:$0xff]
    %v697 = vld [vmem:[%s31 + $0x78] sm:$0xff]
    %698 = vmatprep.subr.mxu0 %v683
    %699 = vmatpush1.msra.mxu0 %v682
    %700 = vmatprep.subr.mxu0 %v687
    %701 = vmatpush1.msra.mxu0 %v686
    %702 = vmatprep.subr.mxu0 %v691
    %703 = vmatpush1.msra.mxu0 %v690
    %704 = vmatprep.subr.mxu0 %v695
    %705 = vmatpush1.msra.mxu0 %v694
    %706 = vmatprep.subr.mxu0 0.0
    %707 = vmatpush1.msra.mxu0 0.0
    %708 = vmatprep.subr.mxu0 0.0
    %709 = vmatpush1.msra.mxu0 0.0
    %710 = vmatprep.subr.mxu0 0.0
    %711 = vmatpush1.msra.mxu0 0.0
    %712 = vmatprep.subr.mxu0 0.0
    %713 = vmatpush1.msra.mxu0 0.0
    %714 = vmatprep.subr.mxu0 0.0
    %715 = vmatpush1.msra.mxu0 0.0
    %716 = vmatprep.subr.mxu0 0.0
    %717 = vmatpush1.msra.mxu0 0.0
    %718 = vmatprep.subr.mxu0 0.0
    %719 = vmatpush1.msra.mxu0 0.0
    %720 = vmatprep.subr.mxu0 0.0
    %721 = vmatpush1.msra.mxu0 0.0
    %722 = vmatprep.subr.mxu0 0.0
    %723 = vmatpush1.msra.mxu0 0.0
    %724 = vmatprep.subr.mxu0 0.0
    %725 = vmatpush1.msra.mxu0 0.0
    %726 = vmatprep.subr.mxu0 0.0
    %727 = vmatpush1.msra.mxu0 0.0
    %728 = vmatprep.subr.mxu0 0.0
    %729 = vmatpush1.msra.mxu0 0.0
    %730 = vmatprep.subr.mxu0 0.0
    %731 = vmatpush1.msra.mxu0 0.0
    %732 = vmatprep.subr.mxu0 0.0
    %733 = vmatpush1.msra.mxu0 0.0
    %734 = vmatprep.subr.mxu0 0.0
    %735 = vmatpush1.msra.mxu0 0.0
    %736 = vmatprep.subr.mxu0 0.0
    %737 = vmatpush1.msra.mxu0 0.0
    %738 = vmatprep.subr.mxu0 0.0
    %739 = vmatpush1.msra.mxu0 0.0
    %740 = vmatprep.subr.mxu0 0.0
    %741 = vmatpush1.msra.mxu0 0.0
    %742 = vmatprep.subr.mxu0 0.0
    %743 = vmatpush1.msra.mxu0 0.0
    %744 = vmatprep.subr.mxu0 0.0
    %745 = vmatpush1.msra.mxu0 0.0
    %746 = vmatprep.subr.mxu0 0.0
    %747 = vmatpush1.msra.mxu0 0.0
    %748 = vmatprep.subr.mxu0 0.0
    %749 = vmatpush1.msra.mxu0 0.0
    %750 = vmatprep.subr.mxu0 0.0
    %751 = vmatpush1.msra.mxu0 0.0
    %752 = vmatprep.subr.mxu0 0.0
    %753 = vmatpush1.msra.mxu0 0.0
    %754 = vmatprep.subr.mxu0 0.0
    %755 = vmatpush1.msra.mxu0 0.0
    %756 = vmatprep.subr.mxu0 0.0
    %757 = vmatpush1.msra.mxu0 0.0
    %758 = vmatprep.subr.mxu0 0.0
    %759 = vmatpush1.msra.mxu0 0.0
    %760 = vmatprep.subr.mxu0 0.0
    %761 = vmatpush1.msra.mxu0 0.0
    %762 = vmatprep.mubr.f32.mxu0 0.0
    %763 = vmatmul.mubr.f32.gmra.mrb[0].mxu0 %v423
    %v764 = vpop.f32.mrb[0].mxu0
    %v765 = vadd.f32 0.0, %v764
    %v766 = vpop.f32.mrb[0].mxu0
    %v767 = vadd.f32 0.0, %v766
    %768 = vdwg.mxu0
    %769 = vmatprep.subr.mxu0 %v685
    %770 = vmatpush1.msra.mxu0 %v684
    %771 = vmatprep.subr.mxu0 %v689
    %772 = vmatpush1.msra.mxu0 %v688
    %773 = vmatprep.subr.mxu0 %v693
    %774 = vmatpush1.msra.mxu0 %v692
    %775 = vmatprep.subr.mxu0 %v697
    %776 = vmatpush1.msra.mxu0 %v696
    %777 = vmatprep.subr.mxu0 0.0
    %778 = vmatpush1.msra.mxu0 0.0
    %779 = vmatprep.subr.mxu0 0.0
    %780 = vmatpush1.msra.mxu0 0.0
    %781 = vmatprep.subr.mxu0 0.0
    %782 = vmatpush1.msra.mxu0 0.0
    %783 = vmatprep.subr.mxu0 0.0
    %784 = vmatpush1.msra.mxu0 0.0
    %785 = vmatprep.subr.mxu0 0.0
    %786 = vmatpush1.msra.mxu0 0.0
    %787 = vmatprep.subr.mxu0 0.0
    %788 = vmatpush1.msra.mxu0 0.0
    %789 = vmatprep.subr.mxu0 0.0
    %790 = vmatpush1.msra.mxu0 0.0
    %791 = vmatprep.subr.mxu0 0.0
    %792 = vmatpush1.msra.mxu0 0.0
    %793 = vmatprep.subr.mxu0 0.0
    %794 = vmatpush1.msra.mxu0 0.0
    %795 = vmatprep.subr.mxu0 0.0
    %796 = vmatpush1.msra.mxu0 0.0
    %797 = vmatprep.subr.mxu0 0.0
    %798 = vmatpush1.msra.mxu0 0.0
    %799 = vmatprep.subr.mxu0 0.0
    %800 = vmatpush1.msra.mxu0 0.0
    %801 = vmatprep.subr.mxu0 0.0
    %802 = vmatpush1.msra.mxu0 0.0
    %803 = vmatprep.subr.mxu0 0.0
    %804 = vmatpush1.msra.mxu0 0.0
    %805 = vmatprep.subr.mxu0 0.0
    %806 = vmatpush1.msra.mxu0 0.0
    %807 = vmatprep.subr.mxu0 0.0
    %808 = vmatpush1.msra.mxu0 0.0
    %809 = vmatprep.subr.mxu0 0.0
    %810 = vmatpush1.msra.mxu0 0.0
    %811 = vmatprep.subr.mxu0 0.0
    %812 = vmatpush1.msra.mxu0 0.0
    %813 = vmatprep.subr.mxu0 0.0
    %814 = vmatpush1.msra.mxu0 0.0
    %815 = vmatprep.subr.mxu0 0.0
    %816 = vmatpush1.msra.mxu0 0.0
    %817 = vmatprep.subr.mxu0 0.0
    %818 = vmatpush1.msra.mxu0 0.0
    %819 = vmatprep.subr.mxu0 0.0
    %820 = vmatpush1.msra.mxu0 0.0
    %821 = vmatprep.subr.mxu0 0.0
    %822 = vmatpush1.msra.mxu0 0.0
    %823 = vmatprep.subr.mxu0 0.0
    %824 = vmatpush1.msra.mxu0 0.0
    %825 = vmatprep.subr.mxu0 0.0
    %826 = vmatpush1.msra.mxu0 0.0
    %827 = vmatprep.subr.mxu0 0.0
    %828 = vmatpush1.msra.mxu0 0.0
    %829 = vmatprep.subr.mxu0 0.0
    %830 = vmatpush1.msra.mxu0 0.0
    %831 = vmatprep.subr.mxu0 0.0
    %832 = vmatpush1.msra.mxu0 0.0
    %833 = vmatprep.mubr.f32.mxu0 0.0
    %834 = vmatmul.mubr.f32.gmra.mrb[0].mxu0 %v423
    %v835 = vpop.f32.mrb[0].mxu0
    %v836 = vadd.f32 0.0, %v835
    %v837 = vpop.f32.mrb[0].mxu0
    %v838 = vadd.f32 0.0, %v837
    %839 = vdwg.mxu0
    %840 = vmatprep.subr.mxu0 %v667
    %841 = vmatpush1.msra.mxu0 %v666
    %842 = vmatprep.subr.mxu0 %v671
    %843 = vmatpush1.msra.mxu0 %v670
    %844 = vmatprep.subr.mxu0 %v675
    %845 = vmatpush1.msra.mxu0 %v674
    %846 = vmatprep.subr.mxu0 %v679
    %847 = vmatpush1.msra.mxu0 %v678
    %848 = vmatprep.subr.mxu0 0.0
    %849 = vmatpush1.msra.mxu0 0.0
    %850 = vmatprep.subr.mxu0 0.0
    %851 = vmatpush1.msra.mxu0 0.0
    %852 = vmatprep.subr.mxu0 0.0
    %853 = vmatpush1.msra.mxu0 0.0
    %854 = vmatprep.subr.mxu0 0.0
    %855 = vmatpush1.msra.mxu0 0.0
    %856 = vmatprep.subr.mxu0 0.0
    %857 = vmatpush1.msra.mxu0 0.0
    %858 = vmatprep.subr.mxu0 0.0
    %859 = vmatpush1.msra.mxu0 0.0
    %860 = vmatprep.subr.mxu0 0.0
    %861 = vmatpush1.msra.mxu0 0.0
    %862 = vmatprep.subr.mxu0 0.0
    %863 = vmatpush1.msra.mxu0 0.0
    %864 = vmatprep.subr.mxu0 0.0
    %865 = vmatpush1.msra.mxu0 0.0
    %866 = vmatprep.subr.mxu0 0.0
    %867 = vmatpush1.msra.mxu0 0.0
    %868 = vmatprep.subr.mxu0 0.0
    %869 = vmatpush1.msra.mxu0 0.0
    %870 = vmatprep.subr.mxu0 0.0
    %871 = vmatpush1.msra.mxu0 0.0
    %872 = vmatprep.subr.mxu0 0.0
    %873 = vmatpush1.msra.mxu0 0.0
    %874 = vmatprep.subr.mxu0 0.0
    %875 = vmatpush1.msra.mxu0 0.0
    %876 = vmatprep.subr.mxu0 0.0
    %877 = vmatpush1.msra.mxu0 0.0
    %878 = vmatprep.subr.mxu0 0.0
    %879 = vmatpush1.msra.mxu0 0.0
    %880 = vmatprep.subr.mxu0 0.0
    %881 = vmatpush1.msra.mxu0 0.0
    %882 = vmatprep.subr.mxu0 0.0
    %883 = vmatpush1.msra.mxu0 0.0
    %884 = vmatprep.subr.mxu0 0.0
    %885 = vmatpush1.msra.mxu0 0.0
    %886 = vmatprep.subr.mxu0 0.0
    %887 = vmatpush1.msra.mxu0 0.0
    %888 = vmatprep.subr.mxu0 0.0
    %889 = vmatpush1.msra.mxu0 0.0
    %890 = vmatprep.subr.mxu0 0.0
    %891 = vmatpush1.msra.mxu0 0.0
    %892 = vmatprep.subr.mxu0 0.0
    %893 = vmatpush1.msra.mxu0 0.0
    %894 = vmatprep.subr.mxu0 0.0
    %895 = vmatpush1.msra.mxu0 0.0
    %896 = vmatprep.subr.mxu0 0.0
    %897 = vmatpush1.msra.mxu0 0.0
    %898 = vmatprep.subr.mxu0 0.0
    %899 = vmatpush1.msra.mxu0 0.0
    %900 = vmatprep.subr.mxu0 0.0
    %901 = vmatpush1.msra.mxu0 0.0
    %902 = vmatprep.subr.mxu0 0.0
    %903 = vmatpush1.msra.mxu0 0.0
    %904 = vmatprep.mubr.f32.mxu0 0.0
    %905 = vmatmul.mubr.f32.gmra.mrb[0].mxu0 %v496
    %v906 = vpop.f32.mrb[0].mxu0
    %v907 = vadd.f32 %v765, %v906
    %v908 = vpop.f32.mrb[0].mxu0
    %v909 = vadd.f32 %v767, %v908
    %910 = vdwg.mxu0
    %911 = vmatprep.subr.mxu0 %v669
    %912 = vmatpush1.msra.mxu0 %v668
    %913 = vmatprep.subr.mxu0 %v673
    %914 = vmatpush1.msra.mxu0 %v672
    %915 = vmatprep.subr.mxu0 %v677
    %916 = vmatpush1.msra.mxu0 %v676
    %917 = vmatprep.subr.mxu0 %v681
    %918 = vmatpush1.msra.mxu0 %v680
    %919 = vmatprep.subr.mxu0 0.0
    %920 = vmatpush1.msra.mxu0 0.0
    %921 = vmatprep.subr.mxu0 0.0
    %922 = vmatpush1.msra.mxu0 0.0
    %923 = vmatprep.subr.mxu0 0.0
    %924 = vmatpush1.msra.mxu0 0.0
    %925 = vmatprep.subr.mxu0 0.0
    %926 = vmatpush1.msra.mxu0 0.0
    %927 = vmatprep.subr.mxu0 0.0
    %928 = vmatpush1.msra.mxu0 0.0
    %929 = vmatprep.subr.mxu0 0.0
    %930 = vmatpush1.msra.mxu0 0.0
    %931 = vmatprep.subr.mxu0 0.0
    %932 = vmatpush1.msra.mxu0 0.0
    %933 = vmatprep.subr.mxu0 0.0
    %934 = vmatpush1.msra.mxu0 0.0
    %935 = vmatprep.subr.mxu0 0.0
    %936 = vmatpush1.msra.mxu0 0.0
    %937 = vmatprep.subr.mxu0 0.0
    %938 = vmatpush1.msra.mxu0 0.0
    %939 = vmatprep.subr.mxu0 0.0
    %940 = vmatpush1.msra.mxu0 0.0
    %941 = vmatprep.subr.mxu0 0.0
    %942 = vmatpush1.msra.mxu0 0.0
    %943 = vmatprep.subr.mxu0 0.0
    %944 = vmatpush1.msra.mxu0 0.0
    %945 = vmatprep.subr.mxu0 0.0
    %946 = vmatpush1.msra.mxu0 0.0
    %947 = vmatprep.subr.mxu0 0.0
    %948 = vmatpush1.msra.mxu0 0.0
    %949 = vmatprep.subr.mxu0 0.0
    %950 = vmatpush1.msra.mxu0 0.0
    %951 = vmatprep.subr.mxu0 0.0
    %952 = vmatpush1.msra.mxu0 0.0
    %953 = vmatprep.subr.mxu0 0.0
    %954 = vmatpush1.msra.mxu0 0.0
    %955 = vmatprep.subr.mxu0 0.0
    %956 = vmatpush1.msra.mxu0 0.0
    %957 = vmatprep.subr.mxu0 0.0
    %958 = vmatpush1.msra.mxu0 0.0
    %959 = vmatprep.subr.mxu0 0.0
    %960 = vmatpush1.msra.mxu0 0.0
    %961 = vmatprep.subr.mxu0 0.0
    %962 = vmatpush1.msra.mxu0 0.0
    %963 = vmatprep.subr.mxu0 0.0
    %964 = vmatpush1.msra.mxu0 0.0
    %965 = vmatprep.subr.mxu0 0.0
    %966 = vmatpush1.msra.mxu0 0.0
    %967 = vmatprep.subr.mxu0 0.0
    %968 = vmatpush1.msra.mxu0 0.0
    %969 = vmatprep.subr.mxu0 0.0
    %970 = vmatpush1.msra.mxu0 0.0
    %971 = vmatprep.subr.mxu0 0.0
    %972 = vmatpush1.msra.mxu0 0.0
    %973 = vmatprep.subr.mxu0 0.0
    %974 = vmatpush1.msra.mxu0 0.0
    %975 = vmatprep.mubr.f32.mxu0 0.0
    %976 = vmatmul.mubr.f32.gmra.mrb[0].mxu0 %v496
    %v977 = vpop.f32.mrb[0].mxu0
    %v978 = vadd.f32 %v836, %v977
    %v979 = vpop.f32.mrb[0].mxu0
    %v980 = vadd.f32 %v838, %v979
    %981 = vdwg.mxu0
    %v982 = vld [vmem:[%s33] sm:$0xf]
    %v984 = vlaneseq
    %v985 = vshrl.u32 %v984, 7
    %v986 = vsub.s32 0, %v985
    %v987 = vrot.slane %v982, %v986
    %v988 = vlaneseq
    %v989 = vshrl.u32 %v988, 7
    %v990 = vsub.s32 1, %v989
    %v991 = vrot.slane %v982, %v990
    %v992 = vlaneseq
    %v993 = vshrl.u32 %v992, 7
    %v994 = vsub.s32 2, %v993
    %v995 = vrot.slane %v982, %v994
    %v996 = vlaneseq
    %v997 = vshrl.u32 %v996, 7
    %v998 = vsub.s32 3, %v997
    %v999 = vrot.slane %v982, %v998
    %v1004 = vadd.f32 %v907, %v987
    %v1005 = vadd.f32 %v909, %v991
    %v1006 = vadd.f32 %v978, %v995
    %v1007 = vadd.f32 %v980, %v999
    %v1008 = vld [vmem:[%s35] sm:$0xff]
    %v1009 = vld [vmem:[%s35 + $0x8] sm:$0xff]
    %v1010 = vld [vmem:[%s35 + $0x10] sm:$0xff]
    %v1011 = vld [vmem:[%s35 + $0x18] sm:$0xff]
    %v1012 = vld [vmem:[%s35 + $0x20] sm:$0xff]
    %v1013 = vld [vmem:[%s35 + $0x28] sm:$0xff]
    %v1014 = vld [vmem:[%s35 + $0x30] sm:$0xff]
    %v1015 = vld [vmem:[%s35 + $0x38] sm:$0xff]
    %v1016 = vld [vmem:[%s35 + $0x40] sm:$0xff]
    %v1017 = vld [vmem:[%s35 + $0x48] sm:$0xff]
    %v1018 = vld [vmem:[%s35 + $0x50] sm:$0xff]
    %v1019 = vld [vmem:[%s35 + $0x58] sm:$0xff]
    %v1020 = vld [vmem:[%s35 + $0x60] sm:$0xff]
    %v1021 = vld [vmem:[%s35 + $0x68] sm:$0xff]
    %v1022 = vld [vmem:[%s35 + $0x70] sm:$0xff]
    %v1023 = vld [vmem:[%s35 + $0x78] sm:$0xff]
    %v1024 = vld [vmem:[%s35 + $0x80] sm:$0xff]
    %v1025 = vld [vmem:[%s35 + $0x88] sm:$0xff]
    %v1026 = vld [vmem:[%s35 + $0x90] sm:$0xff]
    %v1027 = vld [vmem:[%s35 + $0x98] sm:$0xff]
    %v1028 = vld [vmem:[%s35 + $0xa0] sm:$0xff]
    %v1029 = vld [vmem:[%s35 + $0xa8] sm:$0xff]
    %v1030 = vld [vmem:[%s35 + $0xb0] sm:$0xff]
    %v1031 = vld [vmem:[%s35 + $0xb8] sm:$0xff]
    %v1032 = vld [vmem:[%s35 + $0xc0] sm:$0xf]
    %v1033 = vld [vmem:[%s35 + $0xc8] sm:$0xf]
    %v1034 = vld [vmem:[%s37] sm:$0xff]
    %v1035 = vld [vmem:[%s37 + $0x8] sm:$0xff]
    %v1036 = vld [vmem:[%s37 + $0x10] sm:$0xff]
    %v1037 = vld [vmem:[%s37 + $0x18] sm:$0xff]
    %v1038 = vld [vmem:[%s37 + $0x20] sm:$0xff]
    %v1039 = vld [vmem:[%s37 + $0x28] sm:$0xff]
    %v1040 = vld [vmem:[%s37 + $0x30] sm:$0xff]
    %v1041 = vld [vmem:[%s37 + $0x38] sm:$0xff]
    %v1042 = vld [vmem:[%s37 + $0x40] sm:$0xff]
    %v1043 = vld [vmem:[%s37 + $0x48] sm:$0xff]
    %v1044 = vld [vmem:[%s37 + $0x50] sm:$0xff]
    %v1045 = vld [vmem:[%s37 + $0x58] sm:$0xff]
    %v1046 = vld [vmem:[%s37 + $0x60] sm:$0xff]
    %v1047 = vld [vmem:[%s37 + $0x68] sm:$0xff]
    %v1048 = vld [vmem:[%s37 + $0x70] sm:$0xff]
    %v1049 = vld [vmem:[%s37 + $0x78] sm:$0xff]
    %v1050 = vld [vmem:[%s37 + $0x80] sm:$0xff]
    %v1051 = vld [vmem:[%s37 + $0x88] sm:$0xff]
    %v1052 = vld [vmem:[%s37 + $0x90] sm:$0xff]
    %v1053 = vld [vmem:[%s37 + $0x98] sm:$0xff]
    %v1054 = vld [vmem:[%s37 + $0xa0] sm:$0xff]
    %v1055 = vld [vmem:[%s37 + $0xa8] sm:$0xff]
    %v1056 = vld [vmem:[%s37 + $0xb0] sm:$0xff]
    %v1057 = vld [vmem:[%s37 + $0xb8] sm:$0xff]
    %v1058 = vld [vmem:[%s37 + $0xc0] sm:$0xff]
    %v1059 = vld [vmem:[%s37 + $0xc8] sm:$0xff]
    %v1060 = vld [vmem:[%s37 + $0xd0] sm:$0xff]
    %v1061 = vld [vmem:[%s37 + $0xd8] sm:$0xff]
    %v1062 = vld [vmem:[%s37 + $0xe0] sm:$0xff]
    %v1063 = vld [vmem:[%s37 + $0xe8] sm:$0xff]
    %v1064 = vld [vmem:[%s37 + $0xf0] sm:$0xff]
    %v1065 = vld [vmem:[%s37 + $0xf8] sm:$0xff]
    %v1066 = vld [vmem:[%s37 + $0x100] sm:$0xff]
    %v1067 = vld [vmem:[%s37 + $0x108] sm:$0xff]
    %v1068 = vld [vmem:[%s37 + $0x110] sm:$0xff]
    %v1069 = vld [vmem:[%s37 + $0x118] sm:$0xff]
    %v1070 = vld [vmem:[%s37 + $0x120] sm:$0xff]
    %v1071 = vld [vmem:[%s37 + $0x128] sm:$0xff]
    %v1072 = vld [vmem:[%s37 + $0x130] sm:$0xff]
    %v1073 = vld [vmem:[%s37 + $0x138] sm:$0xff]
    %v1074 = vld [vmem:[%s37 + $0x140] sm:$0xff]
    %v1075 = vld [vmem:[%s37 + $0x148] sm:$0xff]
    %v1076 = vld [vmem:[%s37 + $0x150] sm:$0xff]
    %v1077 = vld [vmem:[%s37 + $0x158] sm:$0xff]
    %v1078 = vld [vmem:[%s37 + $0x160] sm:$0xff]
    %v1079 = vld [vmem:[%s37 + $0x168] sm:$0xff]
    %v1080 = vld [vmem:[%s37 + $0x170] sm:$0xff]
    %v1081 = vld [vmem:[%s37 + $0x178] sm:$0xff]
    %v1082 = vld [vmem:[%s37 + $0x180] sm:$0xff]
    %v1083 = vld [vmem:[%s37 + $0x188] sm:$0xff]
    %v1084 = vld [vmem:[%s37 + $0x190] sm:$0xff]
    %v1085 = vld [vmem:[%s37 + $0x198] sm:$0xff]
    %v1086 = vld [vmem:[%s37 + $0x1a0] sm:$0xff]
    %v1087 = vld [vmem:[%s37 + $0x1a8] sm:$0xff]
    %v1088 = vld [vmem:[%s37 + $0x1b0] sm:$0xff]
    %v1089 = vld [vmem:[%s37 + $0x1b8] sm:$0xff]
    %v1090 = vld [vmem:[%s37 + $0x1c0] sm:$0xff]
    %v1091 = vld [vmem:[%s37 + $0x1c8] sm:$0xff]
    %v1092 = vld [vmem:[%s37 + $0x1d0] sm:$0xff]
    %v1093 = vld [vmem:[%s37 + $0x1d8] sm:$0xff]
    %v1094 = vld [vmem:[%s37 + $0x1e0] sm:$0xff]
    %v1095 = vld [vmem:[%s37 + $0x1e8] sm:$0xff]
    %v1096 = vld [vmem:[%s37 + $0x1f0] sm:$0xff]
    %v1097 = vld [vmem:[%s37 + $0x1f8] sm:$0xff]
    %v1098 = vld [vmem:[%s37 + $0x200] sm:$0xff]
    %v1099 = vld [vmem:[%s37 + $0x208] sm:$0xff]
    %v1100 = vld [vmem:[%s37 + $0x210] sm:$0xff]
    %v1101 = vld [vmem:[%s37 + $0x218] sm:$0xff]
    %v1102 = vld [vmem:[%s37 + $0x220] sm:$0xff]
    %v1103 = vld [vmem:[%s37 + $0x228] sm:$0xff]
    %v1104 = vld [vmem:[%s37 + $0x230] sm:$0xff]
    %v1105 = vld [vmem:[%s37 + $0x238] sm:$0xff]
    %v1106 = vld [vmem:[%s37 + $0x240] sm:$0xff]
    %v1107 = vld [vmem:[%s37 + $0x248] sm:$0xff]
    %v1108 = vld [vmem:[%s37 + $0x250] sm:$0xff]
    %v1109 = vld [vmem:[%s37 + $0x258] sm:$0xff]
    %v1110 = vld [vmem:[%s37 + $0x260] sm:$0xff]
    %v1111 = vld [vmem:[%s37 + $0x268] sm:$0xff]
    %v1112 = vld [vmem:[%s37 + $0x270] sm:$0xff]
    %v1113 = vld [vmem:[%s37 + $0x278] sm:$0xff]
    %v1114 = vld [vmem:[%s37 + $0x280] sm:$0xff]
    %v1115 = vld [vmem:[%s37 + $0x288] sm:$0xff]
    %v1116 = vld [vmem:[%s37 + $0x290] sm:$0xff]
    %v1117 = vld [vmem:[%s37 + $0x298] sm:$0xff]
    %v1118 = vld [vmem:[%s37 + $0x2a0] sm:$0xff]
    %v1119 = vld [vmem:[%s37 + $0x2a8] sm:$0xff]
    %v1120 = vld [vmem:[%s37 + $0x2b0] sm:$0xff]
    %v1121 = vld [vmem:[%s37 + $0x2b8] sm:$0xff]
    %v1122 = vld [vmem:[%s37 + $0x2c0] sm:$0xff]
    %v1123 = vld [vmem:[%s37 + $0x2c8] sm:$0xff]
    %v1124 = vld [vmem:[%s37 + $0x2d0] sm:$0xff]
    %v1125 = vld [vmem:[%s37 + $0x2d8] sm:$0xff]
    %v1126 = vld [vmem:[%s37 + $0x2e0] sm:$0xff]
    %v1127 = vld [vmem:[%s37 + $0x2e8] sm:$0xff]
    %v1128 = vld [vmem:[%s37 + $0x2f0] sm:$0xff]
    %v1129 = vld [vmem:[%s37 + $0x2f8] sm:$0xff]
    %v1130 = vld [vmem:[%s37 + $0x300] sm:$0xff]
    %v1131 = vld [vmem:[%s37 + $0x308] sm:$0xff]
    %v1132 = vld [vmem:[%s37 + $0x310] sm:$0xff]
    %v1133 = vld [vmem:[%s37 + $0x318] sm:$0xff]
    %vm1134 = vcmask 130048
    %v1136 = vsel %vm1134, %v1007, 0
    %1138 = vmatprep.subr.mxu0 %v1035
    %1139 = vmatpush1.msra.mxu0 %v1034
    %1140 = vmatprep.subr.mxu0 %v1037
    %1141 = vmatpush1.msra.mxu0 %v1036
    %1142 = vmatprep.subr.mxu0 %v1039
    %1143 = vmatpush1.msra.mxu0 %v1038
    %1144 = vmatprep.subr.mxu0 %v1041
    %1145 = vmatpush1.msra.mxu0 %v1040
    %1146 = vmatprep.subr.mxu0 %v1043
    %1147 = vmatpush1.msra.mxu0 %v1042
    %1148 = vmatprep.subr.mxu0 %v1045
    %1149 = vmatpush1.msra.mxu0 %v1044
    %1150 = vmatprep.subr.mxu0 %v1047
    %1151 = vmatpush1.msra.mxu0 %v1046
    %1152 = vmatprep.subr.mxu0 %v1049
    %1153 = vmatpush1.msra.mxu0 %v1048
    %1154 = vmatprep.subr.mxu0 %v1051
    %1155 = vmatpush1.msra.mxu0 %v1050
    %1156 = vmatprep.subr.mxu0 %v1053
    %1157 = vmatpush1.msra.mxu0 %v1052
    %1158 = vmatprep.subr.mxu0 %v1055
    %1159 = vmatpush1.msra.mxu0 %v1054
    %1160 = vmatprep.subr.mxu0 %v1057
    %1161 = vmatpush1.msra.mxu0 %v1056
    %1162 = vmatprep.subr.mxu0 %v1059
    %1163 = vmatpush1.msra.mxu0 %v1058
    %1164 = vmatprep.subr.mxu0 %v1061
    %1165 = vmatpush1.msra.mxu0 %v1060
    %1166 = vmatprep.subr.mxu0 %v1063
    %1167 = vmatpush1.msra.mxu0 %v1062
    %1168 = vmatprep.subr.mxu0 %v1065
    %1169 = vmatpush1.msra.mxu0 %v1064
    %1170 = vmatprep.subr.mxu0 %v1067
    %1171 = vmatpush1.msra.mxu0 %v1066
    %1172 = vmatprep.subr.mxu0 %v1069
    %1173 = vmatpush1.msra.mxu0 %v1068
    %1174 = vmatprep.subr.mxu0 %v1071
    %1175 = vmatpush1.msra.mxu0 %v1070
    %1176 = vmatprep.subr.mxu0 %v1073
    %1177 = vmatpush1.msra.mxu0 %v1072
    %1178 = vmatprep.subr.mxu0 %v1075
    %1179 = vmatpush1.msra.mxu0 %v1074
    %1180 = vmatprep.subr.mxu0 %v1077
    %1181 = vmatpush1.msra.mxu0 %v1076
    %1182 = vmatprep.subr.mxu0 %v1079
    %1183 = vmatpush1.msra.mxu0 %v1078
    %1184 = vmatprep.subr.mxu0 %v1081
    %1185 = vmatpush1.msra.mxu0 %v1080
    %1186 = vmatprep.subr.mxu0 %v1083
    %1187 = vmatpush1.msra.mxu0 %v1082
    %1188 = vmatprep.subr.mxu0 %v1085
    %1189 = vmatpush1.msra.mxu0 %v1084
    %1190 = vmatprep.subr.mxu0 %v1087
    %1191 = vmatpush1.msra.mxu0 %v1086
    %1192 = vmatprep.subr.mxu0 %v1089
    %1193 = vmatpush1.msra.mxu0 %v1088
    %1194 = vmatprep.subr.mxu0 %v1091
    %1195 = vmatpush1.msra.mxu0 %v1090
    %1196 = vmatprep.subr.mxu0 %v1093
    %1197 = vmatpush1.msra.mxu0 %v1092
    %1198 = vmatprep.subr.mxu0 %v1095
    %1199 = vmatpush1.msra.mxu0 %v1094
    %1200 = vmatprep.subr.mxu0 %v1097
    %1201 = vmatpush1.msra.mxu0 %v1096
    %1202 = vmatprep.mubr.f32.mxu0 %v1005
    %1203 = vmatmul.mubr.f32.gmra.mrb[0].mxu0 %v1004
    %v1204 = vpop.f32.mrb[0].mxu0
    %v1205 = vadd.f32 0.0, %v1204
    %v1206 = vpop.f32.mrb[0].mxu0
    %v1207 = vadd.f32 0.0, %v1206
    %1208 = vdwg.mxu0
    %1209 = vmatprep.subr.mxu0 %v1099
    %1210 = vmatpush1.msra.mxu0 %v1098
    %1211 = vmatprep.subr.mxu0 %v1101
    %1212 = vmatpush1.msra.mxu0 %v1100
    %1213 = vmatprep.subr.mxu0 %v1103
    %1214 = vmatpush1.msra.mxu0 %v1102
    %1215 = vmatprep.subr.mxu0 %v1105
    %1216 = vmatpush1.msra.mxu0 %v1104
    %1217 = vmatprep.subr.mxu0 %v1107
    %1218 = vmatpush1.msra.mxu0 %v1106
    %1219 = vmatprep.subr.mxu0 %v1109
    %1220 = vmatpush1.msra.mxu0 %v1108
    %1221 = vmatprep.subr.mxu0 %v1111
    %1222 = vmatpush1.msra.mxu0 %v1110
    %1223 = vmatprep.subr.mxu0 %v1113
    %1224 = vmatpush1.msra.mxu0 %v1112
    %1225 = vmatprep.subr.mxu0 %v1115
    %1226 = vmatpush1.msra.mxu0 %v1114
    %1227 = vmatprep.subr.mxu0 %v1117
    %1228 = vmatpush1.msra.mxu0 %v1116
    %1229 = vmatprep.subr.mxu0 %v1119
    %1230 = vmatpush1.msra.mxu0 %v1118
    %1231 = vmatprep.subr.mxu0 %v1121
    %1232 = vmatpush1.msra.mxu0 %v1120
    %1233 = vmatprep.subr.mxu0 %v1123
    %1234 = vmatpush1.msra.mxu0 %v1122
    %1235 = vmatprep.subr.mxu0 %v1125
    %1236 = vmatpush1.msra.mxu0 %v1124
    %1237 = vmatprep.subr.mxu0 %v1127
    %1238 = vmatpush1.msra.mxu0 %v1126
    %1239 = vmatprep.subr.mxu0 %v1129
    %1240 = vmatpush1.msra.mxu0 %v1128
    %1241 = vmatprep.subr.mxu0 %v1131
    %1242 = vmatpush1.msra.mxu0 %v1130
    %1243 = vmatprep.subr.mxu0 %v1133
    %1244 = vmatpush1.msra.mxu0 %v1132
    %1245 = vmatprep.subr.mxu0 0.0
    %1246 = vmatpush1.msra.mxu0 0.0
    %1247 = vmatprep.subr.mxu0 0.0
    %1248 = vmatpush1.msra.mxu0 0.0
    %1249 = vmatprep.subr.mxu0 0.0
    %1250 = vmatpush1.msra.mxu0 0.0
    %1251 = vmatprep.subr.mxu0 0.0
    %1252 = vmatpush1.msra.mxu0 0.0
    %1253 = vmatprep.subr.mxu0 0.0
    %1254 = vmatpush1.msra.mxu0 0.0
    %1255 = vmatprep.subr.mxu0 0.0
    %1256 = vmatpush1.msra.mxu0 0.0
    %1257 = vmatprep.subr.mxu0 0.0
    %1258 = vmatpush1.msra.mxu0 0.0
    %1259 = vmatprep.subr.mxu0 0.0
    %1260 = vmatpush1.msra.mxu0 0.0
    %1261 = vmatprep.subr.mxu0 0.0
    %1262 = vmatpush1.msra.mxu0 0.0
    %1263 = vmatprep.subr.mxu0 0.0
    %1264 = vmatpush1.msra.mxu0 0.0
    %1265 = vmatprep.subr.mxu0 0.0
    %1266 = vmatpush1.msra.mxu0 0.0
    %1267 = vmatprep.subr.mxu0 0.0
    %1268 = vmatpush1.msra.mxu0 0.0
    %1269 = vmatprep.subr.mxu0 0.0
    %1270 = vmatpush1.msra.mxu0 0.0
    %1271 = vmatprep.subr.mxu0 0.0
    %1272 = vmatpush1.msra.mxu0 0.0
    %1273 = vmatprep.mubr.f32.mxu0 %v1136
    %1274 = vmatmul.mubr.f32.gmra.mrb[0].mxu0 %v1006
    %v1275 = vpop.f32.mrb[0].mxu0
    %v1276 = vadd.f32 %v1205, %v1275
    %v1277 = vpop.f32.mrb[0].mxu0
    %v1278 = vadd.f32 %v1207, %v1277
    %1279 = vdwg.mxu0
    %vm1280 = vcmask 818176
    %v1282 = vsel %vm1280, %v663, 0
    %vm1284 = vcmask 1043456
    %v1286 = vsel %vm1284, %v1032, 0
    %v1289 = vsel %vm1284, %v1033, 0
    %1291 = vmatprep.subr.mxu0 %v1009
    %1292 = vmatpush1.msra.mxu0 %v1008
    %1293 = vmatprep.subr.mxu0 %v1011
    %1294 = vmatpush1.msra.mxu0 %v1010
    %1295 = vmatprep.subr.mxu0 %v1013
    %1296 = vmatpush1.msra.mxu0 %v1012
    %1297 = vmatprep.subr.mxu0 %v1015
    %1298 = vmatpush1.msra.mxu0 %v1014
    %1299 = vmatprep.subr.mxu0 %v1017
    %1300 = vmatpush1.msra.mxu0 %v1016
    %1301 = vmatprep.subr.mxu0 %v1019
    %1302 = vmatpush1.msra.mxu0 %v1018
    %1303 = vmatprep.subr.mxu0 %v1021
    %1304 = vmatpush1.msra.mxu0 %v1020
    %1305 = vmatprep.subr.mxu0 %v1023
    %1306 = vmatpush1.msra.mxu0 %v1022
    %1307 = vmatprep.subr.mxu0 %v1025
    %1308 = vmatpush1.msra.mxu0 %v1024
    %1309 = vmatprep.subr.mxu0 %v1027
    %1310 = vmatpush1.msra.mxu0 %v1026
    %1311 = vmatprep.subr.mxu0 %v1029
    %1312 = vmatpush1.msra.mxu0 %v1028
    %1313 = vmatprep.subr.mxu0 %v1031
    %1314 = vmatpush1.msra.mxu0 %v1030
    %1315 = vmatprep.subr.mxu0 %v1289
    %1316 = vmatpush1.msra.mxu0 %v1286
    %1317 = vmatprep.subr.mxu0 0.0
    %1318 = vmatpush1.msra.mxu0 0.0
    %1319 = vmatprep.subr.mxu0 0.0
    %1320 = vmatpush1.msra.mxu0 0.0
    %1321 = vmatprep.subr.mxu0 0.0
    %1322 = vmatpush1.msra.mxu0 0.0
    %1323 = vmatprep.subr.mxu0 0.0
    %1324 = vmatpush1.msra.mxu0 0.0
    %1325 = vmatprep.subr.mxu0 0.0
    %1326 = vmatpush1.msra.mxu0 0.0
    %1327 = vmatprep.subr.mxu0 0.0
    %1328 = vmatpush1.msra.mxu0 0.0
    %1329 = vmatprep.subr.mxu0 0.0
    %1330 = vmatpush1.msra.mxu0 0.0
    %1331 = vmatprep.subr.mxu0 0.0
    %1332 = vmatpush1.msra.mxu0 0.0
    %1333 = vmatprep.subr.mxu0 0.0
    %1334 = vmatpush1.msra.mxu0 0.0
    %1335 = vmatprep.subr.mxu0 0.0
    %1336 = vmatpush1.msra.mxu0 0.0
    %1337 = vmatprep.subr.mxu0 0.0
    %1338 = vmatpush1.msra.mxu0 0.0
    %1339 = vmatprep.subr.mxu0 0.0
    %1340 = vmatpush1.msra.mxu0 0.0
    %1341 = vmatprep.subr.mxu0 0.0
    %1342 = vmatpush1.msra.mxu0 0.0
    %1343 = vmatprep.subr.mxu0 0.0
    %1344 = vmatpush1.msra.mxu0 0.0
    %1345 = vmatprep.subr.mxu0 0.0
    %1346 = vmatpush1.msra.mxu0 0.0
    %1347 = vmatprep.subr.mxu0 0.0
    %1348 = vmatpush1.msra.mxu0 0.0
    %1349 = vmatprep.subr.mxu0 0.0
    %1350 = vmatpush1.msra.mxu0 0.0
    %1351 = vmatprep.subr.mxu0 0.0
    %1352 = vmatpush1.msra.mxu0 0.0
    %1353 = vmatprep.subr.mxu0 0.0
    %1354 = vmatpush1.msra.mxu0 0.0
    %1355 = vmatprep.mubr.f32.mxu0 0.0
    %1356 = vmatmul.mubr.f32.gmra.mrb[0].mxu0 %v1282
    %v1357 = vpop.f32.mrb[0].mxu0
    %v1358 = vadd.f32 %v1276, %v1357
    %v1359 = vpop.f32.mrb[0].mxu0
    %v1360 = vadd.f32 %v1278, %v1359
    %1361 = vdwg.mxu0
    %v1362 = vld [vmem:[#allocation5] sm:$0x3]
    %v1364 = vlaneseq
    %v1365 = vshrl.u32 %v1364, 7
    %v1366 = vsub.s32 0, %v1365
    %v1367 = vrot.slane %v1362, %v1366
    %v1368 = vlaneseq
    %v1369 = vshrl.u32 %v1368, 7
    %v1370 = vsub.s32 1, %v1369
    %v1371 = vrot.slane %v1362, %v1370
    %v1374 = vadd.f32 %v1358, %v1367
    %v1375 = vadd.f32 %v1360, %v1371
    %vm1376 = vcmp.ge.f32.partialorder %v1374, 0.0
    %vm1377 = vcmp.ge.f32.partialorder %v1375, 0.0
    %v1378 = vmul.f32 %v1374, 0.2
    %v1379 = vmul.f32 %v1375, 0.2
    %v1380 = vsel %vm1376, %v1374, %v1378
    %v1381 = vsel %vm1377, %v1375, %v1379
    %v1382 = vld [vmem:[%s41] sm:$0xff]
    %v1383 = vld [vmem:[%s41 + $0x8] sm:$0xff]
    %v1384 = vld [vmem:[%s41 + $0x10] sm:$0xff]
    %v1385 = vld [vmem:[%s41 + $0x18] sm:$0xff]
    %v1386 = vld [vmem:[%s41 + $0x20] sm:$0xff]
    %v1387 = vld [vmem:[%s41 + $0x28] sm:$0xff]
    %v1388 = vld [vmem:[%s41 + $0x30] sm:$0xff]
    %v1389 = vld [vmem:[%s41 + $0x38] sm:$0xff]
    %v1390 = vld [vmem:[%s41 + $0x40] sm:$0xff]
    %v1391 = vld [vmem:[%s41 + $0x48] sm:$0xff]
    %v1392 = vld [vmem:[%s41 + $0x50] sm:$0xff]
    %v1393 = vld [vmem:[%s41 + $0x58] sm:$0xff]
    %v1394 = vld [vmem:[%s41 + $0x60] sm:$0xff]
    %v1395 = vld [vmem:[%s41 + $0x68] sm:$0xff]
    %v1396 = vld [vmem:[%s41 + $0x70] sm:$0xff]
    %v1397 = vld [vmem:[%s41 + $0x78] sm:$0xff]
    %v1398 = vld [vmem:[%s41 + $0x80] sm:$0xff]
    %v1399 = vld [vmem:[%s41 + $0x88] sm:$0xff]
    %v1400 = vld [vmem:[%s41 + $0x90] sm:$0xff]
    %v1401 = vld [vmem:[%s41 + $0x98] sm:$0xff]
    %v1402 = vld [vmem:[%s41 + $0xa0] sm:$0xff]
    %v1403 = vld [vmem:[%s41 + $0xa8] sm:$0xff]
    %v1404 = vld [vmem:[%s41 + $0xb0] sm:$0xff]
    %v1405 = vld [vmem:[%s41 + $0xb8] sm:$0xff]
    %v1406 = vld [vmem:[%s41 + $0xc0] sm:$0xff]
    %v1407 = vld [vmem:[%s41 + $0xc8] sm:$0xff]
    %v1408 = vld [vmem:[%s41 + $0xd0] sm:$0xff]
    %v1409 = vld [vmem:[%s41 + $0xd8] sm:$0xff]
    %v1410 = vld [vmem:[%s41 + $0xe0] sm:$0xff]
    %v1411 = vld [vmem:[%s41 + $0xe8] sm:$0xff]
    %v1412 = vld [vmem:[%s41 + $0xf0] sm:$0xff]
    %v1413 = vld [vmem:[%s41 + $0xf8] sm:$0xff]
    %v1414 = vld [vmem:[#allocation7] sm:$0x1]
    %v1416 = vlaneseq
    %v1417 = vshrl.u32 %v1416, 7
    %v1418 = vsub.s32 0, %v1417
    %v1419 = vrot.slane %v1414, %v1418
    %1421 = vmatprep.subr.mxu0 0.0
    %1422 = vmatpush1.msra.mxu0 %v1382
    %1423 = vmatprep.subr.mxu0 0.0
    %1424 = vmatpush1.msra.mxu0 %v1383
    %1425 = vmatprep.subr.mxu0 0.0
    %1426 = vmatpush1.msra.mxu0 %v1384
    %1427 = vmatprep.subr.mxu0 0.0
    %1428 = vmatpush1.msra.mxu0 %v1385
    %1429 = vmatprep.subr.mxu0 0.0
    %1430 = vmatpush1.msra.mxu0 %v1386
    %1431 = vmatprep.subr.mxu0 0.0
    %1432 = vmatpush1.msra.mxu0 %v1387
    %1433 = vmatprep.subr.mxu0 0.0
    %1434 = vmatpush1.msra.mxu0 %v1388
    %1435 = vmatprep.subr.mxu0 0.0
    %1436 = vmatpush1.msra.mxu0 %v1389
    %1437 = vmatprep.subr.mxu0 0.0
    %1438 = vmatpush1.msra.mxu0 %v1390
    %1439 = vmatprep.subr.mxu0 0.0
    %1440 = vmatpush1.msra.mxu0 %v1391
    %1441 = vmatprep.subr.mxu0 0.0
    %1442 = vmatpush1.msra.mxu0 %v1392
    %1443 = vmatprep.subr.mxu0 0.0
    %1444 = vmatpush1.msra.mxu0 %v1393
    %1445 = vmatprep.subr.mxu0 0.0
    %1446 = vmatpush1.msra.mxu0 %v1394
    %1447 = vmatprep.subr.mxu0 0.0
    %1448 = vmatpush1.msra.mxu0 %v1395
    %1449 = vmatprep.subr.mxu0 0.0
    %1450 = vmatpush1.msra.mxu0 %v1396
    %1451 = vmatprep.subr.mxu0 0.0
    %1452 = vmatpush1.msra.mxu0 %v1397
    %1453 = vmatprep.subr.mxu0 0.0
    %1454 = vmatpush1.msra.mxu0 %v1398
    %1455 = vmatprep.subr.mxu0 0.0
    %1456 = vmatpush1.msra.mxu0 %v1399
    %1457 = vmatprep.subr.mxu0 0.0
    %1458 = vmatpush1.msra.mxu0 %v1400
    %1459 = vmatprep.subr.mxu0 0.0
    %1460 = vmatpush1.msra.mxu0 %v1401
    %1461 = vmatprep.subr.mxu0 0.0
    %1462 = vmatpush1.msra.mxu0 %v1402
    %1463 = vmatprep.subr.mxu0 0.0
    %1464 = vmatpush1.msra.mxu0 %v1403
    %1465 = vmatprep.subr.mxu0 0.0
    %1466 = vmatpush1.msra.mxu0 %v1404
    %1467 = vmatprep.subr.mxu0 0.0
    %1468 = vmatpush1.msra.mxu0 %v1405
    %1469 = vmatprep.subr.mxu0 0.0
    %1470 = vmatpush1.msra.mxu0 %v1406
    %1471 = vmatprep.subr.mxu0 0.0
    %1472 = vmatpush1.msra.mxu0 %v1407
    %1473 = vmatprep.subr.mxu0 0.0
    %1474 = vmatpush1.msra.mxu0 %v1408
    %1475 = vmatprep.subr.mxu0 0.0
    %1476 = vmatpush1.msra.mxu0 %v1409
    %1477 = vmatprep.subr.mxu0 0.0
    %1478 = vmatpush1.msra.mxu0 %v1410
    %1479 = vmatprep.subr.mxu0 0.0
    %1480 = vmatpush1.msra.mxu0 %v1411
    %1481 = vmatprep.subr.mxu0 0.0
    %1482 = vmatpush1.msra.mxu0 %v1412
    %1483 = vmatprep.subr.mxu0 0.0
    %1484 = vmatpush1.msra.mxu0 %v1413
    %1485 = vmatprep.mubr.f32.mxu0 %v1381
    %1486 = vmatmul.mubr.f32.gmra.mrb[0].mxu0 %v1380
    %v1487 = vpop.f32.mrb[0].mxu0
    %v1488 = vadd.f32 %v1419, %v1487
    %v1489 = vpop.f32.mrb[0].mxu0
    %1490 = vdwg.mxu0
    %vm1491 = vcmp.ge.f32.partialorder %v1488, 0.0
    %v1492 = vmul.f32 %v1488, 0.2
    %v1493 = vsel %vm1491, %v1488, %v1492
    %v1494 = vld [vmem:[%s45] sm:$0xff]
    %v1495 = vld [vmem:[%s45 + $0x8] sm:$0xff]
    %v1496 = vld [vmem:[%s45 + $0x10] sm:$0xff]
    %v1497 = vld [vmem:[%s45 + $0x18] sm:$0xff]
    %v1498 = vld [vmem:[%s45 + $0x20] sm:$0xff]
    %v1499 = vld [vmem:[%s45 + $0x28] sm:$0xff]
    %v1500 = vld [vmem:[%s45 + $0x30] sm:$0xff]
    %v1501 = vld [vmem:[%s45 + $0x38] sm:$0xff]
    %v1502 = vld [vmem:[%s45 + $0x40] sm:$0xff]
    %v1503 = vld [vmem:[%s45 + $0x48] sm:$0xff]
    %v1504 = vld [vmem:[%s45 + $0x50] sm:$0xff]
    %v1505 = vld [vmem:[%s45 + $0x58] sm:$0xff]
    %v1506 = vld [vmem:[%s45 + $0x60] sm:$0xff]
    %v1507 = vld [vmem:[%s45 + $0x68] sm:$0xff]
    %v1508 = vld [vmem:[%s45 + $0x70] sm:$0xff]
    %v1509 = vld [vmem:[%s45 + $0x78] sm:$0xff]
    %v1510 = vld [vmem:[#allocation2] sm:$0x1]
    %v1512 = vlaneseq
    %v1513 = vshrl.u32 %v1512, 7
    %v1514 = vsub.s32 0, %v1513
    %v1515 = vrot.slane %v1510, %v1514
    %1517 = vmatprep.subr.mxu0 0.0
    %1518 = vmatpush1.msra.mxu0 %v1494
    %1519 = vmatprep.subr.mxu0 0.0
    %1520 = vmatpush1.msra.mxu0 %v1495
    %1521 = vmatprep.subr.mxu0 0.0
    %1522 = vmatpush1.msra.mxu0 %v1496
    %1523 = vmatprep.subr.mxu0 0.0
    %1524 = vmatpush1.msra.mxu0 %v1497
    %1525 = vmatprep.subr.mxu0 0.0
    %1526 = vmatpush1.msra.mxu0 %v1498
    %1527 = vmatprep.subr.mxu0 0.0
    %1528 = vmatpush1.msra.mxu0 %v1499
    %1529 = vmatprep.subr.mxu0 0.0
    %1530 = vmatpush1.msra.mxu0 %v1500
    %1531 = vmatprep.subr.mxu0 0.0
    %1532 = vmatpush1.msra.mxu0 %v1501
    %1533 = vmatprep.subr.mxu0 0.0
    %1534 = vmatpush1.msra.mxu0 %v1502
    %1535 = vmatprep.subr.mxu0 0.0
    %1536 = vmatpush1.msra.mxu0 %v1503
    %1537 = vmatprep.subr.mxu0 0.0
    %1538 = vmatpush1.msra.mxu0 %v1504
    %1539 = vmatprep.subr.mxu0 0.0
    %1540 = vmatpush1.msra.mxu0 %v1505
    %1541 = vmatprep.subr.mxu0 0.0
    %1542 = vmatpush1.msra.mxu0 %v1506
    %1543 = vmatprep.subr.mxu0 0.0
    %1544 = vmatpush1.msra.mxu0 %v1507
    %1545 = vmatprep.subr.mxu0 0.0
    %1546 = vmatpush1.msra.mxu0 %v1508
    %1547 = vmatprep.subr.mxu0 0.0
    %1548 = vmatpush1.msra.mxu0 %v1509
    %1549 = vmatprep.subr.mxu0 0.0
    %1550 = vmatpush1.msra.mxu0 0.0
    %1551 = vmatprep.subr.mxu0 0.0
    %1552 = vmatpush1.msra.mxu0 0.0
    %1553 = vmatprep.subr.mxu0 0.0
    %1554 = vmatpush1.msra.mxu0 0.0
    %1555 = vmatprep.subr.mxu0 0.0
    %1556 = vmatpush1.msra.mxu0 0.0
    %1557 = vmatprep.subr.mxu0 0.0
    %1558 = vmatpush1.msra.mxu0 0.0
    %1559 = vmatprep.subr.mxu0 0.0
    %1560 = vmatpush1.msra.mxu0 0.0
    %1561 = vmatprep.subr.mxu0 0.0
    %1562 = vmatpush1.msra.mxu0 0.0
    %1563 = vmatprep.subr.mxu0 0.0
    %1564 = vmatpush1.msra.mxu0 0.0
    %1565 = vmatprep.subr.mxu0 0.0
    %1566 = vmatpush1.msra.mxu0 0.0
    %1567 = vmatprep.subr.mxu0 0.0
    %1568 = vmatpush1.msra.mxu0 0.0
    %1569 = vmatprep.subr.mxu0 0.0
    %1570 = vmatpush1.msra.mxu0 0.0
    %1571 = vmatprep.subr.mxu0 0.0
    %1572 = vmatpush1.msra.mxu0 0.0
    %1573 = vmatprep.subr.mxu0 0.0
    %1574 = vmatpush1.msra.mxu0 0.0
    %1575 = vmatprep.subr.mxu0 0.0
    %1576 = vmatpush1.msra.mxu0 0.0
    %1577 = vmatprep.subr.mxu0 0.0
    %1578 = vmatpush1.msra.mxu0 0.0
    %1579 = vmatprep.subr.mxu0 0.0
    %1580 = vmatpush1.msra.mxu0 0.0
    %1581 = vmatprep.mubr.f32.mxu0 0.0
    %1582 = vmatmul.mubr.f32.gmra.mrb[0].mxu0 %v1493
    %v1583 = vpop.f32.mrb[0].mxu0
    %v1584 = vadd.f32 %v1515, %v1583
    %v1585 = vpop.f32.mrb[0].mxu0
    %1586 = vdwg.mxu0
    %v1587 = vsub.f32 0.0, %v1584
    %v1588 = vmul.f32 %v1587, 1.442695
    %v1589 = vpow.pop %v1588
    %v1590 = vadd.f32 %v1589, 1.0
    %v1591 = vrcp.pop %v1590
    %v1592 = vld [vmem:[%s49] sm:$0xff]
    %v1593 = vld [vmem:[#allocation8] sm:$0x1]
    %v1595 = vlaneseq
    %v1596 = vshrl.u32 %v1595, 7
    %v1597 = vsub.s32 0, %v1596
    %v1598 = vrot.slane %v1593, %v1597
    %1600 = vmatprep.subr.mxu0 0.0
    %1601 = vmatpush1.msra.mxu0 %v1592
    %1602 = vmatprep.subr.mxu0 0.0
    %1603 = vmatpush1.msra.mxu0 0.0
    %1604 = vmatprep.subr.mxu0 0.0
    %1605 = vmatpush1.msra.mxu0 0.0
    %1606 = vmatprep.subr.mxu0 0.0
    %1607 = vmatpush1.msra.mxu0 0.0
    %1608 = vmatprep.subr.mxu0 0.0
    %1609 = vmatpush1.msra.mxu0 0.0
    %1610 = vmatprep.subr.mxu0 0.0
    %1611 = vmatpush1.msra.mxu0 0.0
    %1612 = vmatprep.subr.mxu0 0.0
    %1613 = vmatpush1.msra.mxu0 0.0
    %1614 = vmatprep.subr.mxu0 0.0
    %1615 = vmatpush1.msra.mxu0 0.0
    %1616 = vmatprep.subr.mxu0 0.0
    %1617 = vmatpush1.msra.mxu0 0.0
    %1618 = vmatprep.subr.mxu0 0.0
    %1619 = vmatpush1.msra.mxu0 0.0
    %1620 = vmatprep.subr.mxu0 0.0
    %1621 = vmatpush1.msra.mxu0 0.0
    %1622 = vmatprep.subr.mxu0 0.0
    %1623 = vmatpush1.msra.mxu0 0.0
    %1624 = vmatprep.subr.mxu0 0.0
    %1625 = vmatpush1.msra.mxu0 0.0
    %1626 = vmatprep.subr.mxu0 0.0
    %1627 = vmatpush1.msra.mxu0 0.0
    %1628 = vmatprep.subr.mxu0 0.0
    %1629 = vmatpush1.msra.mxu0 0.0
    %1630 = vmatprep.subr.mxu0 0.0
    %1631 = vmatpush1.msra.mxu0 0.0
    %1632 = vmatprep.subr.mxu0 0.0
    %1633 = vmatpush1.msra.mxu0 0.0
    %1634 = vmatprep.subr.mxu0 0.0
    %1635 = vmatpush1.msra.mxu0 0.0
    %1636 = vmatprep.subr.mxu0 0.0
    %1637 = vmatpush1.msra.mxu0 0.0
    %1638 = vmatprep.subr.mxu0 0.0
    %1639 = vmatpush1.msra.mxu0 0.0
    %1640 = vmatprep.subr.mxu0 0.0
    %1641 = vmatpush1.msra.mxu0 0.0
    %1642 = vmatprep.subr.mxu0 0.0
    %1643 = vmatpush1.msra.mxu0 0.0
    %1644 = vmatprep.subr.mxu0 0.0
    %1645 = vmatpush1.msra.mxu0 0.0
    %1646 = vmatprep.subr.mxu0 0.0
    %1647 = vmatpush1.msra.mxu0 0.0
    %1648 = vmatprep.subr.mxu0 0.0
    %1649 = vmatpush1.msra.mxu0 0.0
    %1650 = vmatprep.subr.mxu0 0.0
    %1651 = vmatpush1.msra.mxu0 0.0
    %1652 = vmatprep.subr.mxu0 0.0
    %1653 = vmatpush1.msra.mxu0 0.0
    %1654 = vmatprep.subr.mxu0 0.0
    %1655 = vmatpush1.msra.mxu0 0.0
    %1656 = vmatprep.subr.mxu0 0.0
    %1657 = vmatpush1.msra.mxu0 0.0
    %1658 = vmatprep.subr.mxu0 0.0
    %1659 = vmatpush1.msra.mxu0 0.0
    %1660 = vmatprep.subr.mxu0 0.0
    %1661 = vmatpush1.msra.mxu0 0.0
    %1662 = vmatprep.subr.mxu0 0.0
    %1663 = vmatpush1.msra.mxu0 0.0
    %1664 = vmatprep.mubr.f32.mxu0 0.0
    %1665 = vmatmul.mubr.f32.gmra.mrb[0].mxu0 %v594
    %v1666 = vpop.f32.mrb[0].mxu0
    %v1667 = vadd.f32 %v1598, %v1666
    %v1668 = vpop.f32.mrb[0].mxu0
    %1669 = vdwg.mxu0
    %v1670 = vld [vmem:[%s53] sm:$0xff]
    %v1671 = vld [vmem:[%s53 + $0x8] sm:$0xff]
    %v1672 = vld [vmem:[%s53 + $0x10] sm:$0xff]
    %v1673 = vld [vmem:[%s53 + $0x18] sm:$0xff]
    %v1674 = vld [vmem:[%s53 + $0x20] sm:$0xff]
    %v1675 = vld [vmem:[%s53 + $0x28] sm:$0xff]
    %v1676 = vld [vmem:[%s53 + $0x30] sm:$0xff]
    %v1677 = vld [vmem:[%s53 + $0x38] sm:$0xff]
    %v1678 = vld [vmem:[%s53 + $0x40] sm:$0xff]
    %v1679 = vld [vmem:[%s53 + $0x48] sm:$0xff]
    %v1680 = vld [vmem:[%s53 + $0x50] sm:$0xff]
    %v1681 = vld [vmem:[%s53 + $0x58] sm:$0xff]
    %v1682 = vld [vmem:[%s53 + $0x60] sm:$0xff]
    %v1683 = vld [vmem:[%s53 + $0x68] sm:$0xff]
    %v1684 = vld [vmem:[%s53 + $0x70] sm:$0xff]
    %v1685 = vld [vmem:[%s53 + $0x78] sm:$0xff]
    %v1686 = vld [vmem:[%s55] sm:$0xff]
    %v1687 = vld [vmem:[%s55 + $0x8] sm:$0xff]
    %v1688 = vld [vmem:[%s55 + $0x10] sm:$0xff]
    %v1689 = vld [vmem:[%s55 + $0x18] sm:$0xff]
    %v1691 = vsel %vm253, %v240, 0
    %1693 = vmatprep.subr.mxu0 0.0
    %1694 = vmatpush1.msra.mxu0 %v1686
    %1695 = vmatprep.subr.mxu0 0.0
    %1696 = vmatpush1.msra.mxu0 %v1687
    %1697 = vmatprep.subr.mxu0 0.0
    %1698 = vmatpush1.msra.mxu0 %v1688
    %1699 = vmatprep.subr.mxu0 0.0
    %1700 = vmatpush1.msra.mxu0 %v1689
    %1701 = vmatprep.subr.mxu0 0.0
    %1702 = vmatpush1.msra.mxu0 0.0
    %1703 = vmatprep.subr.mxu0 0.0
    %1704 = vmatpush1.msra.mxu0 0.0
    %1705 = vmatprep.subr.mxu0 0.0
    %1706 = vmatpush1.msra.mxu0 0.0
    %1707 = vmatprep.subr.mxu0 0.0
    %1708 = vmatpush1.msra.mxu0 0.0
    %1709 = vmatprep.subr.mxu0 0.0
    %1710 = vmatpush1.msra.mxu0 0.0
    %1711 = vmatprep.subr.mxu0 0.0
    %1712 = vmatpush1.msra.mxu0 0.0
    %1713 = vmatprep.subr.mxu0 0.0
    %1714 = vmatpush1.msra.mxu0 0.0
    %1715 = vmatprep.subr.mxu0 0.0
    %1716 = vmatpush1.msra.mxu0 0.0
    %1717 = vmatprep.subr.mxu0 0.0
    %1718 = vmatpush1.msra.mxu0 0.0
    %1719 = vmatprep.subr.mxu0 0.0
    %1720 = vmatpush1.msra.mxu0 0.0
    %1721 = vmatprep.subr.mxu0 0.0
    %1722 = vmatpush1.msra.mxu0 0.0
    %1723 = vmatprep.subr.mxu0 0.0
    %1724 = vmatpush1.msra.mxu0 0.0
    %1725 = vmatprep.subr.mxu0 0.0
    %1726 = vmatpush1.msra.mxu0 0.0
    %1727 = vmatprep.subr.mxu0 0.0
    %1728 = vmatpush1.msra.mxu0 0.0
    %1729 = vmatprep.subr.mxu0 0.0
    %1730 = vmatpush1.msra.mxu0 0.0
    %1731 = vmatprep.subr.mxu0 0.0
    %1732 = vmatpush1.msra.mxu0 0.0
    %1733 = vmatprep.subr.mxu0 0.0
    %1734 = vmatpush1.msra.mxu0 0.0
    %1735 = vmatprep.subr.mxu0 0.0
    %1736 = vmatpush1.msra.mxu0 0.0
    %1737 = vmatprep.subr.mxu0 0.0
    %1738 = vmatpush1.msra.mxu0 0.0
    %1739 = vmatprep.subr.mxu0 0.0
    %1740 = vmatpush1.msra.mxu0 0.0
    %1741 = vmatprep.subr.mxu0 0.0
    %1742 = vmatpush1.msra.mxu0 0.0
    %1743 = vmatprep.subr.mxu0 0.0
    %1744 = vmatpush1.msra.mxu0 0.0
    %1745 = vmatprep.subr.mxu0 0.0
    %1746 = vmatpush1.msra.mxu0 0.0
    %1747 = vmatprep.subr.mxu0 0.0
    %1748 = vmatpush1.msra.mxu0 0.0
    %1749 = vmatprep.subr.mxu0 0.0
    %1750 = vmatpush1.msra.mxu0 0.0
    %1751 = vmatprep.subr.mxu0 0.0
    %1752 = vmatpush1.msra.mxu0 0.0
    %1753 = vmatprep.subr.mxu0 0.0
    %1754 = vmatpush1.msra.mxu0 0.0
    %1755 = vmatprep.subr.mxu0 0.0
    %1756 = vmatpush1.msra.mxu0 0.0
    %1757 = vmatprep.mubr.f32.mxu0 0.0
    %1758 = vmatmul.mubr.f32.gmra.mrb[0].mxu0 %v1691
    %v1759 = vpop.f32.mrb[0].mxu0
    %v1760 = vadd.f32 0.0, %v1759
    %v1761 = vpop.f32.mrb[0].mxu0
    %1762 = vdwg.mxu0
    %1763 = vmatprep.subr.mxu0 0.0
    %1764 = vmatpush1.msra.mxu0 %v1670
    %1765 = vmatprep.subr.mxu0 0.0
    %1766 = vmatpush1.msra.mxu0 %v1671
    %1767 = vmatprep.subr.mxu0 0.0
    %1768 = vmatpush1.msra.mxu0 %v1672
    %1769 = vmatprep.subr.mxu0 0.0
    %1770 = vmatpush1.msra.mxu0 %v1673
    %1771 = vmatprep.subr.mxu0 0.0
    %1772 = vmatpush1.msra.mxu0 %v1674
    %1773 = vmatprep.subr.mxu0 0.0
    %1774 = vmatpush1.msra.mxu0 %v1675
    %1775 = vmatprep.subr.mxu0 0.0
    %1776 = vmatpush1.msra.mxu0 %v1676
    %1777 = vmatprep.subr.mxu0 0.0
    %1778 = vmatpush1.msra.mxu0 %v1677
    %1779 = vmatprep.subr.mxu0 0.0
    %1780 = vmatpush1.msra.mxu0 %v1678
    %1781 = vmatprep.subr.mxu0 0.0
    %1782 = vmatpush1.msra.mxu0 %v1679
    %1783 = vmatprep.subr.mxu0 0.0
    %1784 = vmatpush1.msra.mxu0 %v1680
    %1785 = vmatprep.subr.mxu0 0.0
    %1786 = vmatpush1.msra.mxu0 %v1681
    %1787 = vmatprep.subr.mxu0 0.0
    %1788 = vmatpush1.msra.mxu0 %v1682
    %1789 = vmatprep.subr.mxu0 0.0
    %1790 = vmatpush1.msra.mxu0 %v1683
    %1791 = vmatprep.subr.mxu0 0.0
    %1792 = vmatpush1.msra.mxu0 %v1684
    %1793 = vmatprep.subr.mxu0 0.0
    %1794 = vmatpush1.msra.mxu0 %v1685
    %1795 = vmatprep.subr.mxu0 0.0
    %1796 = vmatpush1.msra.mxu0 0.0
    %1797 = vmatprep.subr.mxu0 0.0
    %1798 = vmatpush1.msra.mxu0 0.0
    %1799 = vmatprep.subr.mxu0 0.0
    %1800 = vmatpush1.msra.mxu0 0.0
    %1801 = vmatprep.subr.mxu0 0.0
    %1802 = vmatpush1.msra.mxu0 0.0
    %1803 = vmatprep.subr.mxu0 0.0
    %1804 = vmatpush1.msra.mxu0 0.0
    %1805 = vmatprep.subr.mxu0 0.0
    %1806 = vmatpush1.msra.mxu0 0.0
    %1807 = vmatprep.subr.mxu0 0.0
    %1808 = vmatpush1.msra.mxu0 0.0
    %1809 = vmatprep.subr.mxu0 0.0
    %1810 = vmatpush1.msra.mxu0 0.0
    %1811 = vmatprep.subr.mxu0 0.0
    %1812 = vmatpush1.msra.mxu0 0.0
    %1813 = vmatprep.subr.mxu0 0.0
    %1814 = vmatpush1.msra.mxu0 0.0
    %1815 = vmatprep.subr.mxu0 0.0
    %1816 = vmatpush1.msra.mxu0 0.0
    %1817 = vmatprep.subr.mxu0 0.0
    %1818 = vmatpush1.msra.mxu0 0.0
    %1819 = vmatprep.subr.mxu0 0.0
    %1820 = vmatpush1.msra.mxu0 0.0
    %1821 = vmatprep.subr.mxu0 0.0
    %1822 = vmatpush1.msra.mxu0 0.0
    %1823 = vmatprep.subr.mxu0 0.0
    %1824 = vmatpush1.msra.mxu0 0.0
    %1825 = vmatprep.subr.mxu0 0.0
    %1826 = vmatpush1.msra.mxu0 0.0
    %1827 = vmatprep.mubr.f32.mxu0 0.0
    %1828 = vmatmul.mubr.f32.gmra.mrb[0].mxu0 %v1667
    %v1829 = vpop.f32.mrb[0].mxu0
    %v1830 = vadd.f32 %v1760, %v1829
    %v1831 = vpop.f32.mrb[0].mxu0
    %1832 = vdwg.mxu0
    %v1833 = vld [vmem:[#allocation10] sm:$0xff]
    %v1834 = vld [vmem:[#allocation10 + $0x8] sm:$0xff]
    %v1835 = vld [vmem:[#allocation10 + $0x10] sm:$0xff]
    %v1836 = vld [vmem:[#allocation10 + $0x18] sm:$0xff]
    %v1838 = vsel %vm253, %v413, 0
    %1840 = vmatprep.subr.mxu0 0.0
    %1841 = vmatpush1.msra.mxu0 %v1833
    %1842 = vmatprep.subr.mxu0 0.0
    %1843 = vmatpush1.msra.mxu0 %v1834
    %1844 = vmatprep.subr.mxu0 0.0
    %1845 = vmatpush1.msra.mxu0 %v1835
    %1846 = vmatprep.subr.mxu0 0.0
    %1847 = vmatpush1.msra.mxu0 %v1836
    %1848 = vmatprep.subr.mxu0 0.0
    %1849 = vmatpush1.msra.mxu0 0.0
    %1850 = vmatprep.subr.mxu0 0.0
    %1851 = vmatpush1.msra.mxu0 0.0
    %1852 = vmatprep.subr.mxu0 0.0
    %1853 = vmatpush1.msra.mxu0 0.0
    %1854 = vmatprep.subr.mxu0 0.0
    %1855 = vmatpush1.msra.mxu0 0.0
    %1856 = vmatprep.subr.mxu0 0.0
    %1857 = vmatpush1.msra.mxu0 0.0
    %1858 = vmatprep.subr.mxu0 0.0
    %1859 = vmatpush1.msra.mxu0 0.0
    %1860 = vmatprep.subr.mxu0 0.0
    %1861 = vmatpush1.msra.mxu0 0.0
    %1862 = vmatprep.subr.mxu0 0.0
    %1863 = vmatpush1.msra.mxu0 0.0
    %1864 = vmatprep.subr.mxu0 0.0
    %1865 = vmatpush1.msra.mxu0 0.0
    %1866 = vmatprep.subr.mxu0 0.0
    %1867 = vmatpush1.msra.mxu0 0.0
    %1868 = vmatprep.subr.mxu0 0.0
    %1869 = vmatpush1.msra.mxu0 0.0
    %1870 = vmatprep.subr.mxu0 0.0
    %1871 = vmatpush1.msra.mxu0 0.0
    %1872 = vmatprep.subr.mxu0 0.0
    %1873 = vmatpush1.msra.mxu0 0.0
    %1874 = vmatprep.subr.mxu0 0.0
    %1875 = vmatpush1.msra.mxu0 0.0
    %1876 = vmatprep.subr.mxu0 0.0
    %1877 = vmatpush1.msra.mxu0 0.0
    %1878 = vmatprep.subr.mxu0 0.0
    %1879 = vmatpush1.msra.mxu0 0.0
    %1880 = vmatprep.subr.mxu0 0.0
    %1881 = vmatpush1.msra.mxu0 0.0
    %1882 = vmatprep.subr.mxu0 0.0
    %1883 = vmatpush1.msra.mxu0 0.0
    %1884 = vmatprep.subr.mxu0 0.0
    %1885 = vmatpush1.msra.mxu0 0.0
    %1886 = vmatprep.subr.mxu0 0.0
    %1887 = vmatpush1.msra.mxu0 0.0
    %1888 = vmatprep.subr.mxu0 0.0
    %1889 = vmatpush1.msra.mxu0 0.0
    %1890 = vmatprep.subr.mxu0 0.0
    %1891 = vmatpush1.msra.mxu0 0.0
    %1892 = vmatprep.subr.mxu0 0.0
    %1893 = vmatpush1.msra.mxu0 0.0
    %1894 = vmatprep.subr.mxu0 0.0
    %1895 = vmatpush1.msra.mxu0 0.0
    %1896 = vmatprep.subr.mxu0 0.0
    %1897 = vmatpush1.msra.mxu0 0.0
    %1898 = vmatprep.subr.mxu0 0.0
    %1899 = vmatpush1.msra.mxu0 0.0
    %1900 = vmatprep.subr.mxu0 0.0
    %1901 = vmatpush1.msra.mxu0 0.0
    %1902 = vmatprep.subr.mxu0 0.0
    %1903 = vmatpush1.msra.mxu0 0.0
    %1904 = vmatprep.mubr.f32.mxu0 0.0
    %1905 = vmatmul.mubr.f32.gmra.mrb[0].mxu0 %v1838
    %v1906 = vpop.f32.mrb[0].mxu0
    %v1907 = vadd.f32 0.0, %v1906
    %v1908 = vpop.f32.mrb[0].mxu0
    %1909 = vdwg.mxu0
    %v1910 = vadd.f32 %v1830, %v1907
    %v1911 = vld [vmem:[#allocation11] sm:$0x1]
    %v1913 = vlaneseq
    %v1914 = vshrl.u32 %v1913, 7
    %v1915 = vsub.s32 0, %v1914
    %v1916 = vrot.slane %v1911, %v1915
    %v1918 = vadd.f32 %v1910, %v1916
    %v1919 = vld [vmem:[%s61] sm:$0xff]
    %v1920 = vld [vmem:[%s61 + $0x8] sm:$0xff]
    %v1921 = vld [vmem:[%s61 + $0x10] sm:$0xff]
    %v1922 = vld [vmem:[%s61 + $0x18] sm:$0xff]
    %v1923 = vld [vmem:[%s61 + $0x20] sm:$0xff]
    %v1924 = vld [vmem:[%s61 + $0x28] sm:$0xff]
    %v1925 = vld [vmem:[%s61 + $0x30] sm:$0xff]
    %v1926 = vld [vmem:[%s61 + $0x38] sm:$0xff]
    %v1927 = vld [vmem:[#allocation13] sm:$0x1]
    %v1929 = vlaneseq
    %v1930 = vshrl.u32 %v1929, 7
    %v1931 = vsub.s32 0, %v1930
    %v1932 = vrot.slane %v1927, %v1931
    %vm1934 = vcmask 523264
    %v1936 = vsel %vm1934, %v1918, 0
    %1938 = vmatprep.subr.mxu0 0.0
    %1939 = vmatpush1.msra.mxu0 %v1919
    %1940 = vmatprep.subr.mxu0 0.0
    %1941 = vmatpush1.msra.mxu0 %v1920
    %1942 = vmatprep.subr.mxu0 0.0
    %1943 = vmatpush1.msra.mxu0 %v1921
    %1944 = vmatprep.subr.mxu0 0.0
    %1945 = vmatpush1.msra.mxu0 %v1922
    %1946 = vmatprep.subr.mxu0 0.0
    %1947 = vmatpush1.msra.mxu0 %v1923
    %1948 = vmatprep.subr.mxu0 0.0
    %1949 = vmatpush1.msra.mxu0 %v1924
    %1950 = vmatprep.subr.mxu0 0.0
    %1951 = vmatpush1.msra.mxu0 %v1925
    %1952 = vmatprep.subr.mxu0 0.0
    %1953 = vmatpush1.msra.mxu0 %v1926
    %1954 = vmatprep.subr.mxu0 0.0
    %1955 = vmatpush1.msra.mxu0 0.0
    %1956 = vmatprep.subr.mxu0 0.0
    %1957 = vmatpush1.msra.mxu0 0.0
    %1958 = vmatprep.subr.mxu0 0.0
    %1959 = vmatpush1.msra.mxu0 0.0
    %1960 = vmatprep.subr.mxu0 0.0
    %1961 = vmatpush1.msra.mxu0 0.0
    %1962 = vmatprep.subr.mxu0 0.0
    %1963 = vmatpush1.msra.mxu0 0.0
    %1964 = vmatprep.subr.mxu0 0.0
    %1965 = vmatpush1.msra.mxu0 0.0
    %1966 = vmatprep.subr.mxu0 0.0
    %1967 = vmatpush1.msra.mxu0 0.0
    %1968 = vmatprep.subr.mxu0 0.0
    %1969 = vmatpush1.msra.mxu0 0.0
    %1970 = vmatprep.subr.mxu0 0.0
    %1971 = vmatpush1.msra.mxu0 0.0
    %1972 = vmatprep.subr.mxu0 0.0
    %1973 = vmatpush1.msra.mxu0 0.0
    %1974 = vmatprep.subr.mxu0 0.0
    %1975 = vmatpush1.msra.mxu0 0.0
    %1976 = vmatprep.subr.mxu0 0.0
    %1977 = vmatpush1.msra.mxu0 0.0
    %1978 = vmatprep.subr.mxu0 0.0
    %1979 = vmatpush1.msra.mxu0 0.0
    %1980 = vmatprep.subr.mxu0 0.0
    %1981 = vmatpush1.msra.mxu0 0.0
    %1982 = vmatprep.subr.mxu0 0.0
    %1983 = vmatpush1.msra.mxu0 0.0
    %1984 = vmatprep.subr.mxu0 0.0
    %1985 = vmatpush1.msra.mxu0 0.0
    %1986 = vmatprep.subr.mxu0 0.0
    %1987 = vmatpush1.msra.mxu0 0.0
    %1988 = vmatprep.subr.mxu0 0.0
    %1989 = vmatpush1.msra.mxu0 0.0
    %1990 = vmatprep.subr.mxu0 0.0
    %1991 = vmatpush1.msra.mxu0 0.0
    %1992 = vmatprep.subr.mxu0 0.0
    %1993 = vmatpush1.msra.mxu0 0.0
    %1994 = vmatprep.subr.mxu0 0.0
    %1995 = vmatpush1.msra.mxu0 0.0
    %1996 = vmatprep.subr.mxu0 0.0
    %1997 = vmatpush1.msra.mxu0 0.0
    %1998 = vmatprep.subr.mxu0 0.0
    %1999 = vmatpush1.msra.mxu0 0.0
    %2000 = vmatprep.subr.mxu0 0.0
    %2001 = vmatpush1.msra.mxu0 0.0
    %2002 = vmatprep.mubr.f32.mxu0 0.0
    %2003 = vmatmul.mubr.f32.gmra.mrb[0].mxu0 %v1936
    %v2004 = vpop.f32.mrb[0].mxu0
    %v2005 = vadd.f32 %v1932, %v2004
    %v2006 = vpop.f32.mrb[0].mxu0
    %2007 = vdwg.mxu0
    %v2008 = vld [vmem:[%s65] sm:$0xff]
    %v2009 = vld [vmem:[%s65 + $0x8] sm:$0xff]
    %v2010 = vld [vmem:[%s65 + $0x10] sm:$0xff]
    %v2011 = vld [vmem:[%s65 + $0x18] sm:$0xff]
    %v2012 = vld [vmem:[#allocation14] sm:$0x1]
    %v2014 = vlaneseq
    %v2015 = vshrl.u32 %v2014, 7
    %v2016 = vsub.s32 0, %v2015
    %v2017 = vrot.slane %v2012, %v2016
    %v2020 = vsel %vm253, %v2005, 0
    %2022 = vmatprep.subr.mxu0 0.0
    %2023 = vmatpush1.msra.mxu0 %v2008
    %2024 = vmatprep.subr.mxu0 0.0
    %2025 = vmatpush1.msra.mxu0 %v2009
    %2026 = vmatprep.subr.mxu0 0.0
    %2027 = vmatpush1.msra.mxu0 %v2010
    %2028 = vmatprep.subr.mxu0 0.0
    %2029 = vmatpush1.msra.mxu0 %v2011
    %2030 = vmatprep.subr.mxu0 0.0
    %2031 = vmatpush1.msra.mxu0 0.0
    %2032 = vmatprep.subr.mxu0 0.0
    %2033 = vmatpush1.msra.mxu0 0.0
    %2034 = vmatprep.subr.mxu0 0.0
    %2035 = vmatpush1.msra.mxu0 0.0
    %2036 = vmatprep.subr.mxu0 0.0
    %2037 = vmatpush1.msra.mxu0 0.0
    %2038 = vmatprep.subr.mxu0 0.0
    %2039 = vmatpush1.msra.mxu0 0.0
    %2040 = vmatprep.subr.mxu0 0.0
    %2041 = vmatpush1.msra.mxu0 0.0
    %2042 = vmatprep.subr.mxu0 0.0
    %2043 = vmatpush1.msra.mxu0 0.0
    %2044 = vmatprep.subr.mxu0 0.0
    %2045 = vmatpush1.msra.mxu0 0.0
    %2046 = vmatprep.subr.mxu0 0.0
    %2047 = vmatpush1.msra.mxu0 0.0
    %2048 = vmatprep.subr.mxu0 0.0
    %2049 = vmatpush1.msra.mxu0 0.0
    %2050 = vmatprep.subr.mxu0 0.0
    %2051 = vmatpush1.msra.mxu0 0.0
    %2052 = vmatprep.subr.mxu0 0.0
    %2053 = vmatpush1.msra.mxu0 0.0
    %2054 = vmatprep.subr.mxu0 0.0
    %2055 = vmatpush1.msra.mxu0 0.0
    %2056 = vmatprep.subr.mxu0 0.0
    %2057 = vmatpush1.msra.mxu0 0.0
    %2058 = vmatprep.subr.mxu0 0.0
    %2059 = vmatpush1.msra.mxu0 0.0
    %2060 = vmatprep.subr.mxu0 0.0
    %2061 = vmatpush1.msra.mxu0 0.0
    %2062 = vmatprep.subr.mxu0 0.0
    %2063 = vmatpush1.msra.mxu0 0.0
    %2064 = vmatprep.subr.mxu0 0.0
    %2065 = vmatpush1.msra.mxu0 0.0
    %2066 = vmatprep.subr.mxu0 0.0
    %2067 = vmatpush1.msra.mxu0 0.0
    %2068 = vmatprep.subr.mxu0 0.0
    %2069 = vmatpush1.msra.mxu0 0.0
    %2070 = vmatprep.subr.mxu0 0.0
    %2071 = vmatpush1.msra.mxu0 0.0
    %2072 = vmatprep.subr.mxu0 0.0
    %2073 = vmatpush1.msra.mxu0 0.0
    %2074 = vmatprep.subr.mxu0 0.0
    %2075 = vmatpush1.msra.mxu0 0.0
    %2076 = vmatprep.subr.mxu0 0.0
    %2077 = vmatpush1.msra.mxu0 0.0
    %2078 = vmatprep.subr.mxu0 0.0
    %2079 = vmatpush1.msra.mxu0 0.0
    %2080 = vmatprep.subr.mxu0 0.0
    %2081 = vmatpush1.msra.mxu0 0.0
    %2082 = vmatprep.subr.mxu0 0.0
    %2083 = vmatpush1.msra.mxu0 0.0
    %2084 = vmatprep.subr.mxu0 0.0
    %2085 = vmatpush1.msra.mxu0 0.0
    %2086 = vmatprep.mubr.f32.mxu0 0.0
    %2087 = vmatmul.mubr.f32.gmra.mrb[0].mxu0 %v2020
    %v2088 = vpop.f32.mrb[0].mxu0
    %v2089 = vadd.f32 %v2017, %v2088
    %v2090 = vpop.f32.mrb[0].mxu0
    %2091 = vdwg.mxu0
    %v2092 = vround.ne.pseudo %v2089
    %2093 = vst [vmem:[%s69] sm:$0x3] 0.0
    %2094 = vst.msk [vmem:[%s69] sm:$0x3] %vm580, %v576
    %2096 = vrot.lane.b32.xlu0 %v2092, 8
    %v2097 = vpop.permute.xlu0 %2096
    %vm2099 = vcmask 123968
    %2100 = vst.msk [vmem:[%s69] sm:$0x3] %vm2099, %v2097
    %2102 = vrot.lane.b32.xlu0 %v1591, 16
    %v2103 = vpop.permute.xlu0 %2102
    %vm2105 = vcmask 132224
    %2106 = vst.msk [vmem:[%s69] sm:$0x3] %vm2105, %v2103
    %vm2107 = vcmask 140424
    %2108 = vst.msk [vmem:[%s69] sm:$0x3] %vm2107, %v583
    // Predicated region
    $region170: #{mwp_forward.3} parent=1 // pred_check
      _
    $region171: #{mwp_forward.3} parent=1 // pred_check_branch
      %2110 = sbr.rel (0) target = $region173
    $region172: #{mwp_forward.3} parent=1 // pred_region
      _
    $region173: #{mwp_forward.3} parent=1 // pred_fallthru
      _
    // Predicated region
    $region174: #{mwp_forward.3} parent=1 // pred_check
      _
    $region175: #{mwp_forward.3} parent=1 // pred_check_branch
      %2112 = sbr.rel (0) target = $region177
    $region176: #{mwp_forward.3} parent=1 // pred_region
      _
    $region177: #{mwp_forward.3} parent=1 // pred_fallthru
      _
    %2113 = vsyncpa [#allocation4], 1
    %2114 = vsyncpa [#allocation6], 1
    %2115 = vsyncpa [#allocation9], 1
    %2116 = vsyncpa [#allocation12], 1
    %2117 = vsyncpa [#allocation15], 1

</llo_original>
